<compile_context>
chip_gen: v5e
topology: v5e:2x2
jax: 0.10.0
libtpu: 0.0.40
codegen_flags: <defaults>
</compile_context>

<pallas_src>
import numpy as np
import jax
import jax.numpy as jnp
from jax.experimental import pallas as pl
from jax.experimental.pallas import tpu as pltpu

HID = 25          # edge-MLP hidden width in the reference Net
HID_PAD = 32      # padded hidden width; column HID (=25) is a constant-1 bias lane
SUBLANE_PAD = 16  # bf16 sublane packing


# ------------------------------ kernel helpers -------------------------------

def _elu(y):
    # exp argument clamped so the (masked) positive branch cannot overflow.
    return jnp.where(y > 0.0, y, jnp.exp(jnp.minimum(y, 0.0)) - 1.0)


def _mxu(a, b):
    # bf16 x bf16 operands, f32 accumulation on the MXU.
    return jnp.dot(a, b, preferred_element_type=jnp.float32)


# ------------------------------ fused Pallas kernel ---------------------------

def fused_net_kernel(
    x0_ref, ea1_ref, src1_ref, dst1_ref, w1a_ref, b1a_ref, w1b_ref,
    root1_ref, bias1_ref, g1a_ref, g1b_ref,
    ea2_ref, src2_ref, dst2_ref, w2a_ref, b2a_ref, repx_ref, reph_ref,
    w2b_ref, root2_ref, bias2_ref, g2a_ref, g2b_ref,
    poolmat_ref, fw1_ref, fb1_ref, fw2_ref, fb2_ref,
    out_ref,
):
    bf16 = jnp.bfloat16

    # ---------------- conv1: NNConv(1 -> 32) + ELU ----------------
    x0 = x0_ref[...]                               # (N0, 1) f32
    x0b = x0.astype(bf16)
    # edge MLP; hidden column 25 is a constant 1 after ReLU (carries the bias)
    h1 = jnp.maximum(_mxu(ea1_ref[...], w1a_ref[...]) + b1a_ref[...], 0.0)   # (E1, 32)
    t1 = _mxu(h1.astype(bf16), w1b_ref[...])       # (E1, 32) edge-MLP out + bias (lane 25)
    xs1 = _mxu(src1_ref[...], x0b)                 # (E1, 1)  gathered source feature
    msg1 = xs1 * t1                                # (E1, 32) cin == 1 -> scalar broadcast
    agg1 = _mxu(dst1_ref[...], msg1.astype(bf16))  # (N0, 32) scatter-add (aggr='add')
    x1 = _elu(_mxu(x0b, root1_ref[...]) + agg1 + bias1_ref[...])             # (N0, 32)

    # ---------------- max_pool #1: graclus scatter-max as two gathers ---------
    x1b = x1.astype(bf16)
    x1p = jnp.maximum(_mxu(g1a_ref[...], x1b), _mxu(g1b_ref[...], x1b))       # (K1, 32)

    # ---------------- conv2: NNConv(32 -> 64) + ELU ----------------
    h2 = jnp.maximum(_mxu(ea2_ref[...], w2a_ref[...]) + b2a_ref[...], 0.0)   # (E2, 32)
    x1pb = x1p.astype(bf16)
    xs2 = _mxu(src2_ref[...], x1pb)                # (E2, 32) gathered source features
    # Fused message contraction: lane-aligned width 32*32 = 1024 = 8x128.
    a = _mxu(xs2.astype(bf16), repx_ref[...])      # (E2, 1024) repeats xs2 channels
    b = _mxu(h2.astype(bf16), reph_ref[...])       # (E2, 1024) tiles h2 (incl. bias lane)
    msg2 = _mxu((a * b).astype(bf16), w2b_ref[...])       # (E2, 64), bias folded in
    agg2 = _mxu(dst2_ref[...], msg2.astype(bf16))  # (K1, 64) scatter-add
    x2 = _elu(_mxu(x1pb, root2_ref[...]) + agg2 + bias2_ref[...])             # (K1, 64)

    # ---------------- max_pool_x #2 ----------------
    x2b = x2.astype(bf16)
    x2p = jnp.maximum(_mxu(g2a_ref[...], x2b), _mxu(g2b_ref[...], x2b))       # (K2, 64)

    # -------- global_mean_pool + fc1 + ELU + dropout(eval) + fc2 + log_softmax
    xm = _mxu(poolmat_ref[...], x2p.astype(bf16))                             # (B, 64)
    hfc = _elu(_mxu(xm.astype(bf16), fw1_ref[...]) + fb1_ref[...])            # (B, 128)
    # TODO(synk): F.dropout with training=True is stochastic; eval-mode identity.
    logits = _mxu(hfc.astype(bf16), fw2_ref[...]) + fb2_ref[...]              # (B, 10)
    m = jnp.max(logits, axis=1, keepdims=True)
    z = logits - m
    out_ref[...] = z - jnp.log(jnp.sum(jnp.exp(z), axis=1, keepdims=True))


# ------------------------- host-side graph glue (numpy) -----------------------

def build_knn_edges(pos, batch, k=4):
    n = pos.shape[0]
    rows, cols = [], []
    for i in range(n):
        same = np.where(batch == batch[i])[0]
        d = np.linalg.norm(pos[same] - pos[i], axis=1)
        d[same == i] = np.inf
        for j in same[np.argsort(d)[:k]]:
            rows.append(j)
            cols.append(i)
    row = np.array(rows)
    col = np.array(cols)
    r = np.concatenate([row, col])
    c = np.concatenate([col, row])
    e = np.unique(np.stack([r, c], axis=1), axis=0)
    return e[:, 0].astype(np.int32), e[:, 1].astype(np.int32)


def cartesian_attr(pos, row, col):
    # torch_geometric.transforms.Cartesian(norm=True)
    cart = pos[row] - pos[col]
    m = np.abs(cart).max() if cart.size else 1.0
    if m > 0:
        cart = cart / (2.0 * m) + 0.5
    return cart.astype(np.float32)


def normalized_cut_2d_np(row, col, pos):
    n = pos.shape[0]
    d = np.linalg.norm(pos[row] - pos[col], axis=1)
    deg = np.bincount(row, minlength=n).astype(np.float64)
    inv = 1.0 / np.maximum(deg, 1.0)
    return d * (inv[row] + inv[col])


def graclus_np(row, col, weight, n):
    # TODO(synk): torch_geometric.nn.graclus uses a randomized vertex order;
    # deterministic greedy heavy-edge matching used here (host-side glue).
    adj = [[] for _ in range(n)]
    for r, c, w in zip(row, col, weight):
        if r != c:
            adj[int(r)].append((int(c), float(w)))
    cluster = -np.ones(n, dtype=np.int64)
    for u in range(n):
        if cluster[u] >= 0:
            continue
        cluster[u] = u
        best, bw = -1, -np.inf
        for v, w in adj[u]:
            if cluster[v] < 0 and w > bw:
                best, bw = v, w
        if best >= 0:
            cluster[best] = u
    return cluster


def make_onehots(row, col, n):
    e = row.shape[0]
    src1h = np.zeros((e, n), np.float32)
    src1h[np.arange(e), row] = 1.0
    dst1h = np.zeros((n, e), np.float32)
    dst1h[col, np.arange(e)] = 1.0
    return src1h, dst1h


def cluster_gathers(cluster, n):
    """Relabel clusters to 0..K-1 and build two one-hot member-gather matrices.
    graclus matching pairs at most two nodes per cluster, so the scatter-max
    becomes max(G0 @ x, G1 @ x) (G1 repeats the lone member for singletons)."""
    _, assign = np.unique(cluster, return_inverse=True)
    assign = assign.reshape(-1)
    k = int(assign.max()) + 1
    members = [[] for _ in range(k)]
    for node, cid in enumerate(assign):
        members[int(cid)].append(node)
    g0 = np.zeros((k, n), np.float32)
    g1 = np.zeros((k, n), np.float32)
    for cid, ms in enumerate(members):
        assert 1 <= len(ms) <= 2
        g0[cid, ms[0]] = 1.0
        g1[cid, ms[-1]] = 1.0
    return assign, k, g0, g1


def pooled_graph(assign, k, pos, batch, row, col):
    # Structure part of torch_geometric.nn.max_pool: mean positions, pooled
    # batch vector, coalesced (deduplicated, self-loop-free) edges.
    onehot = (assign[None, :] == np.arange(k)[:, None]).astype(np.float64)
    counts = onehot.sum(axis=1, keepdims=True)
    pos_p = (onehot @ pos) / counts
    batch_p = np.zeros(k, dtype=np.int64)
    batch_p[assign] = batch
    r2, c2 = assign[row], assign[col]
    mask = r2 != c2
    if mask.any():
        e = np.unique(np.stack([r2[mask], c2[mask]], axis=1), axis=0)
        row_p, col_p = e[:, 0].astype(np.int32), e[:, 1].astype(np.int32)
    else:
        row_p = np.zeros((0,), np.int32)
        col_p = np.zeros((0,), np.int32)
    return pos_p.astype(np.float32), batch_p, row_p, col_p


def make_rep_matrices(cin, hid):
    # REPX: (cin, cin*hid) with REPX[c, c*hid + j] = 1  -> repeats xs2 channels.
    # REPH: (hid, cin*hid) with REPH[j, c*hid + j] = 1  -> tiles h along lanes
    #       (row HID replicates the constant-1 bias lane into every block).
    repx = np.zeros((cin, cin * hid), np.float32)
    reph = np.zeros((hid, cin * hid), np.float32)
    eye = np.eye(hid, dtype=np.float32)
    for c in range(cin):
        repx[c, c * hid:(c + 1) * hid] = 1.0
        reph[:, c * hid:(c + 1) * hid] = eye
    return repx, reph


def _pad_axis(a, axis, mult):
    pad = (-a.shape[axis]) % mult
    if pad == 0:
        return a
    widths = [(0, 0)] * a.ndim
    widths[axis] = (0, pad)
    return np.pad(a, widths)


# ----------------------------- parameters -------------------------------------

def lin_init(key, fan_in, fan_out):
    kw, kb = jax.random.split(key)
    bound = 1.0 / np.sqrt(fan_in)
    w = jax.random.uniform(kw, (fan_in, fan_out), jnp.float32, -bound, bound)
    b = jax.random.uniform(kb, (1, fan_out), jnp.float32, -bound, bound)
    return w, b


def init_params(key, num_features=1, num_classes=10):
    ks = jax.random.split(key, 8)
    # conv1: NNConv(num_features, 32, nn=Linear(2,25)->ReLU->Linear(25, nf*32))
    w1a, b1a = lin_init(ks[0], 2, HID)
    w1b, b1b = lin_init(ks[1], HID, num_features * 32)
    root1 = jax.random.uniform(ks[2], (num_features, 32), jnp.float32, -1.0, 1.0) \
        / np.sqrt(num_features)
    bias1 = jnp.zeros((1, 32), jnp.float32)
    # conv2: NNConv(32, 64, nn=Linear(2,25)->ReLU->Linear(25, 2048))
    w2a, b2a = lin_init(ks[3], 2, HID)
    w2b, b2b = lin_init(ks[4], HID, 32 * 64)
    root2 = jax.random.uniform(ks[5], (32, 64), jnp.float32, -1.0, 1.0) / np.sqrt(32)
    bias2 = jnp.zeros((1, 64), jnp.float32)
    fc1 = lin_init(ks[6], 64, 128)
    fc2 = lin_init(ks[7], 128, num_classes)
    return {"conv1": (w1a, b1a, w1b, b1b, root1, bias1),
            "conv2": (w2a, b2a, w2b, b2b, root2, bias2),
            "fc1": fc1, "fc2": fc2}


def _pad_edge_mlp_l1(w, b):
    """Linear(2, 25) padded to (2, 32); padded bias column HID is set to 1 so
    that hidden feature is a constant 1 after ReLU (carries the layer-2 bias)."""
    wa = np.zeros((w.shape[0], HID_PAD), np.float32)
    wa[:, :HID] = np.asarray(w)
    ba = np.zeros((1, HID_PAD), np.float32)
    ba[0, :HID] = np.asarray(b).reshape(-1)
    ba[0, HID] = 1.0
    return wa, ba


def _pack_edge_mlp_l2(w, b, cin, cout):
    """Flatten Linear(25, cin*cout) (NNConv layout out[e, c*cout+o]) into the
    (cin*HID_PAD, cout) matrix used by the fused message matmul, padding the
    hidden dim and folding the bias into the constant-1 bias lane."""
    w3 = np.asarray(w).reshape(HID, cin, cout)        # [j, c, o]
    b2 = np.asarray(b).reshape(cin, cout)             # [c, o]
    wf = np.zeros((cin * HID_PAD, cout), np.float32)
    for c in range(cin):
        wf[c * HID_PAD: c * HID_PAD + HID, :] = w3[:, c, :]
        wf[c * HID_PAD + HID, :] = b2[c]
    return wf


def prepare_weights(p, num_features=1):
    """Pack/flatten/pad weights once; bf16 for all matmul operands, f32 biases."""
    bf = jnp.bfloat16
    f32 = jnp.float32
    w1a, b1a, w1b, b1b, root1, bias1 = p["conv1"]
    w2a, b2a, w2b, b2b, root2, bias2 = p["conv2"]
    (fw1, fb1), (fw2, fb2) = p["fc1"], p["fc2"]

    w1a_p, b1a_p = _pad_edge_mlp_l1(w1a, b1a)
    w1b_f = _pack_edge_mlp_l2(w1b, b1b, num_features, 32)
    w2a_p, b2a_p = _pad_edge_mlp_l1(w2a, b2a)
    w2b_f = _pack_edge_mlp_l2(w2b, b2b, 32, 64)

    return dict(
        w1a=jnp.asarray(w1a_p, bf), b1a=jnp.asarray(b1a_p, f32),
        w1b=jnp.asarray(w1b_f, bf), root1=jnp.asarray(root1, bf),
        bias1=jnp.asarray(bias1, f32),
        w2a=jnp.asarray(w2a_p, bf), b2a=jnp.asarray(b2a_p, f32),
        w2b=jnp.asarray(w2b_f, bf), root2=jnp.asarray(root2, bf),
        bias2=jnp.asarray(bias2, f32),
        fw1=jnp.asarray(fw1, bf), fb1=jnp.asarray(fb1, f32),
        fw2=jnp.asarray(fw2, bf), fb2=jnp.asarray(fb2, f32),
    )


def prepare_structure(x, pos, batch, row, col):
    """Host-side graph glue, built ONCE per graph/batch and kept device-resident."""
    bf = jnp.bfloat16
    n0 = pos.shape[0]
    nb = int(batch.max()) + 1

    # conv1 structure
    ea1 = cartesian_attr(pos, row, col)
    src1, dst1 = make_onehots(row, col, n0)

    # pooling 1: normalized_cut_2d -> graclus -> member gathers + pooled graph
    w = normalized_cut_2d_np(row, col, pos)
    cl1 = graclus_np(row, col, w, n0)
    assign1, k1, g1a, g1b = cluster_gathers(cl1, n0)
    pos1, batch1, row1, col1 = pooled_graph(assign1, k1, pos, batch, row, col)

    # conv2 structure
    if row1.size:
        ea2 = cartesian_attr(pos1, row1, col1)
        src2, dst2 = make_onehots(row1, col1, k1)
    else:
        ea2 = np.zeros((0, 2), np.float32)
        src2 = np.zeros((0, k1), np.float32)
        dst2 = np.zeros((k1, 0), np.float32)

    # pooling 2 (max_pool_x): member gathers + pooled batch
    w2 = normalized_cut_2d_np(row1, col1, pos1)
    cl2 = graclus_np(row1, col1, w2, k1)
    assign2, k2, g2a, g2b = cluster_gathers(cl2, k1)
    batch2 = np.zeros(k2, dtype=np.int64)
    batch2[assign2] = batch1

    # global mean pool matrix (B, K2)
    poolmat = (batch2[None, :] == np.arange(nb)[:, None]).astype(np.float32)
    poolmat = poolmat / np.maximum(poolmat.sum(axis=1, keepdims=True), 1.0)

    # architecture-constant replication matrices for the fused conv2 message matmul
    repx, reph = make_rep_matrices(32, HID_PAD)

    # sublane padding to multiples of 16; zero rows/cols are no-op edges/clusters.
    P = SUBLANE_PAD
    x_p = _pad_axis(np.asarray(x, np.float32), 0, P)
    ea1 = _pad_axis(ea1, 0, P)
    src1 = _pad_axis(_pad_axis(src1, 0, P), 1, P)          # (E1p, N0p)
    dst1 = _pad_axis(_pad_axis(dst1, 0, P), 1, P)          # (N0p, E1p)
    g1a = _pad_axis(_pad_axis(g1a, 0, P), 1, P)            # (K1p, N0p)
    g1b = _pad_axis(_pad_axis(g1b, 0, P), 1, P)
    ea2 = _pad_axis(ea2, 0, P)
    src2 = _pad_axis(_pad_axis(src2, 0, P), 1, P)          # (E2p, K1p)
    dst2 = _pad_axis(_pad_axis(dst2, 0, P), 1, P)          # (K1p, E2p)
    g2a = _pad_axis(_pad_axis(g2a, 0, P), 1, P)            # (K2p, K1p)
    g2b = _pad_axis(_pad_axis(g2b, 0, P), 1, P)
    poolmat = _pad_axis(poolmat, 1, P)                     # (B, K2p)

    return dict(
        x0=jnp.asarray(x_p, jnp.float32),
        ea1=jnp.asarray(ea1, bf), src1=jnp.asarray(src1, bf), dst1=jnp.asarray(dst1, bf),
        g1a=jnp.asarray(g1a, bf), g1b=jnp.asarray(g1b, bf),
        ea2=jnp.asarray(ea2, bf), src2=jnp.asarray(src2, bf), dst2=jnp.asarray(dst2, bf),
        repx=jnp.asarray(repx, bf), reph=jnp.asarray(reph, bf),
        g2a=jnp.asarray(g2a, bf), g2b=jnp.asarray(g2b, bf),
        poolmat=jnp.asarray(poolmat, bf),
        num_graphs=nb,
    )


# -------------------------------- forward --------------------------------------

def mpnn_forward(struct, weights):
    args = (
        struct["x0"],
        struct["ea1"], struct["src1"], struct["dst1"],
        weights["w1a"], weights["b1a"], weights["w1b"],
        weights["root1"], weights["bias1"],
        struct["g1a"], struct["g1b"],
        struct["ea2"], struct["src2"], struct["dst2"],
        weights["w2a"], weights["b2a"], struct["repx"], struct["reph"],
        weights["w2b"], weights["root2"], weights["bias2"],
        struct["g2a"], struct["g2b"],
        struct["poolmat"], weights["fw1"], weights["fb1"],
        weights["fw2"], weights["fb2"],
    )
    nb = struct["num_graphs"]
    ncls = weights["fw2"].shape[1]
    vmem = pl.BlockSpec(memory_space=pltpu.MemorySpace.VMEM)
    # TODO(synk): at realistic MNIST-superpixel batch sizes the dense one-hot
    # design outgrows VMEM (64 MiB on v7x); switch to an edge-tiled grid with
    # scalar-prefetched edge indices there. Gridless + VMEM-resident is fastest
    # at this toy size (single launch, no HBM round trips).
    return pl.pallas_call(
        fused_net_kernel,
        out_shape=jax.ShapeDtypeStruct((nb, ncls), jnp.float32),
        in_specs=[vmem] * len(args),
        out_specs=vmem,
    )(*args)


# --------------------------------- main ----------------------------------------

if __name__ == "__main__":
    B, NODES_PER_GRAPH = 2, 32
    N = B * NODES_PER_GRAPH
    key = jax.random.PRNGKey(0)
    k_pos, k_x, k_par = jax.random.split(key, 3)

    pos = np.asarray(jax.random.uniform(k_pos, (N, 2), jnp.float32))
    x = np.asarray(jax.random.uniform(k_x, (N, 1), jnp.float32))   # num_features = 1
    batch = np.repeat(np.arange(B), NODES_PER_GRAPH)
    row, col = build_knn_edges(pos, batch, k=4)

    params = init_params(k_par, num_features=1, num_classes=10)
    weights = prepare_weights(params, num_features=1)          # packed once
    struct = prepare_structure(x, pos, batch, row, col)        # built once

    out = mpnn_forward(struct, weights)
    out = jax.block_until_ready(out)

    assert out.shape == (B, 10) and bool(jnp.all(jnp.isfinite(out)))
    print("KERNEL_OK")
</pallas_src>

<mosaic_0001>
module attributes {stable_mosaic.version = 11 : i64} {
  func.func @fused_net_kernel(%arg0: memref<64x1xf32, #tpu.memory_space<vmem>>, %arg1: memref<320x2xbf16, #tpu.memory_space<vmem>>, %arg2: memref<320x64xbf16, #tpu.memory_space<vmem>>, %arg3: memref<64x320xbf16, #tpu.memory_space<vmem>>, %arg4: memref<2x32xbf16, #tpu.memory_space<vmem>>, %arg5: memref<1x32xf32, #tpu.memory_space<vmem>>, %arg6: memref<32x32xbf16, #tpu.memory_space<vmem>>, %arg7: memref<1x32xbf16, #tpu.memory_space<vmem>>, %arg8: memref<1x32xf32, #tpu.memory_space<vmem>>, %arg9: memref<48x64xbf16, #tpu.memory_space<vmem>>, %arg10: memref<48x64xbf16, #tpu.memory_space<vmem>>, %arg11: memref<160x2xbf16, #tpu.memory_space<vmem>>, %arg12: memref<160x48xbf16, #tpu.memory_space<vmem>>, %arg13: memref<48x160xbf16, #tpu.memory_space<vmem>>, %arg14: memref<2x32xbf16, #tpu.memory_space<vmem>>, %arg15: memref<1x32xf32, #tpu.memory_space<vmem>>, %arg16: memref<32x1024xbf16, #tpu.memory_space<vmem>>, %arg17: memref<32x1024xbf16, #tpu.memory_space<vmem>>, %arg18: memref<1024x64xbf16, #tpu.memory_space<vmem>>, %arg19: memref<32x64xbf16, #tpu.memory_space<vmem>>, %arg20: memref<1x64xf32, #tpu.memory_space<vmem>>, %arg21: memref<32x48xbf16, #tpu.memory_space<vmem>>, %arg22: memref<32x48xbf16, #tpu.memory_space<vmem>>, %arg23: memref<2x32xbf16, #tpu.memory_space<vmem>>, %arg24: memref<64x128xbf16, #tpu.memory_space<vmem>>, %arg25: memref<1x128xf32, #tpu.memory_space<vmem>>, %arg26: memref<128x10xbf16, #tpu.memory_space<vmem>>, %arg27: memref<1x10xf32, #tpu.memory_space<vmem>>, %arg28: memref<2x10xf32, #tpu.memory_space<vmem>>) attributes {dimension_semantics = [], scalar_prefetch = 0 : i64, scratch_operands = 0 : i64, tpu.core_type = #tpu.core_type<tc>} {
    %c0 = arith.constant 0 : index
    %c0_0 = arith.constant 0 : index
    %0 = vector.load %arg0[%c0, %c0_0] : memref<64x1xf32, #tpu.memory_space<vmem>>, vector<64x1xf32>
    %1 = arith.truncf %0 : vector<64x1xf32> to vector<64x1xbf16>
    %c0_1 = arith.constant 0 : index
    %c0_2 = arith.constant 0 : index
    %2 = vector.load %arg1[%c0_1, %c0_2] : memref<320x2xbf16, #tpu.memory_space<vmem>>, vector<320x2xbf16>
    %c0_3 = arith.constant 0 : index
    %c0_4 = arith.constant 0 : index
    %3 = vector.load %arg4[%c0_3, %c0_4] : memref<2x32xbf16, #tpu.memory_space<vmem>>, vector<2x32xbf16>
    %cst = arith.constant dense<0.000000e+00> : vector<320x32xf32>
    %4 = tpu.matmul %2, %3, %cst {dimension_numbers = #tpu.dot_dimension_numbers<[1], [0], [0], [1], [0, 0, 1, 1], [], []>} : vector<320x2xbf16>, vector<2x32xbf16>, vector<320x32xf32> -> vector<320x32xf32>
    %c0_5 = arith.constant 0 : index
    %c0_6 = arith.constant 0 : index
    %5 = vector.load %arg5[%c0_5, %c0_6] : memref<1x32xf32, #tpu.memory_space<vmem>>, vector<1x32xf32>
    %6 = vector.broadcast %5 : vector<1x32xf32> to vector<320x32xf32>
    %7 = arith.addf %4, %6 : vector<320x32xf32>
    %cst_7 = arith.constant 0.000000e+00 : f32
    %8 = vector.broadcast %cst_7 : f32 to vector<320x32xf32>
    %9 = arith.maximumf %7, %8 : vector<320x32xf32>
    %10 = arith.truncf %9 : vector<320x32xf32> to vector<320x32xbf16>
    %c0_8 = arith.constant 0 : index
    %c0_9 = arith.constant 0 : index
    %11 = vector.load %arg6[%c0_8, %c0_9] : memref<32x32xbf16, #tpu.memory_space<vmem>>, vector<32x32xbf16>
    %cst_10 = arith.constant dense<0.000000e+00> : vector<320x32xf32>
    %12 = tpu.matmul %10, %11, %cst_10 {dimension_numbers = #tpu.dot_dimension_numbers<[1], [0], [0], [1], [0, 0, 1, 1], [], []>} : vector<320x32xbf16>, vector<32x32xbf16>, vector<320x32xf32> -> vector<320x32xf32>
    %c0_11 = arith.constant 0 : index
    %c0_12 = arith.constant 0 : index
    %13 = vector.load %arg2[%c0_11, %c0_12] : memref<320x64xbf16, #tpu.memory_space<vmem>>, vector<320x64xbf16>
    %cst_13 = arith.constant dense<0.000000e+00> : vector<320x1xf32>
    %14 = tpu.matmul %13, %1, %cst_13 {dimension_numbers = #tpu.dot_dimension_numbers<[1], [0], [0], [1], [0, 0, 1, 1], [], []>} : vector<320x64xbf16>, vector<64x1xbf16>, vector<320x1xf32> -> vector<320x1xf32>
    %15 = vector.broadcast %14 : vector<320x1xf32> to vector<320x32xf32>
    %16 = arith.mulf %15, %12 : vector<320x32xf32>
    %c0_14 = arith.constant 0 : index
    %c0_15 = arith.constant 0 : index
    %17 = vector.load %arg3[%c0_14, %c0_15] : memref<64x320xbf16, #tpu.memory_space<vmem>>, vector<64x320xbf16>
    %18 = arith.truncf %16 : vector<320x32xf32> to vector<320x32xbf16>
    %cst_16 = arith.constant dense<0.000000e+00> : vector<64x32xf32>
    %19 = tpu.matmul %17, %18, %cst_16 {dimension_numbers = #tpu.dot_dimension_numbers<[1], [0], [0], [1], [0, 0, 1, 1], [], []>} : vector<64x320xbf16>, vector<320x32xbf16>, vector<64x32xf32> -> vector<64x32xf32>
    %c0_17 = arith.constant 0 : index
    %c0_18 = arith.constant 0 : index
    %20 = vector.load %arg7[%c0_17, %c0_18] : memref<1x32xbf16, #tpu.memory_space<vmem>>, vector<1x32xbf16>
    %cst_19 = arith.constant dense<0.000000e+00> : vector<64x32xf32>
    %21 = tpu.matmul %1, %20, %cst_19 {dimension_numbers = #tpu.dot_dimension_numbers<[1], [0], [0], [1], [0, 0, 1, 1], [], []>} : vector<64x1xbf16>, vector<1x32xbf16>, vector<64x32xf32> -> vector<64x32xf32>
    %22 = arith.addf %21, %19 : vector<64x32xf32>
    %c0_20 = arith.constant 0 : index
    %c0_21 = arith.constant 0 : index
    %23 = vector.load %arg8[%c0_20, %c0_21] : memref<1x32xf32, #tpu.memory_space<vmem>>, vector<1x32xf32>
    %24 = vector.broadcast %23 : vector<1x32xf32> to vector<64x32xf32>
    %25 = arith.addf %22, %24 : vector<64x32xf32>
    %cst_22 = arith.constant 0.000000e+00 : f32
    %26 = vector.broadcast %cst_22 : f32 to vector<64x32xf32>
    %27 = arith.cmpf ogt, %25, %26 : vector<64x32xf32>
    %cst_23 = arith.constant 0.000000e+00 : f32
    %28 = vector.broadcast %cst_23 : f32 to vector<64x32xf32>
    %29 = arith.minimumf %25, %28 : vector<64x32xf32>
    %30 = math.exp %29 : vector<64x32xf32>
    %cst_24 = arith.constant 1.000000e+00 : f32
    %31 = vector.broadcast %cst_24 : f32 to vector<64x32xf32>
    %32 = arith.subf %30, %31 : vector<64x32xf32>
    %33 = arith.select %27, %25, %32 : vector<64x32xi1>, vector<64x32xf32>
    %34 = arith.truncf %33 : vector<64x32xf32> to vector<64x32xbf16>
    %c0_25 = arith.constant 0 : index
    %c0_26 = arith.constant 0 : index
    %35 = vector.load %arg9[%c0_25, %c0_26] : memref<48x64xbf16, #tpu.memory_space<vmem>>, vector<48x64xbf16>
    %cst_27 = arith.constant dense<0.000000e+00> : vector<48x32xf32>
    %36 = tpu.matmul %35, %34, %cst_27 {dimension_numbers = #tpu.dot_dimension_numbers<[1], [0], [0], [1], [0, 0, 1, 1], [], []>} : vector<48x64xbf16>, vector<64x32xbf16>, vector<48x32xf32> -> vector<48x32xf32>
    %c0_28 = arith.constant 0 : index
    %c0_29 = arith.constant 0 : index
    %37 = vector.load %arg10[%c0_28, %c0_29] : memref<48x64xbf16, #tpu.memory_space<vmem>>, vector<48x64xbf16>
    %cst_30 = arith.constant dense<0.000000e+00> : vector<48x32xf32>
    %38 = tpu.matmul %37, %34, %cst_30 {dimension_numbers = #tpu.dot_dimension_numbers<[1], [0], [0], [1], [0, 0, 1, 1], [], []>} : vector<48x64xbf16>, vector<64x32xbf16>, vector<48x32xf32> -> vector<48x32xf32>
    %39 = arith.maximumf %36, %38 : vector<48x32xf32>
    %c0_31 = arith.constant 0 : index
    %c0_32 = arith.constant 0 : index
    %40 = vector.load %arg11[%c0_31, %c0_32] : memref<160x2xbf16, #tpu.memory_space<vmem>>, vector<160x2xbf16>
    %c0_33 = arith.constant 0 : index
    %c0_34 = arith.constant 0 : index
    %41 = vector.load %arg14[%c0_33, %c0_34] : memref<2x32xbf16, #tpu.memory_space<vmem>>, vector<2x32xbf16>
    %cst_35 = arith.constant dense<0.000000e+00> : vector<160x32xf32>
    %42 = tpu.matmul %40, %41, %cst_35 {dimension_numbers = #tpu.dot_dimension_numbers<[1], [0], [0], [1], [0, 0, 1, 1], [], []>} : vector<160x2xbf16>, vector<2x32xbf16>, vector<160x32xf32> -> vector<160x32xf32>
    %c0_36 = arith.constant 0 : index
    %c0_37 = arith.constant 0 : index
    %43 = vector.load %arg15[%c0_36, %c0_37] : memref<1x32xf32, #tpu.memory_space<vmem>>, vector<1x32xf32>
    %44 = vector.broadcast %43 : vector<1x32xf32> to vector<160x32xf32>
    %45 = arith.addf %42, %44 : vector<160x32xf32>
    %cst_38 = arith.constant 0.000000e+00 : f32
    %46 = vector.broadcast %cst_38 : f32 to vector<160x32xf32>
    %47 = arith.maximumf %45, %46 : vector<160x32xf32>
    %48 = arith.truncf %39 : vector<48x32xf32> to vector<48x32xbf16>
    %c0_39 = arith.constant 0 : index
    %c0_40 = arith.constant 0 : index
    %49 = vector.load %arg12[%c0_39, %c0_40] : memref<160x48xbf16, #tpu.memory_space<vmem>>, vector<160x48xbf16>
    %cst_41 = arith.constant dense<0.000000e+00> : vector<160x32xf32>
    %50 = tpu.matmul %49, %48, %cst_41 {dimension_numbers = #tpu.dot_dimension_numbers<[1], [0], [0], [1], [0, 0, 1, 1], [], []>} : vector<160x48xbf16>, vector<48x32xbf16>, vector<160x32xf32> -> vector<160x32xf32>
    %51 = arith.truncf %50 : vector<160x32xf32> to vector<160x32xbf16>
    %c0_42 = arith.constant 0 : index
    %c0_43 = arith.constant 0 : index
    %52 = vector.load %arg16[%c0_42, %c0_43] : memref<32x1024xbf16, #tpu.memory_space<vmem>>, vector<32x1024xbf16>
    %cst_44 = arith.constant dense<0.000000e+00> : vector<160x1024xf32>
    %53 = tpu.matmul %51, %52, %cst_44 {dimension_numbers = #tpu.dot_dimension_numbers<[1], [0], [0], [1], [0, 0, 1, 1], [], []>} : vector<160x32xbf16>, vector<32x1024xbf16>, vector<160x1024xf32> -> vector<160x1024xf32>
    %54 = arith.truncf %47 : vector<160x32xf32> to vector<160x32xbf16>
    %c0_45 = arith.constant 0 : index
    %c0_46 = arith.constant 0 : index
    %55 = vector.load %arg17[%c0_45, %c0_46] : memref<32x1024xbf16, #tpu.memory_space<vmem>>, vector<32x1024xbf16>
    %cst_47 = arith.constant dense<0.000000e+00> : vector<160x1024xf32>
    %56 = tpu.matmul %54, %55, %cst_47 {dimension_numbers = #tpu.dot_dimension_numbers<[1], [0], [0], [1], [0, 0, 1, 1], [], []>} : vector<160x32xbf16>, vector<32x1024xbf16>, vector<160x1024xf32> -> vector<160x1024xf32>
    %57 = arith.mulf %53, %56 : vector<160x1024xf32>
    %58 = arith.truncf %57 : vector<160x1024xf32> to vector<160x1024xbf16>
    %c0_48 = arith.constant 0 : index
    %c0_49 = arith.constant 0 : index
    %59 = vector.load %arg18[%c0_48, %c0_49] : memref<1024x64xbf16, #tpu.memory_space<vmem>>, vector<1024x64xbf16>
    %cst_50 = arith.constant dense<0.000000e+00> : vector<160x64xf32>
    %60 = tpu.matmul %58, %59, %cst_50 {dimension_numbers = #tpu.dot_dimension_numbers<[1], [0], [0], [1], [0, 0, 1, 1], [], []>} : vector<160x1024xbf16>, vector<1024x64xbf16>, vector<160x64xf32> -> vector<160x64xf32>
    %c0_51 = arith.constant 0 : index
    %c0_52 = arith.constant 0 : index
    %61 = vector.load %arg13[%c0_51, %c0_52] : memref<48x160xbf16, #tpu.memory_space<vmem>>, vector<48x160xbf16>
    %62 = arith.truncf %60 : vector<160x64xf32> to vector<160x64xbf16>
    %cst_53 = arith.constant dense<0.000000e+00> : vector<48x64xf32>
    %63 = tpu.matmul %61, %62, %cst_53 {dimension_numbers = #tpu.dot_dimension_numbers<[1], [0], [0], [1], [0, 0, 1, 1], [], []>} : vector<48x160xbf16>, vector<160x64xbf16>, vector<48x64xf32> -> vector<48x64xf32>
    %c0_54 = arith.constant 0 : index
    %c0_55 = arith.constant 0 : index
    %64 = vector.load %arg19[%c0_54, %c0_55] : memref<32x64xbf16, #tpu.memory_space<vmem>>, vector<32x64xbf16>
    %cst_56 = arith.constant dense<0.000000e+00> : vector<48x64xf32>
    %65 = tpu.matmul %48, %64, %cst_56 {dimension_numbers = #tpu.dot_dimension_numbers<[1], [0], [0], [1], [0, 0, 1, 1], [], []>} : vector<48x32xbf16>, vector<32x64xbf16>, vector<48x64xf32> -> vector<48x64xf32>
    %66 = arith.addf %65, %63 : vector<48x64xf32>
    %c0_57 = arith.constant 0 : index
    %c0_58 = arith.constant 0 : index
    %67 = vector.load %arg20[%c0_57, %c0_58] : memref<1x64xf32, #tpu.memory_space<vmem>>, vector<1x64xf32>
    %68 = vector.broadcast %67 : vector<1x64xf32> to vector<48x64xf32>
    %69 = arith.addf %66, %68 : vector<48x64xf32>
    %cst_59 = arith.constant 0.000000e+00 : f32
    %70 = vector.broadcast %cst_59 : f32 to vector<48x64xf32>
    %71 = arith.cmpf ogt, %69, %70 : vector<48x64xf32>
    %cst_60 = arith.constant 0.000000e+00 : f32
    %72 = vector.broadcast %cst_60 : f32 to vector<48x64xf32>
    %73 = arith.minimumf %69, %72 : vector<48x64xf32>
    %74 = math.exp %73 : vector<48x64xf32>
    %cst_61 = arith.constant 1.000000e+00 : f32
    %75 = vector.broadcast %cst_61 : f32 to vector<48x64xf32>
    %76 = arith.subf %74, %75 : vector<48x64xf32>
    %77 = arith.select %71, %69, %76 : vector<48x64xi1>, vector<48x64xf32>
    %78 = arith.truncf %77 : vector<48x64xf32> to vector<48x64xbf16>
    %c0_62 = arith.constant 0 : index
    %c0_63 = arith.constant 0 : index
    %79 = vector.load %arg21[%c0_62, %c0_63] : memref<32x48xbf16, #tpu.memory_space<vmem>>, vector<32x48xbf16>
    %cst_64 = arith.constant dense<0.000000e+00> : vector<32x64xf32>
    %80 = tpu.matmul %79, %78, %cst_64 {dimension_numbers = #tpu.dot_dimension_numbers<[1], [0], [0], [1], [0, 0, 1, 1], [], []>} : vector<32x48xbf16>, vector<48x64xbf16>, vector<32x64xf32> -> vector<32x64xf32>
    %c0_65 = arith.constant 0 : index
    %c0_66 = arith.constant 0 : index
    %81 = vector.load %arg22[%c0_65, %c0_66] : memref<32x48xbf16, #tpu.memory_space<vmem>>, vector<32x48xbf16>
    %cst_67 = arith.constant dense<0.000000e+00> : vector<32x64xf32>
    %82 = tpu.matmul %81, %78, %cst_67 {dimension_numbers = #tpu.dot_dimension_numbers<[1], [0], [0], [1], [0, 0, 1, 1], [], []>} : vector<32x48xbf16>, vector<48x64xbf16>, vector<32x64xf32> -> vector<32x64xf32>
    %83 = arith.maximumf %80, %82 : vector<32x64xf32>
    %c0_68 = arith.constant 0 : index
    %c0_69 = arith.constant 0 : index
    %84 = vector.load %arg23[%c0_68, %c0_69] : memref<2x32xbf16, #tpu.memory_space<vmem>>, vector<2x32xbf16>
    %85 = arith.truncf %83 : vector<32x64xf32> to vector<32x64xbf16>
    %cst_70 = arith.constant dense<0.000000e+00> : vector<2x64xf32>
    %86 = tpu.matmul %84, %85, %cst_70 {dimension_numbers = #tpu.dot_dimension_numbers<[1], [0], [0], [1], [0, 0, 1, 1], [], []>} : vector<2x32xbf16>, vector<32x64xbf16>, vector<2x64xf32> -> vector<2x64xf32>
    %87 = arith.truncf %86 : vector<2x64xf32> to vector<2x64xbf16>
    %c0_71 = arith.constant 0 : index
    %c0_72 = arith.constant 0 : index
    %88 = vector.load %arg24[%c0_71, %c0_72] : memref<64x128xbf16, #tpu.memory_space<vmem>>, vector<64x128xbf16>
    %cst_73 = arith.constant dense<0.000000e+00> : vector<2x128xf32>
    %89 = tpu.matmul %87, %88, %cst_73 {dimension_numbers = #tpu.dot_dimension_numbers<[1], [0], [0], [1], [0, 0, 1, 1], [], []>} : vector<2x64xbf16>, vector<64x128xbf16>, vector<2x128xf32> -> vector<2x128xf32>
    %c0_74 = arith.constant 0 : index
    %c0_75 = arith.constant 0 : index
    %90 = vector.load %arg25[%c0_74, %c0_75] : memref<1x128xf32, #tpu.memory_space<vmem>>, vector<1x128xf32>
    %91 = vector.broadcast %90 : vector<1x128xf32> to vector<2x128xf32>
    %92 = arith.addf %89, %91 : vector<2x128xf32>
    %cst_76 = arith.constant 0.000000e+00 : f32
    %93 = vector.broadcast %cst_76 : f32 to vector<2x128xf32>
    %94 = arith.cmpf ogt, %92, %93 : vector<2x128xf32>
    %cst_77 = arith.constant 0.000000e+00 : f32
    %95 = vector.broadcast %cst_77 : f32 to vector<2x128xf32>
    %96 = arith.minimumf %92, %95 : vector<2x128xf32>
    %97 = math.exp %96 : vector<2x128xf32>
    %cst_78 = arith.constant 1.000000e+00 : f32
    %98 = vector.broadcast %cst_78 : f32 to vector<2x128xf32>
    %99 = arith.subf %97, %98 : vector<2x128xf32>
    %100 = arith.select %94, %92, %99 : vector<2x128xi1>, vector<2x128xf32>
    %101 = arith.truncf %100 : vector<2x128xf32> to vector<2x128xbf16>
    %c0_79 = arith.constant 0 : index
    %c0_80 = arith.constant 0 : index
    %102 = vector.load %arg26[%c0_79, %c0_80] : memref<128x10xbf16, #tpu.memory_space<vmem>>, vector<128x10xbf16>
    %cst_81 = arith.constant dense<0.000000e+00> : vector<2x10xf32>
    %103 = tpu.matmul %101, %102, %cst_81 {dimension_numbers = #tpu.dot_dimension_numbers<[1], [0], [0], [1], [0, 0, 1, 1], [], []>} : vector<2x128xbf16>, vector<128x10xbf16>, vector<2x10xf32> -> vector<2x10xf32>
    %c0_82 = arith.constant 0 : index
    %c0_83 = arith.constant 0 : index
    %104 = vector.load %arg27[%c0_82, %c0_83] : memref<1x10xf32, #tpu.memory_space<vmem>>, vector<1x10xf32>
    %105 = vector.broadcast %104 : vector<1x10xf32> to vector<2x10xf32>
    %106 = arith.addf %103, %105 : vector<2x10xf32>
    %cst_84 = arith.constant dense<0xFF800000> : vector<2xf32>
    %107 = vector.multi_reduction <maximumf>, %106, %cst_84 [1] : vector<2x10xf32> to vector<2xf32>
    %108 = vector.shape_cast %107 : vector<2xf32> to vector<2x1xf32>
    %109 = vector.broadcast %108 : vector<2x1xf32> to vector<2x10xf32>
    %110 = arith.subf %106, %109 : vector<2x10xf32>
    %111 = math.exp %110 : vector<2x10xf32>
    %cst_85 = arith.constant dense<0.000000e+00> : vector<2xf32>
    %112 = vector.multi_reduction <add>, %111, %cst_85 [1] : vector<2x10xf32> to vector<2xf32>
    %113 = vector.shape_cast %112 : vector<2xf32> to vector<2x1xf32>
    %114 = math.log %113 : vector<2x1xf32>
    %115 = vector.broadcast %114 : vector<2x1xf32> to vector<2x10xf32>
    %116 = arith.subf %110, %115 : vector<2x10xf32>
    %c0_86 = arith.constant 0 : index
    %c0_87 = arith.constant 0 : index
    %117 = vector.load %arg28[%c0_86, %c0_87] : memref<2x10xf32, #tpu.memory_space<vmem>>, vector<2x10xf32>
    tpu.vector_store %arg28[%c0_86, %c0_87], %116 {strides = array<i32>} : memref<2x10xf32, #tpu.memory_space<vmem>>, vector<2x10xf32>,
    return
  }
}

</mosaic_0001>

<llo_original>
// kernel: tpu_custom_call.1
$region0: #{tpu_custom_call.1}
  #allocation0 [shape = 'u32[]', space=smem, size = 0x4, offset = 0x4, fixed_abs, tag = 'smem constant byte address 0x4 - core index']
  #allocation1 [shape = 'u32[72,128]{1,0:T(1,128)}', space=vmem, size = 0x9000, scoped, tag = 'internal scratch']
  %s0 = inlined_call_operand.vmem [shape: f32[64,1], index: 0, kind: input, shape index: {}]
  %s1 = inlined_call_operand.vmem [shape: bf16[320,2], index: 1, kind: input, shape index: {}]
  %s2 = inlined_call_operand.vmem [shape: bf16[320,64], index: 2, kind: input, shape index: {}]
  %s3 = inlined_call_operand.vmem [shape: bf16[64,320], index: 3, kind: input, shape index: {}]
  %s4 = inlined_call_operand.vmem [shape: bf16[2,32], index: 4, kind: input, shape index: {}]
  %s5 = inlined_call_operand.vmem [shape: f32[1,32], index: 5, kind: input, shape index: {}]
  %s6 = inlined_call_operand.vmem [shape: bf16[32,32], index: 6, kind: input, shape index: {}]
  %s7 = inlined_call_operand.vmem [shape: bf16[1,32], index: 7, kind: input, shape index: {}]
  %s8 = inlined_call_operand.vmem [shape: f32[1,32], index: 8, kind: input, shape index: {}]
  %s9 = inlined_call_operand.vmem [shape: bf16[48,64], index: 9, kind: input, shape index: {}]
  %s10 = inlined_call_operand.vmem [shape: bf16[48,64], index: 10, kind: input, shape index: {}]
  %s11 = inlined_call_operand.vmem [shape: bf16[160,2], index: 11, kind: input, shape index: {}]
  %s12 = inlined_call_operand.vmem [shape: bf16[160,48], index: 12, kind: input, shape index: {}]
  %s13 = inlined_call_operand.vmem [shape: bf16[48,160], index: 13, kind: input, shape index: {}]
  %s14 = inlined_call_operand.vmem [shape: bf16[2,32], index: 14, kind: input, shape index: {}]
  %s15 = inlined_call_operand.vmem [shape: f32[1,32], index: 15, kind: input, shape index: {}]
  %s16 = inlined_call_operand.vmem [shape: bf16[32,1024], index: 16, kind: input, shape index: {}]
  %s17 = inlined_call_operand.vmem [shape: bf16[32,1024], index: 17, kind: input, shape index: {}]
  %s18 = inlined_call_operand.vmem [shape: bf16[1024,64], index: 18, kind: input, shape index: {}]
  %s19 = inlined_call_operand.vmem [shape: bf16[32,64], index: 19, kind: input, shape index: {}]
  %s20 = inlined_call_operand.vmem [shape: f32[1,64], index: 20, kind: input, shape index: {}]
  %s21 = inlined_call_operand.vmem [shape: bf16[32,48], index: 21, kind: input, shape index: {}]
  %s22 = inlined_call_operand.vmem [shape: bf16[32,48], index: 22, kind: input, shape index: {}]
  %s23 = inlined_call_operand.vmem [shape: bf16[2,32], index: 23, kind: input, shape index: {}]
  %s24 = inlined_call_operand.vmem [shape: bf16[64,128], index: 24, kind: input, shape index: {}]
  %s25 = inlined_call_operand.vmem [shape: f32[1,128], index: 25, kind: input, shape index: {}]
  %s26 = inlined_call_operand.vmem [shape: bf16[128,10], index: 26, kind: input, shape index: {}]
  %s27 = inlined_call_operand.vmem [shape: f32[1,10], index: 27, kind: input, shape index: {}]
  %s28 = inlined_call_operand.hbm [shape: f32[2,10], index: 28, kind: output, shape index: {}]
  %s29 = sld [smem:[#allocation0]]
  $region122: #{tpu_custom_call.1} parent=0
    _
  %s31 = ssub.s32 1, %s29
  %s32 = scalar_select 0, %s31, %s29
  $region1: #{tpu_custom_call.1} parent=0
    #allocation2 [shape = 'u8[1024]{0}', space=vmem, size = 0x400, scoped, tag = 'output window, operand 0, single buffered']
    #allocation3 [shape = 's32[1]{0}', space=sflag, size = 0x4, scoped, tag = 'scoped memory for tpu_custom_call.1']
    %33 = vsyncpa [#allocation3], 0
    // Predicated region
    $region2: #{tpu_custom_call.1} parent=1 // pred_check
      _
    $region3: #{tpu_custom_call.1} parent=1 // pred_check_branch
      %35 = sbr.rel (0) target = $region5
    $region4: #{tpu_custom_call.1} parent=1 // pred_region
      _
    $region5: #{tpu_custom_call.1} parent=1 // pred_fallthru
      _
    // Predicated region
    $region6: #{tpu_custom_call.1} parent=1 // pred_check
      _
    $region7: #{tpu_custom_call.1} parent=1 // pred_check_branch
      %37 = sbr.rel (0) target = $region9
    $region8: #{tpu_custom_call.1} parent=1 // pred_region
      _
    $region9: #{tpu_custom_call.1} parent=1 // pred_fallthru
      _
    // Predicated region
    $region10: #{tpu_custom_call.1} parent=1 // pred_check
      _
    $region11: #{tpu_custom_call.1} parent=1 // pred_check_branch
      %39 = sbr.rel (0) target = $region13
    $region12: #{tpu_custom_call.1} parent=1 // pred_region
      _
    $region13: #{tpu_custom_call.1} parent=1 // pred_fallthru
      _
    // Predicated region
    $region14: #{tpu_custom_call.1} parent=1 // pred_check
      _
    $region15: #{tpu_custom_call.1} parent=1 // pred_check_branch
      %41 = sbr.rel (0) target = $region17
    $region16: #{tpu_custom_call.1} parent=1 // pred_region
      _
    $region17: #{tpu_custom_call.1} parent=1 // pred_fallthru
      _
    // Predicated region
    $region18: #{tpu_custom_call.1} parent=1 // pred_check
      _
    $region19: #{tpu_custom_call.1} parent=1 // pred_check_branch
      %43 = sbr.rel (0) target = $region21
    $region20: #{tpu_custom_call.1} parent=1 // pred_region
      _
    $region21: #{tpu_custom_call.1} parent=1 // pred_fallthru
      _
    // Predicated region
    $region22: #{tpu_custom_call.1} parent=1 // pred_check
      _
    $region23: #{tpu_custom_call.1} parent=1 // pred_check_branch
      %45 = sbr.rel (0) target = $region25
    $region24: #{tpu_custom_call.1} parent=1 // pred_region
      _
    $region25: #{tpu_custom_call.1} parent=1 // pred_fallthru
      _
    // Predicated region
    $region26: #{tpu_custom_call.1} parent=1 // pred_check
      _
    $region27: #{tpu_custom_call.1} parent=1 // pred_check_branch
      %47 = sbr.rel (0) target = $region29
    $region28: #{tpu_custom_call.1} parent=1 // pred_region
      _
    $region29: #{tpu_custom_call.1} parent=1 // pred_fallthru
      _
    // Predicated region
    $region30: #{tpu_custom_call.1} parent=1 // pred_check
      _
    $region31: #{tpu_custom_call.1} parent=1 // pred_check_branch
      %49 = sbr.rel (0) target = $region33
    $region32: #{tpu_custom_call.1} parent=1 // pred_region
      _
    $region33: #{tpu_custom_call.1} parent=1 // pred_fallthru
      _
    // Predicated region
    $region34: #{tpu_custom_call.1} parent=1 // pred_check
      _
    $region35: #{tpu_custom_call.1} parent=1 // pred_check_branch
      %51 = sbr.rel (0) target = $region37
    $region36: #{tpu_custom_call.1} parent=1 // pred_region
      _
    $region37: #{tpu_custom_call.1} parent=1 // pred_fallthru
      _
    // Predicated region
    $region38: #{tpu_custom_call.1} parent=1 // pred_check
      _
    $region39: #{tpu_custom_call.1} parent=1 // pred_check_branch
      %53 = sbr.rel (0) target = $region41
    $region40: #{tpu_custom_call.1} parent=1 // pred_region
      _
    $region41: #{tpu_custom_call.1} parent=1 // pred_fallthru
      _
    // Predicated region
    $region42: #{tpu_custom_call.1} parent=1 // pred_check
      _
    $region43: #{tpu_custom_call.1} parent=1 // pred_check_branch
      %55 = sbr.rel (0) target = $region45
    $region44: #{tpu_custom_call.1} parent=1 // pred_region
      _
    $region45: #{tpu_custom_call.1} parent=1 // pred_fallthru
      _
    // Predicated region
    $region46: #{tpu_custom_call.1} parent=1 // pred_check
      _
    $region47: #{tpu_custom_call.1} parent=1 // pred_check_branch
      %57 = sbr.rel (0) target = $region49
    $region48: #{tpu_custom_call.1} parent=1 // pred_region
      _
    $region49: #{tpu_custom_call.1} parent=1 // pred_fallthru
      _
    // Predicated region
    $region50: #{tpu_custom_call.1} parent=1 // pred_check
      _
    $region51: #{tpu_custom_call.1} parent=1 // pred_check_branch
      %59 = sbr.rel (0) target = $region53
    $region52: #{tpu_custom_call.1} parent=1 // pred_region
      _
    $region53: #{tpu_custom_call.1} parent=1 // pred_fallthru
      _
    // Predicated region
    $region54: #{tpu_custom_call.1} parent=1 // pred_check
      _
    $region55: #{tpu_custom_call.1} parent=1 // pred_check_branch
      %61 = sbr.rel (0) target = $region57
    $region56: #{tpu_custom_call.1} parent=1 // pred_region
      _
    $region57: #{tpu_custom_call.1} parent=1 // pred_fallthru
      _
    // Predicated region
    $region58: #{tpu_custom_call.1} parent=1 // pred_check
      _
    $region59: #{tpu_custom_call.1} parent=1 // pred_check_branch
      %63 = sbr.rel (0) target = $region61
    $region60: #{tpu_custom_call.1} parent=1 // pred_region
      _
    $region61: #{tpu_custom_call.1} parent=1 // pred_fallthru
      _
    // Predicated region
    $region62: #{tpu_custom_call.1} parent=1 // pred_check
      _
    $region63: #{tpu_custom_call.1} parent=1 // pred_check_branch
      %65 = sbr.rel (0) target = $region65
    $region64: #{tpu_custom_call.1} parent=1 // pred_region
      _
    $region65: #{tpu_custom_call.1} parent=1 // pred_fallthru
      _
    // Predicated region
    $region66: #{tpu_custom_call.1} parent=1 // pred_check
      _
    $region67: #{tpu_custom_call.1} parent=1 // pred_check_branch
      %67 = sbr.rel (0) target = $region69
    $region68: #{tpu_custom_call.1} parent=1 // pred_region
      _
    $region69: #{tpu_custom_call.1} parent=1 // pred_fallthru
      _
    // Predicated region
    $region70: #{tpu_custom_call.1} parent=1 // pred_check
      _
    $region71: #{tpu_custom_call.1} parent=1 // pred_check_branch
      %69 = sbr.rel (0) target = $region73
    $region72: #{tpu_custom_call.1} parent=1 // pred_region
      _
    $region73: #{tpu_custom_call.1} parent=1 // pred_fallthru
      _
    // Predicated region
    $region74: #{tpu_custom_call.1} parent=1 // pred_check
      _
    $region75: #{tpu_custom_call.1} parent=1 // pred_check_branch
      %71 = sbr.rel (0) target = $region77
    $region76: #{tpu_custom_call.1} parent=1 // pred_region
      _
    $region77: #{tpu_custom_call.1} parent=1 // pred_fallthru
      _
    // Predicated region
    $region78: #{tpu_custom_call.1} parent=1 // pred_check
      _
    $region79: #{tpu_custom_call.1} parent=1 // pred_check_branch
      %73 = sbr.rel (0) target = $region81
    $region80: #{tpu_custom_call.1} parent=1 // pred_region
      _
    $region81: #{tpu_custom_call.1} parent=1 // pred_fallthru
      _
    // Predicated region
    $region82: #{tpu_custom_call.1} parent=1 // pred_check
      _
    $region83: #{tpu_custom_call.1} parent=1 // pred_check_branch
      %75 = sbr.rel (0) target = $region85
    $region84: #{tpu_custom_call.1} parent=1 // pred_region
      _
    $region85: #{tpu_custom_call.1} parent=1 // pred_fallthru
      _
    // Predicated region
    $region86: #{tpu_custom_call.1} parent=1 // pred_check
      _
    $region87: #{tpu_custom_call.1} parent=1 // pred_check_branch
      %77 = sbr.rel (0) target = $region89
    $region88: #{tpu_custom_call.1} parent=1 // pred_region
      _
    $region89: #{tpu_custom_call.1} parent=1 // pred_fallthru
      _
    // Predicated region
    $region90: #{tpu_custom_call.1} parent=1 // pred_check
      _
    $region91: #{tpu_custom_call.1} parent=1 // pred_check_branch
      %79 = sbr.rel (0) target = $region93
    $region92: #{tpu_custom_call.1} parent=1 // pred_region
      _
    $region93: #{tpu_custom_call.1} parent=1 // pred_fallthru
      _
    // Predicated region
    $region94: #{tpu_custom_call.1} parent=1 // pred_check
      _
    $region95: #{tpu_custom_call.1} parent=1 // pred_check_branch
      %81 = sbr.rel (0) target = $region97
    $region96: #{tpu_custom_call.1} parent=1 // pred_region
      _
    $region97: #{tpu_custom_call.1} parent=1 // pred_fallthru
      _
    // Predicated region
    $region98: #{tpu_custom_call.1} parent=1 // pred_check
      _
    $region99: #{tpu_custom_call.1} parent=1 // pred_check_branch
      %83 = sbr.rel (0) target = $region101
    $region100: #{tpu_custom_call.1} parent=1 // pred_region
      _
    $region101: #{tpu_custom_call.1} parent=1 // pred_fallthru
      _
    // Predicated region
    $region102: #{tpu_custom_call.1} parent=1 // pred_check
      _
    $region103: #{tpu_custom_call.1} parent=1 // pred_check_branch
      %85 = sbr.rel (0) target = $region105
    $region104: #{tpu_custom_call.1} parent=1 // pred_region
      _
    $region105: #{tpu_custom_call.1} parent=1 // pred_fallthru
      _
    // Predicated region
    $region106: #{tpu_custom_call.1} parent=1 // pred_check
      _
    $region107: #{tpu_custom_call.1} parent=1 // pred_check_branch
      %87 = sbr.rel (0) target = $region109
    $region108: #{tpu_custom_call.1} parent=1 // pred_region
      _
    $region109: #{tpu_custom_call.1} parent=1 // pred_fallthru
      _
    // Predicated region
    $region110: #{tpu_custom_call.1} parent=1 // pred_check
      _
    $region111: #{tpu_custom_call.1} parent=1 // pred_check_branch
      %89 = sbr.rel (0) target = $region113
    $region112: #{tpu_custom_call.1} parent=1 // pred_region
      _
    $region113: #{tpu_custom_call.1} parent=1 // pred_fallthru
      _
    %v91 = vld [vmem:[%s0] sm:$0xff]
    %v92 = vld [vmem:[%s0 + $0x8] sm:$0xff]
    %v93 = vld [vmem:[%s0 + $0x10] sm:$0xff]
    %v94 = vld [vmem:[%s0 + $0x18] sm:$0xff]
    %v95 = vld [vmem:[%s0 + $0x20] sm:$0xff]
    %v96 = vld [vmem:[%s0 + $0x28] sm:$0xff]
    %v97 = vld [vmem:[%s0 + $0x30] sm:$0xff]
    %v98 = vld [vmem:[%s0 + $0x38] sm:$0xff]
    %v99 = vpack.c.bf16 %v92, %v91
    %v100 = vpack.c.bf16 %v94, %v93
    %v101 = vpack.c.bf16 %v96, %v95
    %v102 = vpack.c.bf16 %v98, %v97
    %v103 = vld [vmem:[%s1] sm:$0xf]
    %v104 = vld [vmem:[%s1 + $0x4] sm:$0xf]
    %v105 = vld [vmem:[%s1 + $0x8] sm:$0xf]
    %v106 = vld [vmem:[%s1 + $0xc] sm:$0xf]
    %v107 = vld [vmem:[%s1 + $0x10] sm:$0xf]
    %v108 = vld [vmem:[%s1 + $0x14] sm:$0xf]
    %v109 = vld [vmem:[%s1 + $0x18] sm:$0xf]
    %v110 = vld [vmem:[%s1 + $0x1c] sm:$0xf]
    %v111 = vld [vmem:[%s1 + $0x20] sm:$0xf]
    %v112 = vld [vmem:[%s1 + $0x24] sm:$0xf]
    %v113 = vld [vmem:[%s1 + $0x28] sm:$0xf]
    %v114 = vld [vmem:[%s1 + $0x2c] sm:$0xf]
    %v115 = vld [vmem:[%s1 + $0x30] sm:$0xf]
    %v116 = vld [vmem:[%s1 + $0x34] sm:$0xf]
    %v117 = vld [vmem:[%s1 + $0x38] sm:$0xf]
    %v118 = vld [vmem:[%s1 + $0x3c] sm:$0xf]
    %v119 = vld [vmem:[%s1 + $0x40] sm:$0xf]
    %v120 = vld [vmem:[%s1 + $0x44] sm:$0xf]
    %v121 = vld [vmem:[%s1 + $0x48] sm:$0xf]
    %v122 = vld [vmem:[%s1 + $0x4c] sm:$0xf]
    %v123 = vld [vmem:[%s1 + $0x50] sm:$0xf]
    %v124 = vld [vmem:[%s1 + $0x54] sm:$0xf]
    %v125 = vld [vmem:[%s1 + $0x58] sm:$0xf]
    %v126 = vld [vmem:[%s1 + $0x5c] sm:$0xf]
    %v127 = vld [vmem:[%s1 + $0x60] sm:$0xf]
    %v128 = vld [vmem:[%s1 + $0x64] sm:$0xf]
    %v129 = vld [vmem:[%s1 + $0x68] sm:$0xf]
    %v130 = vld [vmem:[%s1 + $0x6c] sm:$0xf]
    %v131 = vld [vmem:[%s1 + $0x70] sm:$0xf]
    %v132 = vld [vmem:[%s1 + $0x74] sm:$0xf]
    %v133 = vld [vmem:[%s1 + $0x78] sm:$0xf]
    %v134 = vld [vmem:[%s1 + $0x7c] sm:$0xf]
    %v135 = vld [vmem:[%s1 + $0x80] sm:$0xf]
    %v136 = vld [vmem:[%s1 + $0x84] sm:$0xf]
    %v137 = vld [vmem:[%s1 + $0x88] sm:$0xf]
    %v138 = vld [vmem:[%s1 + $0x8c] sm:$0xf]
    %v139 = vld [vmem:[%s1 + $0x90] sm:$0xf]
    %v140 = vld [vmem:[%s1 + $0x94] sm:$0xf]
    %v141 = vld [vmem:[%s1 + $0x98] sm:$0xf]
    %v142 = vld [vmem:[%s1 + $0x9c] sm:$0xf]
    %v143 = vld [vmem:[%s4] sm:$0x1]
    %v144 = vld [vmem:[%s5] sm:$0x1]
    %v146 = vperm.slane %v144, 0
    %v188 = vunpack.c.l.b16 %v103
    %v189 = vunpack.c.l.b16 %v104
    %v190 = vunpack.c.l.b16 %v105
    %v191 = vunpack.c.l.b16 %v106
    %v192 = vunpack.c.l.b16 %v107
    %v193 = vunpack.c.l.b16 %v108
    %v194 = vunpack.c.l.b16 %v109
    %v195 = vunpack.c.l.b16 %v110
    %v196 = vunpack.c.l.b16 %v111
    %v197 = vunpack.c.l.b16 %v112
    %v198 = vunpack.c.l.b16 %v113
    %v199 = vunpack.c.l.b16 %v114
    %v200 = vunpack.c.l.b16 %v115
    %v201 = vunpack.c.l.b16 %v116
    %v202 = vunpack.c.l.b16 %v117
    %v203 = vunpack.c.l.b16 %v118
    %v204 = vunpack.c.l.b16 %v119
    %v205 = vunpack.c.l.b16 %v120
    %v206 = vunpack.c.l.b16 %v121
    %v207 = vunpack.c.l.b16 %v122
    %v208 = vunpack.c.l.b16 %v123
    %v209 = vunpack.c.l.b16 %v124
    %v210 = vunpack.c.l.b16 %v125
    %v211 = vunpack.c.l.b16 %v126
    %v212 = vunpack.c.l.b16 %v127
    %v213 = vunpack.c.l.b16 %v128
    %v214 = vunpack.c.l.b16 %v129
    %v215 = vunpack.c.l.b16 %v130
    %v216 = vunpack.c.l.b16 %v131
    %v217 = vunpack.c.l.b16 %v132
    %v218 = vunpack.c.l.b16 %v133
    %v219 = vunpack.c.l.b16 %v134
    %v220 = vunpack.c.l.b16 %v135
    %v221 = vunpack.c.l.b16 %v136
    %v222 = vunpack.c.l.b16 %v137
    %v223 = vunpack.c.l.b16 %v138
    %v224 = vunpack.c.l.b16 %v139
    %v225 = vunpack.c.l.b16 %v140
    %v226 = vunpack.c.l.b16 %v141
    %v227 = vunpack.c.l.b16 %v142
    %v228 = vpack.c.b16 %v189, %v188
    %v229 = vpack.c.b16 %v191, %v190
    %v230 = vpack.c.b16 %v193, %v192
    %v231 = vpack.c.b16 %v195, %v194
    %v232 = vpack.c.b16 %v197, %v196
    %v233 = vpack.c.b16 %v199, %v198
    %v234 = vpack.c.b16 %v201, %v200
    %v235 = vpack.c.b16 %v203, %v202
    %v236 = vpack.c.b16 %v205, %v204
    %v237 = vpack.c.b16 %v207, %v206
    %v238 = vpack.c.b16 %v209, %v208
    %v239 = vpack.c.b16 %v211, %v210
    %v240 = vpack.c.b16 %v213, %v212
    %v241 = vpack.c.b16 %v215, %v214
    %v242 = vpack.c.b16 %v217, %v216
    %v243 = vpack.c.b16 %v219, %v218
    %v244 = vpack.c.b16 %v221, %v220
    %v245 = vpack.c.b16 %v223, %v222
    %v246 = vpack.c.b16 %v225, %v224
    %v247 = vpack.c.b16 %v227, %v226
    %vm248 = vcmask 15360
    %v250 = vsel %vm248, %v228, 0
    %v253 = vsel %vm248, %v229, 0
    %v256 = vsel %vm248, %v230, 0
    %v259 = vsel %vm248, %v231, 0
    %v262 = vsel %vm248, %v232, 0
    %v265 = vsel %vm248, %v233, 0
    %v268 = vsel %vm248, %v234, 0
    %v271 = vsel %vm248, %v235, 0
    %v274 = vsel %vm248, %v236, 0
    %v277 = vsel %vm248, %v237, 0
    %v280 = vsel %vm248, %v238, 0
    %v283 = vsel %vm248, %v239, 0
    %v286 = vsel %vm248, %v240, 0
    %v289 = vsel %vm248, %v241, 0
    %v292 = vsel %vm248, %v242, 0
    %v295 = vsel %vm248, %v243, 0
    %v298 = vsel %vm248, %v244, 0
    %v301 = vsel %vm248, %v245, 0
    %v304 = vsel %vm248, %v246, 0
    %v307 = vsel %vm248, %v247, 0
    %vm309 = vcmask 1040384
    %v311 = vsel %vm309, %v143, 0
    %313 = vmatpush.bf16.msra.mxu0 0
    %314 = vmatpush.bf16.msra.mxu0 0
    %315 = vmatpush.bf16.msra.mxu0 0
    %316 = vmatpush.bf16.msra.mxu0 0
    %317 = vmatpush.bf16.msra.mxu0 0
    %318 = vmatpush.bf16.msra.mxu0 0
    %319 = vmatpush.bf16.msra.mxu0 0
    %320 = vmatpush.bf16.msra.mxu0 %v311
    %321 = vmatmul.bf16.gmra.mxu0 %v250
    %v322 = vpop.f32.mrf.mxu0
    %v323 = vadd.f32 %v146, %v322
    %v324 = vpop.f32.mrf.mxu0
    %v325 = vadd.f32 %v146, %v324
    %326 = vmatmul.bf16.gmra.mxu0 %v253
    %v327 = vpop.f32.mrf.mxu0
    %v328 = vadd.f32 %v146, %v327
    %v329 = vpop.f32.mrf.mxu0
    %v330 = vadd.f32 %v146, %v329
    %331 = vmatmul.bf16.gmra.mxu0 %v256
    %v332 = vpop.f32.mrf.mxu0
    %v333 = vadd.f32 %v146, %v332
    %v334 = vpop.f32.mrf.mxu0
    %v335 = vadd.f32 %v146, %v334
    %336 = vmatmul.bf16.gmra.mxu0 %v259
    %v337 = vpop.f32.mrf.mxu0
    %v338 = vadd.f32 %v146, %v337
    %v339 = vpop.f32.mrf.mxu0
    %v340 = vadd.f32 %v146, %v339
    %341 = vmatmul.bf16.gmra.mxu0 %v262
    %v342 = vpop.f32.mrf.mxu0
    %v343 = vadd.f32 %v146, %v342
    %v344 = vpop.f32.mrf.mxu0
    %v345 = vadd.f32 %v146, %v344
    %346 = vmatmul.bf16.gmra.mxu0 %v265
    %v347 = vpop.f32.mrf.mxu0
    %v348 = vadd.f32 %v146, %v347
    %v349 = vpop.f32.mrf.mxu0
    %v350 = vadd.f32 %v146, %v349
    %351 = vmatmul.bf16.gmra.mxu0 %v268
    %v352 = vpop.f32.mrf.mxu0
    %v353 = vadd.f32 %v146, %v352
    %v354 = vpop.f32.mrf.mxu0
    %v355 = vadd.f32 %v146, %v354
    %356 = vmatmul.bf16.gmra.mxu0 %v271
    %v357 = vpop.f32.mrf.mxu0
    %v358 = vadd.f32 %v146, %v357
    %v359 = vpop.f32.mrf.mxu0
    %v360 = vadd.f32 %v146, %v359
    %361 = vmatmul.bf16.gmra.mxu0 %v274
    %v362 = vpop.f32.mrf.mxu0
    %v363 = vadd.f32 %v146, %v362
    %v364 = vpop.f32.mrf.mxu0
    %v365 = vadd.f32 %v146, %v364
    %366 = vmatmul.bf16.gmra.mxu0 %v277
    %v367 = vpop.f32.mrf.mxu0
    %v368 = vadd.f32 %v146, %v367
    %v369 = vpop.f32.mrf.mxu0
    %v370 = vadd.f32 %v146, %v369
    %371 = vmatmul.bf16.gmra.mxu0 %v280
    %v372 = vpop.f32.mrf.mxu0
    %v373 = vadd.f32 %v146, %v372
    %v374 = vpop.f32.mrf.mxu0
    %v375 = vadd.f32 %v146, %v374
    %376 = vmatmul.bf16.gmra.mxu0 %v283
    %v377 = vpop.f32.mrf.mxu0
    %v378 = vadd.f32 %v146, %v377
    %v379 = vpop.f32.mrf.mxu0
    %v380 = vadd.f32 %v146, %v379
    %381 = vmatmul.bf16.gmra.mxu0 %v286
    %v382 = vpop.f32.mrf.mxu0
    %v383 = vadd.f32 %v146, %v382
    %v384 = vpop.f32.mrf.mxu0
    %v385 = vadd.f32 %v146, %v384
    %386 = vmatmul.bf16.gmra.mxu0 %v289
    %v387 = vpop.f32.mrf.mxu0
    %v388 = vadd.f32 %v146, %v387
    %v389 = vpop.f32.mrf.mxu0
    %v390 = vadd.f32 %v146, %v389
    %391 = vmatmul.bf16.gmra.mxu0 %v292
    %v392 = vpop.f32.mrf.mxu0
    %v393 = vadd.f32 %v146, %v392
    %v394 = vpop.f32.mrf.mxu0
    %v395 = vadd.f32 %v146, %v394
    %396 = vmatmul.bf16.gmra.mxu0 %v295
    %v397 = vpop.f32.mrf.mxu0
    %v398 = vadd.f32 %v146, %v397
    %v399 = vpop.f32.mrf.mxu0
    %v400 = vadd.f32 %v146, %v399
    %401 = vmatmul.bf16.gmra.mxu0 %v298
    %v402 = vpop.f32.mrf.mxu0
    %v403 = vadd.f32 %v146, %v402
    %v404 = vpop.f32.mrf.mxu0
    %v405 = vadd.f32 %v146, %v404
    %406 = vmatmul.bf16.gmra.mxu0 %v301
    %v407 = vpop.f32.mrf.mxu0
    %v408 = vadd.f32 %v146, %v407
    %v409 = vpop.f32.mrf.mxu0
    %v410 = vadd.f32 %v146, %v409
    %411 = vmatmul.bf16.gmra.mxu0 %v304
    %v412 = vpop.f32.mrf.mxu0
    %v413 = vadd.f32 %v146, %v412
    %v414 = vpop.f32.mrf.mxu0
    %v415 = vadd.f32 %v146, %v414
    %416 = vmatmul.bf16.gmra.mxu0 %v307
    %v417 = vpop.f32.mrf.mxu0
    %v418 = vadd.f32 %v146, %v417
    %v419 = vpop.f32.mrf.mxu0
    %v420 = vadd.f32 %v146, %v419
    %421 = vdwg.mxu0
    %v422 = vmax.f32 %v323, 0.0
    %v423 = vmax.f32 %v325, 0.0
    %v424 = vmax.f32 %v328, 0.0
    %v425 = vmax.f32 %v330, 0.0
    %v426 = vmax.f32 %v333, 0.0
    %v427 = vmax.f32 %v335, 0.0
    %v428 = vmax.f32 %v338, 0.0
    %v429 = vmax.f32 %v340, 0.0
    %v430 = vmax.f32 %v343, 0.0
    %v431 = vmax.f32 %v345, 0.0
    %v432 = vmax.f32 %v348, 0.0
    %v433 = vmax.f32 %v350, 0.0
    %v434 = vmax.f32 %v353, 0.0
    %v435 = vmax.f32 %v355, 0.0
    %v436 = vmax.f32 %v358, 0.0
    %v437 = vmax.f32 %v360, 0.0
    %v438 = vmax.f32 %v363, 0.0
    %v439 = vmax.f32 %v365, 0.0
    %v440 = vmax.f32 %v368, 0.0
    %v441 = vmax.f32 %v370, 0.0
    %v442 = vmax.f32 %v373, 0.0
    %v443 = vmax.f32 %v375, 0.0
    %v444 = vmax.f32 %v378, 0.0
    %v445 = vmax.f32 %v380, 0.0
    %v446 = vmax.f32 %v383, 0.0
    %v447 = vmax.f32 %v385, 0.0
    %v448 = vmax.f32 %v388, 0.0
    %v449 = vmax.f32 %v390, 0.0
    %v450 = vmax.f32 %v393, 0.0
    %v451 = vmax.f32 %v395, 0.0
    %v452 = vmax.f32 %v398, 0.0
    %v453 = vmax.f32 %v400, 0.0
    %v454 = vmax.f32 %v403, 0.0
    %v455 = vmax.f32 %v405, 0.0
    %v456 = vmax.f32 %v408, 0.0
    %v457 = vmax.f32 %v410, 0.0
    %v458 = vmax.f32 %v413, 0.0
    %v459 = vmax.f32 %v415, 0.0
    %v460 = vmax.f32 %v418, 0.0
    %v461 = vmax.f32 %v420, 0.0
    %v462 = vpack.c.bf16 %v423, %v422
    %v463 = vpack.c.bf16 %v425, %v424
    %v464 = vpack.c.bf16 %v427, %v426
    %v465 = vpack.c.bf16 %v429, %v428
    %v466 = vpack.c.bf16 %v431, %v430
    %v467 = vpack.c.bf16 %v433, %v432
    %v468 = vpack.c.bf16 %v435, %v434
    %v469 = vpack.c.bf16 %v437, %v436
    %v470 = vpack.c.bf16 %v439, %v438
    %v471 = vpack.c.bf16 %v441, %v440
    %v472 = vpack.c.bf16 %v443, %v442
    %v473 = vpack.c.bf16 %v445, %v444
    %v474 = vpack.c.bf16 %v447, %v446
    %v475 = vpack.c.bf16 %v449, %v448
    %v476 = vpack.c.bf16 %v451, %v450
    %v477 = vpack.c.bf16 %v453, %v452
    %v478 = vpack.c.bf16 %v455, %v454
    %v479 = vpack.c.bf16 %v457, %v456
    %v480 = vpack.c.bf16 %v459, %v458
    %v481 = vpack.c.bf16 %v461, %v460
    %v482 = vld [vmem:[%s6] sm:$0xf]
    %v483 = vld [vmem:[%s6 + $0x4] sm:$0xf]
    %v484 = vld [vmem:[%s6 + $0x8] sm:$0xf]
    %v485 = vld [vmem:[%s6 + $0xc] sm:$0xf]
    %v490 = vunpack.c.l.b16 %v482
    %v491 = vunpack.c.l.b16 %v483
    %v492 = vunpack.c.l.b16 %v484
    %v493 = vunpack.c.l.b16 %v485
    %v494 = vpack.c.b16 %v491, %v490
    %v495 = vpack.c.b16 %v493, %v492
    %vm498 = vcmask 261120
    %v500 = vsel %vm498, %v462, 0
    %v503 = vsel %vm498, %v463, 0
    %v506 = vsel %vm498, %v464, 0
    %v509 = vsel %vm498, %v465, 0
    %v512 = vsel %vm498, %v466, 0
    %v515 = vsel %vm498, %v467, 0
    %v518 = vsel %vm498, %v468, 0
    %v521 = vsel %vm498, %v469, 0
    %v524 = vsel %vm498, %v470, 0
    %v527 = vsel %vm498, %v471, 0
    %v530 = vsel %vm498, %v472, 0
    %v533 = vsel %vm498, %v473, 0
    %v536 = vsel %vm498, %v474, 0
    %v539 = vsel %vm498, %v475, 0
    %v542 = vsel %vm498, %v476, 0
    %v545 = vsel %vm498, %v477, 0
    %v548 = vsel %vm498, %v478, 0
    %v551 = vsel %vm498, %v479, 0
    %v554 = vsel %vm498, %v480, 0
    %v557 = vsel %vm498, %v481, 0
    %559 = vmatpush.bf16.msra.mxu0 0
    %560 = vmatpush.bf16.msra.mxu0 0
    %561 = vmatpush.bf16.msra.mxu0 0
    %562 = vmatpush.bf16.msra.mxu0 0
    %563 = vmatpush.bf16.msra.mxu0 0
    %564 = vmatpush.bf16.msra.mxu0 0
    %565 = vmatpush.bf16.msra.mxu0 %v495
    %566 = vmatpush.bf16.msra.mxu0 %v494
    %567 = vmatmul.bf16.gmra.mxu0 %v500
    %v568 = vpop.f32.mrf.mxu0
    %v569 = vadd.f32 0.0, %v568
    %v570 = vpop.f32.mrf.mxu0
    %v571 = vadd.f32 0.0, %v570
    %572 = vmatmul.bf16.gmra.mxu0 %v503
    %v573 = vpop.f32.mrf.mxu0
    %v574 = vadd.f32 0.0, %v573
    %v575 = vpop.f32.mrf.mxu0
    %v576 = vadd.f32 0.0, %v575
    %577 = vmatmul.bf16.gmra.mxu0 %v506
    %v578 = vpop.f32.mrf.mxu0
    %v579 = vadd.f32 0.0, %v578
    %v580 = vpop.f32.mrf.mxu0
    %v581 = vadd.f32 0.0, %v580
    %582 = vmatmul.bf16.gmra.mxu0 %v509
    %v583 = vpop.f32.mrf.mxu0
    %v584 = vadd.f32 0.0, %v583
    %v585 = vpop.f32.mrf.mxu0
    %v586 = vadd.f32 0.0, %v585
    %587 = vmatmul.bf16.gmra.mxu0 %v512
    %v588 = vpop.f32.mrf.mxu0
    %v589 = vadd.f32 0.0, %v588
    %v590 = vpop.f32.mrf.mxu0
    %v591 = vadd.f32 0.0, %v590
    %592 = vmatmul.bf16.gmra.mxu0 %v515
    %v593 = vpop.f32.mrf.mxu0
    %v594 = vadd.f32 0.0, %v593
    %v595 = vpop.f32.mrf.mxu0
    %v596 = vadd.f32 0.0, %v595
    %597 = vmatmul.bf16.gmra.mxu0 %v518
    %v598 = vpop.f32.mrf.mxu0
    %v599 = vadd.f32 0.0, %v598
    %v600 = vpop.f32.mrf.mxu0
    %v601 = vadd.f32 0.0, %v600
    %602 = vmatmul.bf16.gmra.mxu0 %v521
    %v603 = vpop.f32.mrf.mxu0
    %v604 = vadd.f32 0.0, %v603
    %v605 = vpop.f32.mrf.mxu0
    %v606 = vadd.f32 0.0, %v605
    %607 = vmatmul.bf16.gmra.mxu0 %v524
    %v608 = vpop.f32.mrf.mxu0
    %v609 = vadd.f32 0.0, %v608
    %v610 = vpop.f32.mrf.mxu0
    %v611 = vadd.f32 0.0, %v610
    %612 = vmatmul.bf16.gmra.mxu0 %v527
    %v613 = vpop.f32.mrf.mxu0
    %v614 = vadd.f32 0.0, %v613
    %v615 = vpop.f32.mrf.mxu0
    %v616 = vadd.f32 0.0, %v615
    %617 = vmatmul.bf16.gmra.mxu0 %v530
    %v618 = vpop.f32.mrf.mxu0
    %v619 = vadd.f32 0.0, %v618
    %v620 = vpop.f32.mrf.mxu0
    %v621 = vadd.f32 0.0, %v620
    %622 = vmatmul.bf16.gmra.mxu0 %v533
    %v623 = vpop.f32.mrf.mxu0
    %v624 = vadd.f32 0.0, %v623
    %v625 = vpop.f32.mrf.mxu0
    %v626 = vadd.f32 0.0, %v625
    %627 = vmatmul.bf16.gmra.mxu0 %v536
    %v628 = vpop.f32.mrf.mxu0
    %v629 = vadd.f32 0.0, %v628
    %v630 = vpop.f32.mrf.mxu0
    %v631 = vadd.f32 0.0, %v630
    %632 = vmatmul.bf16.gmra.mxu0 %v539
    %v633 = vpop.f32.mrf.mxu0
    %v634 = vadd.f32 0.0, %v633
    %v635 = vpop.f32.mrf.mxu0
    %v636 = vadd.f32 0.0, %v635
    %637 = vmatmul.bf16.gmra.mxu0 %v542
    %v638 = vpop.f32.mrf.mxu0
    %v639 = vadd.f32 0.0, %v638
    %v640 = vpop.f32.mrf.mxu0
    %v641 = vadd.f32 0.0, %v640
    %642 = vmatmul.bf16.gmra.mxu0 %v545
    %v643 = vpop.f32.mrf.mxu0
    %v644 = vadd.f32 0.0, %v643
    %v645 = vpop.f32.mrf.mxu0
    %v646 = vadd.f32 0.0, %v645
    %647 = vmatmul.bf16.gmra.mxu0 %v548
    %v648 = vpop.f32.mrf.mxu0
    %v649 = vadd.f32 0.0, %v648
    %v650 = vpop.f32.mrf.mxu0
    %v651 = vadd.f32 0.0, %v650
    %652 = vmatmul.bf16.gmra.mxu0 %v551
    %v653 = vpop.f32.mrf.mxu0
    %v654 = vadd.f32 0.0, %v653
    %v655 = vpop.f32.mrf.mxu0
    %v656 = vadd.f32 0.0, %v655
    %657 = vmatmul.bf16.gmra.mxu0 %v554
    %v658 = vpop.f32.mrf.mxu0
    %v659 = vadd.f32 0.0, %v658
    %v660 = vpop.f32.mrf.mxu0
    %v661 = vadd.f32 0.0, %v660
    %662 = vmatmul.bf16.gmra.mxu0 %v557
    %v663 = vpop.f32.mrf.mxu0
    %v664 = vadd.f32 0.0, %v663
    %v665 = vpop.f32.mrf.mxu0
    %v666 = vadd.f32 0.0, %v665
    %667 = vdwg.mxu0
    %v668 = vld [vmem:[%s2] sm:$0xf]
    %v669 = vld [vmem:[%s2 + $0x4] sm:$0xf]
    %v670 = vld [vmem:[%s2 + $0x8] sm:$0xf]
    %v671 = vld [vmem:[%s2 + $0xc] sm:$0xf]
    %v672 = vld [vmem:[%s2 + $0x10] sm:$0xf]
    %v673 = vld [vmem:[%s2 + $0x14] sm:$0xf]
    %v674 = vld [vmem:[%s2 + $0x18] sm:$0xf]
    %v675 = vld [vmem:[%s2 + $0x1c] sm:$0xf]
    %v676 = vld [vmem:[%s2 + $0x20] sm:$0xf]
    %v677 = vld [vmem:[%s2 + $0x24] sm:$0xf]
    %v678 = vld [vmem:[%s2 + $0x28] sm:$0xf]
    %v679 = vld [vmem:[%s2 + $0x2c] sm:$0xf]
    %v680 = vld [vmem:[%s2 + $0x30] sm:$0xf]
    %v681 = vld [vmem:[%s2 + $0x34] sm:$0xf]
    %v682 = vld [vmem:[%s2 + $0x38] sm:$0xf]
    %v683 = vld [vmem:[%s2 + $0x3c] sm:$0xf]
    %v684 = vld [vmem:[%s2 + $0x40] sm:$0xf]
    %v685 = vld [vmem:[%s2 + $0x44] sm:$0xf]
    %v686 = vld [vmem:[%s2 + $0x48] sm:$0xf]
    %v687 = vld [vmem:[%s2 + $0x4c] sm:$0xf]
    %v688 = vld [vmem:[%s2 + $0x50] sm:$0xf]
    %v689 = vld [vmem:[%s2 + $0x54] sm:$0xf]
    %v690 = vld [vmem:[%s2 + $0x58] sm:$0xf]
    %v691 = vld [vmem:[%s2 + $0x5c] sm:$0xf]
    %v692 = vld [vmem:[%s2 + $0x60] sm:$0xf]
    %v693 = vld [vmem:[%s2 + $0x64] sm:$0xf]
    %v694 = vld [vmem:[%s2 + $0x68] sm:$0xf]
    %v695 = vld [vmem:[%s2 + $0x6c] sm:$0xf]
    %v696 = vld [vmem:[%s2 + $0x70] sm:$0xf]
    %v697 = vld [vmem:[%s2 + $0x74] sm:$0xf]
    %v698 = vld [vmem:[%s2 + $0x78] sm:$0xf]
    %v699 = vld [vmem:[%s2 + $0x7c] sm:$0xf]
    %v700 = vld [vmem:[%s2 + $0x80] sm:$0xf]
    %v701 = vld [vmem:[%s2 + $0x84] sm:$0xf]
    %v702 = vld [vmem:[%s2 + $0x88] sm:$0xf]
    %v703 = vld [vmem:[%s2 + $0x8c] sm:$0xf]
    %v704 = vld [vmem:[%s2 + $0x90] sm:$0xf]
    %v705 = vld [vmem:[%s2 + $0x94] sm:$0xf]
    %v706 = vld [vmem:[%s2 + $0x98] sm:$0xf]
    %v707 = vld [vmem:[%s2 + $0x9c] sm:$0xf]
    %v748 = vunpack.c.l.b16 %v668
    %v749 = vunpack.c.l.b16 %v669
    %v750 = vunpack.c.l.b16 %v670
    %v751 = vunpack.c.l.b16 %v671
    %v752 = vunpack.c.l.b16 %v672
    %v753 = vunpack.c.l.b16 %v673
    %v754 = vunpack.c.l.b16 %v674
    %v755 = vunpack.c.l.b16 %v675
    %v756 = vunpack.c.l.b16 %v676
    %v757 = vunpack.c.l.b16 %v677
    %v758 = vunpack.c.l.b16 %v678
    %v759 = vunpack.c.l.b16 %v679
    %v760 = vunpack.c.l.b16 %v680
    %v761 = vunpack.c.l.b16 %v681
    %v762 = vunpack.c.l.b16 %v682
    %v763 = vunpack.c.l.b16 %v683
    %v764 = vunpack.c.l.b16 %v684
    %v765 = vunpack.c.l.b16 %v685
    %v766 = vunpack.c.l.b16 %v686
    %v767 = vunpack.c.l.b16 %v687
    %v768 = vunpack.c.l.b16 %v688
    %v769 = vunpack.c.l.b16 %v689
    %v770 = vunpack.c.l.b16 %v690
    %v771 = vunpack.c.l.b16 %v691
    %v772 = vunpack.c.l.b16 %v692
    %v773 = vunpack.c.l.b16 %v693
    %v774 = vunpack.c.l.b16 %v694
    %v775 = vunpack.c.l.b16 %v695
    %v776 = vunpack.c.l.b16 %v696
    %v777 = vunpack.c.l.b16 %v697
    %v778 = vunpack.c.l.b16 %v698
    %v779 = vunpack.c.l.b16 %v699
    %v780 = vunpack.c.l.b16 %v700
    %v781 = vunpack.c.l.b16 %v701
    %v782 = vunpack.c.l.b16 %v702
    %v783 = vunpack.c.l.b16 %v703
    %v784 = vunpack.c.l.b16 %v704
    %v785 = vunpack.c.l.b16 %v705
    %v786 = vunpack.c.l.b16 %v706
    %v787 = vunpack.c.l.b16 %v707
    %v788 = vpack.c.b16 %v749, %v748
    %v789 = vpack.c.b16 %v751, %v750
    %v790 = vpack.c.b16 %v753, %v752
    %v791 = vpack.c.b16 %v755, %v754
    %v792 = vpack.c.b16 %v757, %v756
    %v793 = vpack.c.b16 %v759, %v758
    %v794 = vpack.c.b16 %v761, %v760
    %v795 = vpack.c.b16 %v763, %v762
    %v796 = vpack.c.b16 %v765, %v764
    %v797 = vpack.c.b16 %v767, %v766
    %v798 = vpack.c.b16 %v769, %v768
    %v799 = vpack.c.b16 %v771, %v770
    %v800 = vpack.c.b16 %v773, %v772
    %v801 = vpack.c.b16 %v775, %v774
    %v802 = vpack.c.b16 %v777, %v776
    %v803 = vpack.c.b16 %v779, %v778
    %v804 = vpack.c.b16 %v781, %v780
    %v805 = vpack.c.b16 %v783, %v782
    %v806 = vpack.c.b16 %v785, %v784
    %v807 = vpack.c.b16 %v787, %v786
    %vm808 = vcmask 523264
    %v810 = vsel %vm808, %v788, 0
    %v813 = vsel %vm808, %v789, 0
    %v816 = vsel %vm808, %v790, 0
    %v819 = vsel %vm808, %v791, 0
    %v822 = vsel %vm808, %v792, 0
    %v825 = vsel %vm808, %v793, 0
    %v828 = vsel %vm808, %v794, 0
    %v831 = vsel %vm808, %v795, 0
    %v834 = vsel %vm808, %v796, 0
    %v837 = vsel %vm808, %v797, 0
    %v840 = vsel %vm808, %v798, 0
    %v843 = vsel %vm808, %v799, 0
    %v846 = vsel %vm808, %v800, 0
    %v849 = vsel %vm808, %v801, 0
    %v852 = vsel %vm808, %v802, 0
    %v855 = vsel %vm808, %v803, 0
    %v858 = vsel %vm808, %v804, 0
    %v861 = vsel %vm808, %v805, 0
    %v864 = vsel %vm808, %v806, 0
    %v867 = vsel %vm808, %v807, 0
    %869 = vmatpush.bf16.msra.mxu0 0
    %870 = vmatpush.bf16.msra.mxu0 0
    %871 = vmatpush.bf16.msra.mxu0 0
    %872 = vmatpush.bf16.msra.mxu0 0
    %873 = vmatpush.bf16.msra.mxu0 %v102
    %874 = vmatpush.bf16.msra.mxu0 %v101
    %875 = vmatpush.bf16.msra.mxu0 %v100
    %876 = vmatpush.bf16.msra.mxu0 %v99
    %877 = vmatmul.bf16.gmra.mxu0 %v810
    %v878 = vpop.f32.mrf.mxu0
    %v879 = vadd.f32 0.0, %v878
    %v880 = vpop.f32.mrf.mxu0
    %v881 = vadd.f32 0.0, %v880
    %882 = vmatmul.bf16.gmra.mxu0 %v813
    %v883 = vpop.f32.mrf.mxu0
    %v884 = vadd.f32 0.0, %v883
    %v885 = vpop.f32.mrf.mxu0
    %v886 = vadd.f32 0.0, %v885
    %887 = vmatmul.bf16.gmra.mxu0 %v816
    %v888 = vpop.f32.mrf.mxu0
    %v889 = vadd.f32 0.0, %v888
    %v890 = vpop.f32.mrf.mxu0
    %v891 = vadd.f32 0.0, %v890
    %892 = vmatmul.bf16.gmra.mxu0 %v819
    %v893 = vpop.f32.mrf.mxu0
    %v894 = vadd.f32 0.0, %v893
    %v895 = vpop.f32.mrf.mxu0
    %v896 = vadd.f32 0.0, %v895
    %897 = vmatmul.bf16.gmra.mxu0 %v822
    %v898 = vpop.f32.mrf.mxu0
    %v899 = vadd.f32 0.0, %v898
    %v900 = vpop.f32.mrf.mxu0
    %v901 = vadd.f32 0.0, %v900
    %902 = vmatmul.bf16.gmra.mxu0 %v825
    %v903 = vpop.f32.mrf.mxu0
    %v904 = vadd.f32 0.0, %v903
    %v905 = vpop.f32.mrf.mxu0
    %v906 = vadd.f32 0.0, %v905
    %907 = vmatmul.bf16.gmra.mxu0 %v828
    %v908 = vpop.f32.mrf.mxu0
    %v909 = vadd.f32 0.0, %v908
    %v910 = vpop.f32.mrf.mxu0
    %v911 = vadd.f32 0.0, %v910
    %912 = vmatmul.bf16.gmra.mxu0 %v831
    %v913 = vpop.f32.mrf.mxu0
    %v914 = vadd.f32 0.0, %v913
    %v915 = vpop.f32.mrf.mxu0
    %v916 = vadd.f32 0.0, %v915
    %917 = vmatmul.bf16.gmra.mxu0 %v834
    %v918 = vpop.f32.mrf.mxu0
    %v919 = vadd.f32 0.0, %v918
    %v920 = vpop.f32.mrf.mxu0
    %v921 = vadd.f32 0.0, %v920
    %922 = vmatmul.bf16.gmra.mxu0 %v837
    %v923 = vpop.f32.mrf.mxu0
    %v924 = vadd.f32 0.0, %v923
    %v925 = vpop.f32.mrf.mxu0
    %v926 = vadd.f32 0.0, %v925
    %927 = vmatmul.bf16.gmra.mxu0 %v840
    %v928 = vpop.f32.mrf.mxu0
    %v929 = vadd.f32 0.0, %v928
    %v930 = vpop.f32.mrf.mxu0
    %v931 = vadd.f32 0.0, %v930
    %932 = vmatmul.bf16.gmra.mxu0 %v843
    %v933 = vpop.f32.mrf.mxu0
    %v934 = vadd.f32 0.0, %v933
    %v935 = vpop.f32.mrf.mxu0
    %v936 = vadd.f32 0.0, %v935
    %937 = vmatmul.bf16.gmra.mxu0 %v846
    %v938 = vpop.f32.mrf.mxu0
    %v939 = vadd.f32 0.0, %v938
    %v940 = vpop.f32.mrf.mxu0
    %v941 = vadd.f32 0.0, %v940
    %942 = vmatmul.bf16.gmra.mxu0 %v849
    %v943 = vpop.f32.mrf.mxu0
    %v944 = vadd.f32 0.0, %v943
    %v945 = vpop.f32.mrf.mxu0
    %v946 = vadd.f32 0.0, %v945
    %947 = vmatmul.bf16.gmra.mxu0 %v852
    %v948 = vpop.f32.mrf.mxu0
    %v949 = vadd.f32 0.0, %v948
    %v950 = vpop.f32.mrf.mxu0
    %v951 = vadd.f32 0.0, %v950
    %952 = vmatmul.bf16.gmra.mxu0 %v855
    %v953 = vpop.f32.mrf.mxu0
    %v954 = vadd.f32 0.0, %v953
    %v955 = vpop.f32.mrf.mxu0
    %v956 = vadd.f32 0.0, %v955
    %957 = vmatmul.bf16.gmra.mxu0 %v858
    %v958 = vpop.f32.mrf.mxu0
    %v959 = vadd.f32 0.0, %v958
    %v960 = vpop.f32.mrf.mxu0
    %v961 = vadd.f32 0.0, %v960
    %962 = vmatmul.bf16.gmra.mxu0 %v861
    %v963 = vpop.f32.mrf.mxu0
    %v964 = vadd.f32 0.0, %v963
    %v965 = vpop.f32.mrf.mxu0
    %v966 = vadd.f32 0.0, %v965
    %967 = vmatmul.bf16.gmra.mxu0 %v864
    %v968 = vpop.f32.mrf.mxu0
    %v969 = vadd.f32 0.0, %v968
    %v970 = vpop.f32.mrf.mxu0
    %v971 = vadd.f32 0.0, %v970
    %972 = vmatmul.bf16.gmra.mxu0 %v867
    %v973 = vpop.f32.mrf.mxu0
    %v974 = vadd.f32 0.0, %v973
    %v975 = vpop.f32.mrf.mxu0
    %v976 = vadd.f32 0.0, %v975
    %977 = vdwg.mxu0
    %979 = vset.pattern.permute.xlu0 0
    %980 = vperm.xlu0 %979, %v879
    %v981 = vpop.permute.xlu0 %980
    %984 = vset.pattern.permute.xlu0 0
    %985 = vperm.xlu0 %984, %v881
    %v986 = vpop.permute.xlu0 %985
    %989 = vset.pattern.permute.xlu0 0
    %990 = vperm.xlu0 %989, %v884
    %v991 = vpop.permute.xlu0 %990
    %994 = vset.pattern.permute.xlu0 0
    %995 = vperm.xlu0 %994, %v886
    %v996 = vpop.permute.xlu0 %995
    %999 = vset.pattern.permute.xlu0 0
    %1000 = vperm.xlu0 %999, %v889
    %v1001 = vpop.permute.xlu0 %1000
    %1004 = vset.pattern.permute.xlu0 0
    %1005 = vperm.xlu0 %1004, %v891
    %v1006 = vpop.permute.xlu0 %1005
    %1009 = vset.pattern.permute.xlu0 0
    %1010 = vperm.xlu0 %1009, %v894
    %v1011 = vpop.permute.xlu0 %1010
    %1014 = vset.pattern.permute.xlu0 0
    %1015 = vperm.xlu0 %1014, %v896
    %v1016 = vpop.permute.xlu0 %1015
    %1019 = vset.pattern.permute.xlu0 0
    %1020 = vperm.xlu0 %1019, %v899
    %v1021 = vpop.permute.xlu0 %1020
    %1024 = vset.pattern.permute.xlu0 0
    %1025 = vperm.xlu0 %1024, %v901
    %v1026 = vpop.permute.xlu0 %1025
    %1029 = vset.pattern.permute.xlu0 0
    %1030 = vperm.xlu0 %1029, %v904
    %v1031 = vpop.permute.xlu0 %1030
    %1034 = vset.pattern.permute.xlu0 0
    %1035 = vperm.xlu0 %1034, %v906
    %v1036 = vpop.permute.xlu0 %1035
    %1039 = vset.pattern.permute.xlu0 0
    %1040 = vperm.xlu0 %1039, %v909
    %v1041 = vpop.permute.xlu0 %1040
    %1044 = vset.pattern.permute.xlu0 0
    %1045 = vperm.xlu0 %1044, %v911
    %v1046 = vpop.permute.xlu0 %1045
    %1049 = vset.pattern.permute.xlu0 0
    %1050 = vperm.xlu0 %1049, %v914
    %v1051 = vpop.permute.xlu0 %1050
    %1054 = vset.pattern.permute.xlu0 0
    %1055 = vperm.xlu0 %1054, %v916
    %v1056 = vpop.permute.xlu0 %1055
    %1059 = vset.pattern.permute.xlu0 0
    %1060 = vperm.xlu0 %1059, %v919
    %v1061 = vpop.permute.xlu0 %1060
    %1064 = vset.pattern.permute.xlu0 0
    %1065 = vperm.xlu0 %1064, %v921
    %v1066 = vpop.permute.xlu0 %1065
    %1069 = vset.pattern.permute.xlu0 0
    %1070 = vperm.xlu0 %1069, %v924
    %v1071 = vpop.permute.xlu0 %1070
    %1074 = vset.pattern.permute.xlu0 0
    %1075 = vperm.xlu0 %1074, %v926
    %v1076 = vpop.permute.xlu0 %1075
    %1079 = vset.pattern.permute.xlu0 0
    %1080 = vperm.xlu0 %1079, %v929
    %v1081 = vpop.permute.xlu0 %1080
    %1084 = vset.pattern.permute.xlu0 0
    %1085 = vperm.xlu0 %1084, %v931
    %v1086 = vpop.permute.xlu0 %1085
    %1089 = vset.pattern.permute.xlu0 0
    %1090 = vperm.xlu0 %1089, %v934
    %v1091 = vpop.permute.xlu0 %1090
    %1094 = vset.pattern.permute.xlu0 0
    %1095 = vperm.xlu0 %1094, %v936
    %v1096 = vpop.permute.xlu0 %1095
    %1099 = vset.pattern.permute.xlu0 0
    %1100 = vperm.xlu0 %1099, %v939
    %v1101 = vpop.permute.xlu0 %1100
    %1104 = vset.pattern.permute.xlu0 0
    %1105 = vperm.xlu0 %1104, %v941
    %v1106 = vpop.permute.xlu0 %1105
    %1109 = vset.pattern.permute.xlu0 0
    %1110 = vperm.xlu0 %1109, %v944
    %v1111 = vpop.permute.xlu0 %1110
    %1114 = vset.pattern.permute.xlu0 0
    %1115 = vperm.xlu0 %1114, %v946
    %v1116 = vpop.permute.xlu0 %1115
    %1119 = vset.pattern.permute.xlu0 0
    %1120 = vperm.xlu0 %1119, %v949
    %v1121 = vpop.permute.xlu0 %1120
    %1124 = vset.pattern.permute.xlu0 0
    %1125 = vperm.xlu0 %1124, %v951
    %v1126 = vpop.permute.xlu0 %1125
    %1129 = vset.pattern.permute.xlu0 0
    %1130 = vperm.xlu0 %1129, %v954
    %v1131 = vpop.permute.xlu0 %1130
    %1134 = vset.pattern.permute.xlu0 0
    %1135 = vperm.xlu0 %1134, %v956
    %v1136 = vpop.permute.xlu0 %1135
    %1139 = vset.pattern.permute.xlu0 0
    %1140 = vperm.xlu0 %1139, %v959
    %v1141 = vpop.permute.xlu0 %1140
    %1144 = vset.pattern.permute.xlu0 0
    %1145 = vperm.xlu0 %1144, %v961
    %v1146 = vpop.permute.xlu0 %1145
    %1149 = vset.pattern.permute.xlu0 0
    %1150 = vperm.xlu0 %1149, %v964
    %v1151 = vpop.permute.xlu0 %1150
    %1154 = vset.pattern.permute.xlu0 0
    %1155 = vperm.xlu0 %1154, %v966
    %v1156 = vpop.permute.xlu0 %1155
    %1159 = vset.pattern.permute.xlu0 0
    %1160 = vperm.xlu0 %1159, %v969
    %v1161 = vpop.permute.xlu0 %1160
    %1164 = vset.pattern.permute.xlu0 0
    %1165 = vperm.xlu0 %1164, %v971
    %v1166 = vpop.permute.xlu0 %1165
    %1169 = vset.pattern.permute.xlu0 0
    %1170 = vperm.xlu0 %1169, %v974
    %v1171 = vpop.permute.xlu0 %1170
    %1174 = vset.pattern.permute.xlu0 0
    %1175 = vperm.xlu0 %1174, %v976
    %v1176 = vpop.permute.xlu0 %1175
    %v1178 = vmul.f32 %v981, %v569
    %v1179 = vmul.f32 %v986, %v571
    %v1180 = vmul.f32 %v991, %v574
    %v1181 = vmul.f32 %v996, %v576
    %v1182 = vmul.f32 %v1001, %v579
    %v1183 = vmul.f32 %v1006, %v581
    %v1184 = vmul.f32 %v1011, %v584
    %v1185 = vmul.f32 %v1016, %v586
    %v1186 = vmul.f32 %v1021, %v589
    %v1187 = vmul.f32 %v1026, %v591
    %v1188 = vmul.f32 %v1031, %v594
    %v1189 = vmul.f32 %v1036, %v596
    %v1190 = vmul.f32 %v1041, %v599
    %v1191 = vmul.f32 %v1046, %v601
    %v1192 = vmul.f32 %v1051, %v604
    %v1193 = vmul.f32 %v1056, %v606
    %v1194 = vmul.f32 %v1061, %v609
    %v1195 = vmul.f32 %v1066, %v611
    %v1196 = vmul.f32 %v1071, %v614
    %v1197 = vmul.f32 %v1076, %v616
    %v1198 = vmul.f32 %v1081, %v619
    %v1199 = vmul.f32 %v1086, %v621
    %v1200 = vmul.f32 %v1091, %v624
    %v1201 = vmul.f32 %v1096, %v626
    %v1202 = vmul.f32 %v1101, %v629
    %v1203 = vmul.f32 %v1106, %v631
    %v1204 = vmul.f32 %v1111, %v634
    %v1205 = vmul.f32 %v1116, %v636
    %v1206 = vmul.f32 %v1121, %v639
    %v1207 = vmul.f32 %v1126, %v641
    %v1208 = vmul.f32 %v1131, %v644
    %v1209 = vmul.f32 %v1136, %v646
    %v1210 = vmul.f32 %v1141, %v649
    %v1211 = vmul.f32 %v1146, %v651
    %v1212 = vmul.f32 %v1151, %v654
    %v1213 = vmul.f32 %v1156, %v656
    %v1214 = vmul.f32 %v1161, %v659
    %v1215 = vmul.f32 %v1166, %v661
    %v1216 = vmul.f32 %v1171, %v664
    %v1217 = vmul.f32 %v1176, %v666
    %v1218 = vld [vmem:[%s3] sm:$0xff]
    %v1219 = vld [vmem:[%s3 + $0x8] sm:$0xf]
    %v1220 = vld [vmem:[%s3 + $0xc] sm:$0xff]
    %v1221 = vld [vmem:[%s3 + $0x14] sm:$0xf]
    %v1222 = vld [vmem:[%s3 + $0x18] sm:$0xff]
    %v1223 = vld [vmem:[%s3 + $0x20] sm:$0xf]
    %v1224 = vld [vmem:[%s3 + $0x24] sm:$0xff]
    %v1225 = vld [vmem:[%s3 + $0x2c] sm:$0xf]
    %v1226 = vld [vmem:[%s3 + $0x30] sm:$0xff]
    %v1227 = vld [vmem:[%s3 + $0x38] sm:$0xf]
    %v1228 = vld [vmem:[%s3 + $0x3c] sm:$0xff]
    %v1229 = vld [vmem:[%s3 + $0x44] sm:$0xf]
    %v1230 = vld [vmem:[%s3 + $0x48] sm:$0xff]
    %v1231 = vld [vmem:[%s3 + $0x50] sm:$0xf]
    %v1232 = vld [vmem:[%s3 + $0x54] sm:$0xff]
    %v1233 = vld [vmem:[%s3 + $0x5c] sm:$0xf]
    %v1234 = vpack.c.bf16 %v1179, %v1178
    %v1235 = vpack.c.bf16 %v1181, %v1180
    %v1236 = vpack.c.bf16 %v1183, %v1182
    %v1237 = vpack.c.bf16 %v1185, %v1184
    %v1238 = vpack.c.bf16 %v1187, %v1186
    %v1239 = vpack.c.bf16 %v1189, %v1188
    %v1240 = vpack.c.bf16 %v1191, %v1190
    %v1241 = vpack.c.bf16 %v1193, %v1192
    %v1242 = vpack.c.bf16 %v1195, %v1194
    %v1243 = vpack.c.bf16 %v1197, %v1196
    %v1244 = vpack.c.bf16 %v1199, %v1198
    %v1245 = vpack.c.bf16 %v1201, %v1200
    %v1246 = vpack.c.bf16 %v1203, %v1202
    %v1247 = vpack.c.bf16 %v1205, %v1204
    %v1248 = vpack.c.bf16 %v1207, %v1206
    %v1249 = vpack.c.bf16 %v1209, %v1208
    %v1250 = vpack.c.bf16 %v1211, %v1210
    %v1251 = vpack.c.bf16 %v1213, %v1212
    %v1252 = vpack.c.bf16 %v1215, %v1214
    %v1253 = vpack.c.bf16 %v1217, %v1216
    %v1270 = vunpack.c.l.b16 %v1218
    %v1271 = vunpack.c.h.b16 %v1218
    %v1272 = vunpack.c.l.b16 %v1219
    %v1273 = vunpack.c.l.b16 %v1220
    %v1274 = vunpack.c.h.b16 %v1220
    %v1275 = vunpack.c.l.b16 %v1221
    %v1276 = vunpack.c.l.b16 %v1222
    %v1277 = vunpack.c.h.b16 %v1222
    %v1278 = vunpack.c.l.b16 %v1223
    %v1279 = vunpack.c.l.b16 %v1224
    %v1280 = vunpack.c.h.b16 %v1224
    %v1281 = vunpack.c.l.b16 %v1225
    %v1282 = vunpack.c.l.b16 %v1226
    %v1283 = vunpack.c.h.b16 %v1226
    %v1284 = vunpack.c.l.b16 %v1227
    %v1285 = vunpack.c.l.b16 %v1228
    %v1286 = vunpack.c.h.b16 %v1228
    %v1287 = vunpack.c.l.b16 %v1229
    %v1288 = vunpack.c.l.b16 %v1230
    %v1289 = vunpack.c.h.b16 %v1230
    %v1290 = vunpack.c.l.b16 %v1231
    %v1291 = vunpack.c.l.b16 %v1232
    %v1292 = vunpack.c.h.b16 %v1232
    %v1293 = vunpack.c.l.b16 %v1233
    %v1294 = vpack.c.b16 %v1273, %v1270
    %v1295 = vpack.c.b16 %v1274, %v1271
    %v1296 = vpack.c.b16 %v1275, %v1272
    %v1297 = vpack.c.b16 %v1279, %v1276
    %v1298 = vpack.c.b16 %v1280, %v1277
    %v1299 = vpack.c.b16 %v1281, %v1278
    %v1300 = vpack.c.b16 %v1285, %v1282
    %v1301 = vpack.c.b16 %v1286, %v1283
    %v1302 = vpack.c.b16 %v1287, %v1284
    %v1303 = vpack.c.b16 %v1291, %v1288
    %v1304 = vpack.c.b16 %v1292, %v1289
    %v1305 = vpack.c.b16 %v1293, %v1290
    %v1315 = vsel %vm808, %v1296, 0
    %v1318 = vsel %vm808, %v1299, 0
    %v1321 = vsel %vm808, %v1302, 0
    %v1324 = vsel %vm808, %v1305, 0
    %1326 = vmatpush.bf16.msra.mxu0 %v1241
    %1327 = vmatpush.bf16.msra.mxu0 %v1240
    %1328 = vmatpush.bf16.msra.mxu0 %v1239
    %1329 = vmatpush.bf16.msra.mxu0 %v1238
    %1330 = vmatpush.bf16.msra.mxu0 %v1237
    %1331 = vmatpush.bf16.msra.mxu0 %v1236
    %1332 = vmatpush.bf16.msra.mxu0 %v1235
    %1333 = vmatpush.bf16.msra.mxu0 %v1234
    %1334 = vmatmul.bf16.gmra.mxu0 %v1294
    %v1335 = vpop.f32.mrf.mxu0
    %v1336 = vadd.f32 0.0, %v1335
    %v1337 = vpop.f32.mrf.mxu0
    %v1338 = vadd.f32 0.0, %v1337
    %1339 = vmatmul.bf16.gmra.mxu0 %v1297
    %v1340 = vpop.f32.mrf.mxu0
    %v1341 = vadd.f32 0.0, %v1340
    %v1342 = vpop.f32.mrf.mxu0
    %v1343 = vadd.f32 0.0, %v1342
    %1344 = vmatmul.bf16.gmra.mxu0 %v1300
    %v1345 = vpop.f32.mrf.mxu0
    %v1346 = vadd.f32 0.0, %v1345
    %v1347 = vpop.f32.mrf.mxu0
    %v1348 = vadd.f32 0.0, %v1347
    %1349 = vmatmul.bf16.gmra.mxu0 %v1303
    %v1350 = vpop.f32.mrf.mxu0
    %v1351 = vadd.f32 0.0, %v1350
    %v1352 = vpop.f32.mrf.mxu0
    %v1353 = vadd.f32 0.0, %v1352
    %1354 = vdwg.mxu0
    %1355 = vmatpush.bf16.msra.mxu0 %v1249
    %1356 = vmatpush.bf16.msra.mxu0 %v1248
    %1357 = vmatpush.bf16.msra.mxu0 %v1247
    %1358 = vmatpush.bf16.msra.mxu0 %v1246
    %1359 = vmatpush.bf16.msra.mxu0 %v1245
    %1360 = vmatpush.bf16.msra.mxu0 %v1244
    %1361 = vmatpush.bf16.msra.mxu0 %v1243
    %1362 = vmatpush.bf16.msra.mxu0 %v1242
    %1363 = vmatmul.bf16.gmra.mxu0 %v1295
    %v1364 = vpop.f32.mrf.mxu0
    %v1365 = vadd.f32 %v1336, %v1364
    %v1366 = vpop.f32.mrf.mxu0
    %v1367 = vadd.f32 %v1338, %v1366
    %1368 = vmatmul.bf16.gmra.mxu0 %v1298
    %v1369 = vpop.f32.mrf.mxu0
    %v1370 = vadd.f32 %v1341, %v1369
    %v1371 = vpop.f32.mrf.mxu0
    %v1372 = vadd.f32 %v1343, %v1371
    %1373 = vmatmul.bf16.gmra.mxu0 %v1301
    %v1374 = vpop.f32.mrf.mxu0
    %v1375 = vadd.f32 %v1346, %v1374
    %v1376 = vpop.f32.mrf.mxu0
    %v1377 = vadd.f32 %v1348, %v1376
    %1378 = vmatmul.bf16.gmra.mxu0 %v1304
    %v1379 = vpop.f32.mrf.mxu0
    %v1380 = vadd.f32 %v1351, %v1379
    %v1381 = vpop.f32.mrf.mxu0
    %v1382 = vadd.f32 %v1353, %v1381
    %1383 = vdwg.mxu0
    %1384 = vmatpush.bf16.msra.mxu0 0
    %1385 = vmatpush.bf16.msra.mxu0 0
    %1386 = vmatpush.bf16.msra.mxu0 0
    %1387 = vmatpush.bf16.msra.mxu0 0
    %1388 = vmatpush.bf16.msra.mxu0 %v1253
    %1389 = vmatpush.bf16.msra.mxu0 %v1252
    %1390 = vmatpush.bf16.msra.mxu0 %v1251
    %1391 = vmatpush.bf16.msra.mxu0 %v1250
    %1392 = vmatmul.bf16.gmra.mxu0 %v1315
    %v1393 = vpop.f32.mrf.mxu0
    %v1394 = vadd.f32 %v1365, %v1393
    %v1395 = vpop.f32.mrf.mxu0
    %v1396 = vadd.f32 %v1367, %v1395
    %1397 = vmatmul.bf16.gmra.mxu0 %v1318
    %v1398 = vpop.f32.mrf.mxu0
    %v1399 = vadd.f32 %v1370, %v1398
    %v1400 = vpop.f32.mrf.mxu0
    %v1401 = vadd.f32 %v1372, %v1400
    %1402 = vmatmul.bf16.gmra.mxu0 %v1321
    %v1403 = vpop.f32.mrf.mxu0
    %v1404 = vadd.f32 %v1375, %v1403
    %v1405 = vpop.f32.mrf.mxu0
    %v1406 = vadd.f32 %v1377, %v1405
    %1407 = vmatmul.bf16.gmra.mxu0 %v1324
    %v1408 = vpop.f32.mrf.mxu0
    %v1409 = vadd.f32 %v1380, %v1408
    %v1410 = vpop.f32.mrf.mxu0
    %v1411 = vadd.f32 %v1382, %v1410
    %1412 = vdwg.mxu0
    %v1413 = vld [vmem:[%s7] sm:$0x1]
    %vm1414 = vcmask 7168
    %v1416 = vsel %vm1414, %v99, 0
    %v1419 = vsel %vm1414, %v100, 0
    %v1422 = vsel %vm1414, %v101, 0
    %v1425 = vsel %vm1414, %v102, 0
    %v1427 = vsel 0, 4294967295, 65535
    %v1428 = vsel %vm309, %v1427, 0
    %v1430 = vand.u32 %v1413, %v1428
    %1432 = vmatpush.bf16.msra.mxu0 0
    %1433 = vmatpush.bf16.msra.mxu0 0
    %1434 = vmatpush.bf16.msra.mxu0 0
    %1435 = vmatpush.bf16.msra.mxu0 0
    %1436 = vmatpush.bf16.msra.mxu0 0
    %1437 = vmatpush.bf16.msra.mxu0 0
    %1438 = vmatpush.bf16.msra.mxu0 0
    %1439 = vmatpush.bf16.msra.mxu0 %v1430
    %1440 = vmatmul.bf16.gmra.mxu0 %v1416
    %v1441 = vpop.f32.mrf.mxu0
    %v1442 = vadd.f32 %v1394, %v1441
    %v1443 = vpop.f32.mrf.mxu0
    %v1444 = vadd.f32 %v1396, %v1443
    %1445 = vmatmul.bf16.gmra.mxu0 %v1419
    %v1446 = vpop.f32.mrf.mxu0
    %v1447 = vadd.f32 %v1399, %v1446
    %v1448 = vpop.f32.mrf.mxu0
    %v1449 = vadd.f32 %v1401, %v1448
    %1450 = vmatmul.bf16.gmra.mxu0 %v1422
    %v1451 = vpop.f32.mrf.mxu0
    %v1452 = vadd.f32 %v1404, %v1451
    %v1453 = vpop.f32.mrf.mxu0
    %v1454 = vadd.f32 %v1406, %v1453
    %1455 = vmatmul.bf16.gmra.mxu0 %v1425
    %v1456 = vpop.f32.mrf.mxu0
    %v1457 = vadd.f32 %v1409, %v1456
    %v1458 = vpop.f32.mrf.mxu0
    %v1459 = vadd.f32 %v1411, %v1458
    %1460 = vdwg.mxu0
    %v1461 = vld [vmem:[%s8] sm:$0x1]
    %v1463 = vperm.slane %v1461, 0
    %v1465 = vadd.f32 %v1442, %v1463
    %v1466 = vadd.f32 %v1444, %v1463
    %v1467 = vadd.f32 %v1447, %v1463
    %v1468 = vadd.f32 %v1449, %v1463
    %v1469 = vadd.f32 %v1452, %v1463
    %v1470 = vadd.f32 %v1454, %v1463
    %v1471 = vadd.f32 %v1457, %v1463
    %v1472 = vadd.f32 %v1459, %v1463
    %vm1473 = vcmp.gt.f32.partialorder %v1465, 0.0
    %vm1474 = vcmp.gt.f32.partialorder %v1466, 0.0
    %vm1475 = vcmp.gt.f32.partialorder %v1467, 0.0
    %vm1476 = vcmp.gt.f32.partialorder %v1468, 0.0
    %vm1477 = vcmp.gt.f32.partialorder %v1469, 0.0
    %vm1478 = vcmp.gt.f32.partialorder %v1470, 0.0
    %vm1479 = vcmp.gt.f32.partialorder %v1471, 0.0
    %vm1480 = vcmp.gt.f32.partialorder %v1472, 0.0
    %v1481 = vmin.f32 %v1465, 0.0
    %v1482 = vmin.f32 %v1466, 0.0
    %v1483 = vmin.f32 %v1467, 0.0
    %v1484 = vmin.f32 %v1468, 0.0
    %v1485 = vmin.f32 %v1469, 0.0
    %v1486 = vmin.f32 %v1470, 0.0
    %v1487 = vmin.f32 %v1471, 0.0
    %v1488 = vmin.f32 %v1472, 0.0
    %v1489 = vmul.f32 %v1481, 1.442695
    %v1490 = vpow.pop %v1489
    %v1491 = vmul.f32 %v1482, 1.442695
    %v1492 = vpow.pop %v1491
    %v1493 = vmul.f32 %v1483, 1.442695
    %v1494 = vpow.pop %v1493
    %v1495 = vmul.f32 %v1484, 1.442695
    %v1496 = vpow.pop %v1495
    %v1497 = vmul.f32 %v1485, 1.442695
    %v1498 = vpow.pop %v1497
    %v1499 = vmul.f32 %v1486, 1.442695
    %v1500 = vpow.pop %v1499
    %v1501 = vmul.f32 %v1487, 1.442695
    %v1502 = vpow.pop %v1501
    %v1503 = vmul.f32 %v1488, 1.442695
    %v1504 = vpow.pop %v1503
    %v1505 = vsub.f32 %v1490, 1.0
    %v1506 = vsub.f32 %v1492, 1.0
    %v1507 = vsub.f32 %v1494, 1.0
    %v1508 = vsub.f32 %v1496, 1.0
    %v1509 = vsub.f32 %v1498, 1.0
    %v1510 = vsub.f32 %v1500, 1.0
    %v1511 = vsub.f32 %v1502, 1.0
    %v1512 = vsub.f32 %v1504, 1.0
    %v1513 = vsel %vm1473, %v1465, %v1505
    %v1514 = vsel %vm1474, %v1466, %v1506
    %v1515 = vsel %vm1475, %v1467, %v1507
    %v1516 = vsel %vm1476, %v1468, %v1508
    %v1517 = vsel %vm1477, %v1469, %v1509
    %v1518 = vsel %vm1478, %v1470, %v1510
    %v1519 = vsel %vm1479, %v1471, %v1511
    %v1520 = vsel %vm1480, %v1472, %v1512
    %v1521 = vpack.c.bf16 %v1514, %v1513
    %v1522 = vpack.c.bf16 %v1516, %v1515
    %v1523 = vpack.c.bf16 %v1518, %v1517
    %v1524 = vpack.c.bf16 %v1520, %v1519
    %v1525 = vld [vmem:[%s9] sm:$0xf]
    %v1526 = vld [vmem:[%s9 + $0x4] sm:$0xf]
    %v1527 = vld [vmem:[%s9 + $0x8] sm:$0xf]
    %v1528 = vld [vmem:[%s9 + $0xc] sm:$0xf]
    %v1529 = vld [vmem:[%s9 + $0x10] sm:$0xf]
    %v1530 = vld [vmem:[%s9 + $0x14] sm:$0xf]
    %v1537 = vunpack.c.l.b16 %v1525
    %v1538 = vunpack.c.l.b16 %v1526
    %v1539 = vunpack.c.l.b16 %v1527
    %v1540 = vunpack.c.l.b16 %v1528
    %v1541 = vunpack.c.l.b16 %v1529
    %v1542 = vunpack.c.l.b16 %v1530
    %v1543 = vpack.c.b16 %v1538, %v1537
    %v1544 = vpack.c.b16 %v1540, %v1539
    %v1545 = vpack.c.b16 %v1542, %v1541
    %v1547 = vsel %vm808, %v1543, 0
    %v1550 = vsel %vm808, %v1544, 0
    %v1553 = vsel %vm808, %v1545, 0
    %1555 = vmatpush.bf16.msra.mxu0 0
    %1556 = vmatpush.bf16.msra.mxu0 0
    %1557 = vmatpush.bf16.msra.mxu0 0
    %1558 = vmatpush.bf16.msra.mxu0 0
    %1559 = vmatpush.bf16.msra.mxu0 %v1524
    %1560 = vmatpush.bf16.msra.mxu0 %v1523
    %1561 = vmatpush.bf16.msra.mxu0 %v1522
    %1562 = vmatpush.bf16.msra.mxu0 %v1521
    %1563 = vmatmul.bf16.gmra.mxu0 %v1547
    %v1564 = vpop.f32.mrf.mxu0
    %v1565 = vadd.f32 0.0, %v1564
    %v1566 = vpop.f32.mrf.mxu0
    %v1567 = vadd.f32 0.0, %v1566
    %1568 = vmatmul.bf16.gmra.mxu0 %v1550
    %v1569 = vpop.f32.mrf.mxu0
    %v1570 = vadd.f32 0.0, %v1569
    %v1571 = vpop.f32.mrf.mxu0
    %v1572 = vadd.f32 0.0, %v1571
    %1573 = vmatmul.bf16.gmra.mxu0 %v1553
    %v1574 = vpop.f32.mrf.mxu0
    %v1575 = vadd.f32 0.0, %v1574
    %v1576 = vpop.f32.mrf.mxu0
    %v1577 = vadd.f32 0.0, %v1576
    %1578 = vdwg.mxu0
    %v1579 = vld [vmem:[%s10] sm:$0xf]
    %v1580 = vld [vmem:[%s10 + $0x4] sm:$0xf]
    %v1581 = vld [vmem:[%s10 + $0x8] sm:$0xf]
    %v1582 = vld [vmem:[%s10 + $0xc] sm:$0xf]
    %v1583 = vld [vmem:[%s10 + $0x10] sm:$0xf]
    %v1584 = vld [vmem:[%s10 + $0x14] sm:$0xf]
    %v1591 = vunpack.c.l.b16 %v1579
    %v1592 = vunpack.c.l.b16 %v1580
    %v1593 = vunpack.c.l.b16 %v1581
    %v1594 = vunpack.c.l.b16 %v1582
    %v1595 = vunpack.c.l.b16 %v1583
    %v1596 = vunpack.c.l.b16 %v1584
    %v1597 = vpack.c.b16 %v1592, %v1591
    %v1598 = vpack.c.b16 %v1594, %v1593
    %v1599 = vpack.c.b16 %v1596, %v1595
    %v1601 = vsel %vm808, %v1597, 0
    %v1604 = vsel %vm808, %v1598, 0
    %v1607 = vsel %vm808, %v1599, 0
    %1609 = vmatpush.bf16.msra.mxu0 0
    %1610 = vmatpush.bf16.msra.mxu0 0
    %1611 = vmatpush.bf16.msra.mxu0 0
    %1612 = vmatpush.bf16.msra.mxu0 0
    %1613 = vmatpush.bf16.msra.mxu0 %v1524
    %1614 = vmatpush.bf16.msra.mxu0 %v1523
    %1615 = vmatpush.bf16.msra.mxu0 %v1522
    %1616 = vmatpush.bf16.msra.mxu0 %v1521
    %1617 = vmatmul.bf16.gmra.mxu0 %v1601
    %v1618 = vpop.f32.mrf.mxu0
    %v1619 = vadd.f32 0.0, %v1618
    %v1620 = vpop.f32.mrf.mxu0
    %v1621 = vadd.f32 0.0, %v1620
    %1622 = vmatmul.bf16.gmra.mxu0 %v1604
    %v1623 = vpop.f32.mrf.mxu0
    %v1624 = vadd.f32 0.0, %v1623
    %v1625 = vpop.f32.mrf.mxu0
    %v1626 = vadd.f32 0.0, %v1625
    %1627 = vmatmul.bf16.gmra.mxu0 %v1607
    %v1628 = vpop.f32.mrf.mxu0
    %v1629 = vadd.f32 0.0, %v1628
    %v1630 = vpop.f32.mrf.mxu0
    %v1631 = vadd.f32 0.0, %v1630
    %1632 = vdwg.mxu0
    %v1633 = vmax.f32 %v1565, %v1619
    %v1634 = vmax.f32 %v1567, %v1621
    %v1635 = vmax.f32 %v1570, %v1624
    %v1636 = vmax.f32 %v1572, %v1626
    %v1637 = vmax.f32 %v1575, %v1629
    %v1638 = vmax.f32 %v1577, %v1631
    %v1639 = vld [vmem:[%s11] sm:$0xf]
    %v1640 = vld [vmem:[%s11 + $0x4] sm:$0xf]
    %v1641 = vld [vmem:[%s11 + $0x8] sm:$0xf]
    %v1642 = vld [vmem:[%s11 + $0xc] sm:$0xf]
    %v1643 = vld [vmem:[%s11 + $0x10] sm:$0xf]
    %v1644 = vld [vmem:[%s11 + $0x14] sm:$0xf]
    %v1645 = vld [vmem:[%s11 + $0x18] sm:$0xf]
    %v1646 = vld [vmem:[%s11 + $0x1c] sm:$0xf]
    %v1647 = vld [vmem:[%s11 + $0x20] sm:$0xf]
    %v1648 = vld [vmem:[%s11 + $0x24] sm:$0xf]
    %v1649 = vld [vmem:[%s11 + $0x28] sm:$0xf]
    %v1650 = vld [vmem:[%s11 + $0x2c] sm:$0xf]
    %v1651 = vld [vmem:[%s11 + $0x30] sm:$0xf]
    %v1652 = vld [vmem:[%s11 + $0x34] sm:$0xf]
    %v1653 = vld [vmem:[%s11 + $0x38] sm:$0xf]
    %v1654 = vld [vmem:[%s11 + $0x3c] sm:$0xf]
    %v1655 = vld [vmem:[%s11 + $0x40] sm:$0xf]
    %v1656 = vld [vmem:[%s11 + $0x44] sm:$0xf]
    %v1657 = vld [vmem:[%s11 + $0x48] sm:$0xf]
    %v1658 = vld [vmem:[%s11 + $0x4c] sm:$0xf]
    %v1659 = vld [vmem:[%s14] sm:$0x1]
    %v1660 = vld [vmem:[%s15] sm:$0x1]
    %v1662 = vperm.slane %v1660, 0
    %v1684 = vunpack.c.l.b16 %v1639
    %v1685 = vunpack.c.l.b16 %v1640
    %v1686 = vunpack.c.l.b16 %v1641
    %v1687 = vunpack.c.l.b16 %v1642
    %v1688 = vunpack.c.l.b16 %v1643
    %v1689 = vunpack.c.l.b16 %v1644
    %v1690 = vunpack.c.l.b16 %v1645
    %v1691 = vunpack.c.l.b16 %v1646
    %v1692 = vunpack.c.l.b16 %v1647
    %v1693 = vunpack.c.l.b16 %v1648
    %v1694 = vunpack.c.l.b16 %v1649
    %v1695 = vunpack.c.l.b16 %v1650
    %v1696 = vunpack.c.l.b16 %v1651
    %v1697 = vunpack.c.l.b16 %v1652
    %v1698 = vunpack.c.l.b16 %v1653
    %v1699 = vunpack.c.l.b16 %v1654
    %v1700 = vunpack.c.l.b16 %v1655
    %v1701 = vunpack.c.l.b16 %v1656
    %v1702 = vunpack.c.l.b16 %v1657
    %v1703 = vunpack.c.l.b16 %v1658
    %v1704 = vpack.c.b16 %v1685, %v1684
    %v1705 = vpack.c.b16 %v1687, %v1686
    %v1706 = vpack.c.b16 %v1689, %v1688
    %v1707 = vpack.c.b16 %v1691, %v1690
    %v1708 = vpack.c.b16 %v1693, %v1692
    %v1709 = vpack.c.b16 %v1695, %v1694
    %v1710 = vpack.c.b16 %v1697, %v1696
    %v1711 = vpack.c.b16 %v1699, %v1698
    %v1712 = vpack.c.b16 %v1701, %v1700
    %v1713 = vpack.c.b16 %v1703, %v1702
    %v1715 = vsel %vm248, %v1704, 0
    %v1718 = vsel %vm248, %v1705, 0
    %v1721 = vsel %vm248, %v1706, 0
    %v1724 = vsel %vm248, %v1707, 0
    %v1727 = vsel %vm248, %v1708, 0
    %v1730 = vsel %vm248, %v1709, 0
    %v1733 = vsel %vm248, %v1710, 0
    %v1736 = vsel %vm248, %v1711, 0
    %v1739 = vsel %vm248, %v1712, 0
    %v1742 = vsel %vm248, %v1713, 0
    %v1745 = vsel %vm309, %v1659, 0
    %1747 = vmatpush.bf16.msra.mxu0 0
    %1748 = vmatpush.bf16.msra.mxu0 0
    %1749 = vmatpush.bf16.msra.mxu0 0
    %1750 = vmatpush.bf16.msra.mxu0 0
    %1751 = vmatpush.bf16.msra.mxu0 0
    %1752 = vmatpush.bf16.msra.mxu0 0
    %1753 = vmatpush.bf16.msra.mxu0 0
    %1754 = vmatpush.bf16.msra.mxu0 %v1745
    %1755 = vmatmul.bf16.gmra.mxu0 %v1715
    %v1756 = vpop.f32.mrf.mxu0
    %v1757 = vadd.f32 %v1662, %v1756
    %v1758 = vpop.f32.mrf.mxu0
    %v1759 = vadd.f32 %v1662, %v1758
    %1760 = vmatmul.bf16.gmra.mxu0 %v1718
    %v1761 = vpop.f32.mrf.mxu0
    %v1762 = vadd.f32 %v1662, %v1761
    %v1763 = vpop.f32.mrf.mxu0
    %v1764 = vadd.f32 %v1662, %v1763
    %1765 = vmatmul.bf16.gmra.mxu0 %v1721
    %v1766 = vpop.f32.mrf.mxu0
    %v1767 = vadd.f32 %v1662, %v1766
    %v1768 = vpop.f32.mrf.mxu0
    %v1769 = vadd.f32 %v1662, %v1768
    %1770 = vmatmul.bf16.gmra.mxu0 %v1724
    %v1771 = vpop.f32.mrf.mxu0
    %v1772 = vadd.f32 %v1662, %v1771
    %v1773 = vpop.f32.mrf.mxu0
    %v1774 = vadd.f32 %v1662, %v1773
    %1775 = vmatmul.bf16.gmra.mxu0 %v1727
    %v1776 = vpop.f32.mrf.mxu0
    %v1777 = vadd.f32 %v1662, %v1776
    %v1778 = vpop.f32.mrf.mxu0
    %v1779 = vadd.f32 %v1662, %v1778
    %1780 = vmatmul.bf16.gmra.mxu0 %v1730
    %v1781 = vpop.f32.mrf.mxu0
    %v1782 = vadd.f32 %v1662, %v1781
    %v1783 = vpop.f32.mrf.mxu0
    %v1784 = vadd.f32 %v1662, %v1783
    %1785 = vmatmul.bf16.gmra.mxu0 %v1733
    %v1786 = vpop.f32.mrf.mxu0
    %v1787 = vadd.f32 %v1662, %v1786
    %v1788 = vpop.f32.mrf.mxu0
    %v1789 = vadd.f32 %v1662, %v1788
    %1790 = vmatmul.bf16.gmra.mxu0 %v1736
    %v1791 = vpop.f32.mrf.mxu0
    %v1792 = vadd.f32 %v1662, %v1791
    %v1793 = vpop.f32.mrf.mxu0
    %v1794 = vadd.f32 %v1662, %v1793
    %1795 = vmatmul.bf16.gmra.mxu0 %v1739
    %v1796 = vpop.f32.mrf.mxu0
    %v1797 = vadd.f32 %v1662, %v1796
    %v1798 = vpop.f32.mrf.mxu0
    %v1799 = vadd.f32 %v1662, %v1798
    %1800 = vmatmul.bf16.gmra.mxu0 %v1742
    %v1801 = vpop.f32.mrf.mxu0
    %v1802 = vadd.f32 %v1662, %v1801
    %v1803 = vpop.f32.mrf.mxu0
    %v1804 = vadd.f32 %v1662, %v1803
    %1805 = vdwg.mxu0
    %v1806 = vmax.f32 %v1757, 0.0
    %v1807 = vmax.f32 %v1759, 0.0
    %v1808 = vmax.f32 %v1762, 0.0
    %v1809 = vmax.f32 %v1764, 0.0
    %v1810 = vmax.f32 %v1767, 0.0
    %v1811 = vmax.f32 %v1769, 0.0
    %v1812 = vmax.f32 %v1772, 0.0
    %v1813 = vmax.f32 %v1774, 0.0
    %v1814 = vmax.f32 %v1777, 0.0
    %v1815 = vmax.f32 %v1779, 0.0
    %v1816 = vmax.f32 %v1782, 0.0
    %v1817 = vmax.f32 %v1784, 0.0
    %v1818 = vmax.f32 %v1787, 0.0
    %v1819 = vmax.f32 %v1789, 0.0
    %v1820 = vmax.f32 %v1792, 0.0
    %v1821 = vmax.f32 %v1794, 0.0
    %v1822 = vmax.f32 %v1797, 0.0
    %v1823 = vmax.f32 %v1799, 0.0
    %v1824 = vmax.f32 %v1802, 0.0
    %v1825 = vmax.f32 %v1804, 0.0
    %v1826 = vpack.c.bf16 %v1634, %v1633
    %v1827 = vpack.c.bf16 %v1636, %v1635
    %v1828 = vpack.c.bf16 %v1638, %v1637
    %v1829 = vld [vmem:[%s12] sm:$0xf]
    %v1830 = vld [vmem:[%s12 + $0x4] sm:$0xf]
    %v1831 = vld [vmem:[%s12 + $0x8] sm:$0xf]
    %v1832 = vld [vmem:[%s12 + $0xc] sm:$0xf]
    %v1833 = vld [vmem:[%s12 + $0x10] sm:$0xf]
    %v1834 = vld [vmem:[%s12 + $0x14] sm:$0xf]
    %v1835 = vld [vmem:[%s12 + $0x18] sm:$0xf]
    %v1836 = vld [vmem:[%s12 + $0x1c] sm:$0xf]
    %v1837 = vld [vmem:[%s12 + $0x20] sm:$0xf]
    %v1838 = vld [vmem:[%s12 + $0x24] sm:$0xf]
    %v1839 = vld [vmem:[%s12 + $0x28] sm:$0xf]
    %v1840 = vld [vmem:[%s12 + $0x2c] sm:$0xf]
    %v1841 = vld [vmem:[%s12 + $0x30] sm:$0xf]
    %v1842 = vld [vmem:[%s12 + $0x34] sm:$0xf]
    %v1843 = vld [vmem:[%s12 + $0x38] sm:$0xf]
    %v1844 = vld [vmem:[%s12 + $0x3c] sm:$0xf]
    %v1845 = vld [vmem:[%s12 + $0x40] sm:$0xf]
    %v1846 = vld [vmem:[%s12 + $0x44] sm:$0xf]
    %v1847 = vld [vmem:[%s12 + $0x48] sm:$0xf]
    %v1848 = vld [vmem:[%s12 + $0x4c] sm:$0xf]
    %v1869 = vunpack.c.l.b16 %v1829
    %v1870 = vunpack.c.l.b16 %v1830
    %v1871 = vunpack.c.l.b16 %v1831
    %v1872 = vunpack.c.l.b16 %v1832
    %v1873 = vunpack.c.l.b16 %v1833
    %v1874 = vunpack.c.l.b16 %v1834
    %v1875 = vunpack.c.l.b16 %v1835
    %v1876 = vunpack.c.l.b16 %v1836
    %v1877 = vunpack.c.l.b16 %v1837
    %v1878 = vunpack.c.l.b16 %v1838
    %v1879 = vunpack.c.l.b16 %v1839
    %v1880 = vunpack.c.l.b16 %v1840
    %v1881 = vunpack.c.l.b16 %v1841
    %v1882 = vunpack.c.l.b16 %v1842
    %v1883 = vunpack.c.l.b16 %v1843
    %v1884 = vunpack.c.l.b16 %v1844
    %v1885 = vunpack.c.l.b16 %v1845
    %v1886 = vunpack.c.l.b16 %v1846
    %v1887 = vunpack.c.l.b16 %v1847
    %v1888 = vunpack.c.l.b16 %v1848
    %v1889 = vpack.c.b16 %v1870, %v1869
    %v1890 = vpack.c.b16 %v1872, %v1871
    %v1891 = vpack.c.b16 %v1874, %v1873
    %v1892 = vpack.c.b16 %v1876, %v1875
    %v1893 = vpack.c.b16 %v1878, %v1877
    %v1894 = vpack.c.b16 %v1880, %v1879
    %v1895 = vpack.c.b16 %v1882, %v1881
    %v1896 = vpack.c.b16 %v1884, %v1883
    %v1897 = vpack.c.b16 %v1886, %v1885
    %v1898 = vpack.c.b16 %v1888, %v1887
    %vm1899 = vcmask 392192
    %v1901 = vsel %vm1899, %v1889, 0
    %v1904 = vsel %vm1899, %v1890, 0
    %v1907 = vsel %vm1899, %v1891, 0
    %v1910 = vsel %vm1899, %v1892, 0
    %v1913 = vsel %vm1899, %v1893, 0
    %v1916 = vsel %vm1899, %v1894, 0
    %v1919 = vsel %vm1899, %v1895, 0
    %v1922 = vsel %vm1899, %v1896, 0
    %v1925 = vsel %vm1899, %v1897, 0
    %v1928 = vsel %vm1899, %v1898, 0
    %1930 = vmatpush.bf16.msra.mxu0 0
    %1931 = vmatpush.bf16.msra.mxu0 0
    %1932 = vmatpush.bf16.msra.mxu0 0
    %1933 = vmatpush.bf16.msra.mxu0 0
    %1934 = vmatpush.bf16.msra.mxu0 0
    %1935 = vmatpush.bf16.msra.mxu0 %v1828
    %1936 = vmatpush.bf16.msra.mxu0 %v1827
    %1937 = vmatpush.bf16.msra.mxu0 %v1826
    %1938 = vmatmul.bf16.gmra.mxu0 %v1901
    %v1939 = vpop.f32.mrf.mxu0
    %v1940 = vadd.f32 0.0, %v1939
    %v1941 = vpop.f32.mrf.mxu0
    %v1942 = vadd.f32 0.0, %v1941
    %1943 = vmatmul.bf16.gmra.mxu0 %v1904
    %v1944 = vpop.f32.mrf.mxu0
    %v1945 = vadd.f32 0.0, %v1944
    %v1946 = vpop.f32.mrf.mxu0
    %v1947 = vadd.f32 0.0, %v1946
    %1948 = vmatmul.bf16.gmra.mxu0 %v1907
    %v1949 = vpop.f32.mrf.mxu0
    %v1950 = vadd.f32 0.0, %v1949
    %v1951 = vpop.f32.mrf.mxu0
    %v1952 = vadd.f32 0.0, %v1951
    %1953 = vmatmul.bf16.gmra.mxu0 %v1910
    %v1954 = vpop.f32.mrf.mxu0
    %v1955 = vadd.f32 0.0, %v1954
    %v1956 = vpop.f32.mrf.mxu0
    %v1957 = vadd.f32 0.0, %v1956
    %1958 = vmatmul.bf16.gmra.mxu0 %v1913
    %v1959 = vpop.f32.mrf.mxu0
    %v1960 = vadd.f32 0.0, %v1959
    %v1961 = vpop.f32.mrf.mxu0
    %v1962 = vadd.f32 0.0, %v1961
    %1963 = vmatmul.bf16.gmra.mxu0 %v1916
    %v1964 = vpop.f32.mrf.mxu0
    %v1965 = vadd.f32 0.0, %v1964
    %v1966 = vpop.f32.mrf.mxu0
    %v1967 = vadd.f32 0.0, %v1966
    %1968 = vmatmul.bf16.gmra.mxu0 %v1919
    %v1969 = vpop.f32.mrf.mxu0
    %v1970 = vadd.f32 0.0, %v1969
    %v1971 = vpop.f32.mrf.mxu0
    %v1972 = vadd.f32 0.0, %v1971
    %1973 = vmatmul.bf16.gmra.mxu0 %v1922
    %v1974 = vpop.f32.mrf.mxu0
    %v1975 = vadd.f32 0.0, %v1974
    %v1976 = vpop.f32.mrf.mxu0
    %v1977 = vadd.f32 0.0, %v1976
    %1978 = vmatmul.bf16.gmra.mxu0 %v1925
    %v1979 = vpop.f32.mrf.mxu0
    %v1980 = vadd.f32 0.0, %v1979
    %v1981 = vpop.f32.mrf.mxu0
    %v1982 = vadd.f32 0.0, %v1981
    %1983 = vmatmul.bf16.gmra.mxu0 %v1928
    %v1984 = vpop.f32.mrf.mxu0
    %v1985 = vadd.f32 0.0, %v1984
    %v1986 = vpop.f32.mrf.mxu0
    %v1987 = vadd.f32 0.0, %v1986
    %1988 = vdwg.mxu0
    %v1989 = vpack.c.bf16 %v1942, %v1940
    %v1990 = vpack.c.bf16 %v1947, %v1945
    %v1991 = vpack.c.bf16 %v1952, %v1950
    %v1992 = vpack.c.bf16 %v1957, %v1955
    %v1993 = vpack.c.bf16 %v1962, %v1960
    %v1994 = vpack.c.bf16 %v1967, %v1965
    %v1995 = vpack.c.bf16 %v1972, %v1970
    %v1996 = vpack.c.bf16 %v1977, %v1975
    %v1997 = vpack.c.bf16 %v1982, %v1980
    %v1998 = vpack.c.bf16 %v1987, %v1985
    %v1999 = vld [vmem:[%s16] sm:$0xff]
    %v2000 = vld [vmem:[%s16 + $0x8] sm:$0xff]
    %v2001 = vld [vmem:[%s16 + $0x10] sm:$0xff]
    %v2002 = vld [vmem:[%s16 + $0x18] sm:$0xff]
    %v2003 = vld [vmem:[%s16 + $0x20] sm:$0xff]
    %v2004 = vld [vmem:[%s16 + $0x28] sm:$0xff]
    %v2005 = vld [vmem:[%s16 + $0x30] sm:$0xff]
    %v2006 = vld [vmem:[%s16 + $0x38] sm:$0xff]
    %v2007 = vld [vmem:[%s16 + $0x40] sm:$0xff]
    %v2008 = vld [vmem:[%s16 + $0x48] sm:$0xff]
    %v2009 = vld [vmem:[%s16 + $0x50] sm:$0xff]
    %v2010 = vld [vmem:[%s16 + $0x58] sm:$0xff]
    %v2011 = vld [vmem:[%s16 + $0x60] sm:$0xff]
    %v2012 = vld [vmem:[%s16 + $0x68] sm:$0xff]
    %v2013 = vld [vmem:[%s16 + $0x70] sm:$0xff]
    %v2014 = vld [vmem:[%s16 + $0x78] sm:$0xff]
    %v2031 = vunpack.c.l.b16 %v1999
    %v2032 = vunpack.c.h.b16 %v1999
    %v2033 = vunpack.c.l.b16 %v2000
    %v2034 = vunpack.c.h.b16 %v2000
    %v2035 = vunpack.c.l.b16 %v2001
    %v2036 = vunpack.c.h.b16 %v2001
    %v2037 = vunpack.c.l.b16 %v2002
    %v2038 = vunpack.c.h.b16 %v2002
    %v2039 = vunpack.c.l.b16 %v2003
    %v2040 = vunpack.c.h.b16 %v2003
    %v2041 = vunpack.c.l.b16 %v2004
    %v2042 = vunpack.c.h.b16 %v2004
    %v2043 = vunpack.c.l.b16 %v2005
    %v2044 = vunpack.c.h.b16 %v2005
    %v2045 = vunpack.c.l.b16 %v2006
    %v2046 = vunpack.c.h.b16 %v2006
    %v2047 = vunpack.c.l.b16 %v2007
    %v2048 = vunpack.c.h.b16 %v2007
    %v2049 = vunpack.c.l.b16 %v2008
    %v2050 = vunpack.c.h.b16 %v2008
    %v2051 = vunpack.c.l.b16 %v2009
    %v2052 = vunpack.c.h.b16 %v2009
    %v2053 = vunpack.c.l.b16 %v2010
    %v2054 = vunpack.c.h.b16 %v2010
    %v2055 = vunpack.c.l.b16 %v2011
    %v2056 = vunpack.c.h.b16 %v2011
    %v2057 = vunpack.c.l.b16 %v2012
    %v2058 = vunpack.c.h.b16 %v2012
    %v2059 = vunpack.c.l.b16 %v2013
    %v2060 = vunpack.c.h.b16 %v2013
    %v2061 = vunpack.c.l.b16 %v2014
    %v2062 = vunpack.c.h.b16 %v2014
    %v2063 = vpack.c.b16 %v2039, %v2031
    %v2064 = vpack.c.b16 %v2040, %v2032
    %v2065 = vpack.c.b16 %v2041, %v2033
    %v2066 = vpack.c.b16 %v2042, %v2034
    %v2067 = vpack.c.b16 %v2043, %v2035
    %v2068 = vpack.c.b16 %v2044, %v2036
    %v2069 = vpack.c.b16 %v2045, %v2037
    %v2070 = vpack.c.b16 %v2046, %v2038
    %v2071 = vpack.c.b16 %v2055, %v2047
    %v2072 = vpack.c.b16 %v2056, %v2048
    %v2073 = vpack.c.b16 %v2057, %v2049
    %v2074 = vpack.c.b16 %v2058, %v2050
    %v2075 = vpack.c.b16 %v2059, %v2051
    %v2076 = vpack.c.b16 %v2060, %v2052
    %v2077 = vpack.c.b16 %v2061, %v2053
    %v2078 = vpack.c.b16 %v2062, %v2054
    %v2096 = vsel %vm498, %v1989, 0
    %v2099 = vsel %vm498, %v1990, 0
    %v2102 = vsel %vm498, %v1991, 0
    %v2105 = vsel %vm498, %v1992, 0
    %v2108 = vsel %vm498, %v1993, 0
    %v2111 = vsel %vm498, %v1994, 0
    %v2114 = vsel %vm498, %v1995, 0
    %v2117 = vsel %vm498, %v1996, 0
    %v2120 = vsel %vm498, %v1997, 0
    %v2123 = vsel %vm498, %v1998, 0
    %2125 = vmatpush.bf16.msra.mxu0 0
    %2126 = vmatpush.bf16.msra.mxu0 0
    %2127 = vmatpush.bf16.msra.mxu0 0
    %2128 = vmatpush.bf16.msra.mxu0 0
    %2129 = vmatpush.bf16.msra.mxu0 0
    %2130 = vmatpush.bf16.msra.mxu0 0
    %2131 = vmatpush.bf16.msra.mxu0 %v2071
    %2132 = vmatpush.bf16.msra.mxu0 %v2063
    %2133 = vmatmul.bf16.gmra.mxu0 %v2096
    %v2134 = vpop.f32.mrf.mxu0
    %v2135 = vadd.f32 0.0, %v2134
    %v2136 = vpop.f32.mrf.mxu0
    %v2137 = vadd.f32 0.0, %v2136
    %2138 = vmatmul.bf16.gmra.mxu0 %v2099
    %v2139 = vpop.f32.mrf.mxu0
    %v2140 = vadd.f32 0.0, %v2139
    %v2141 = vpop.f32.mrf.mxu0
    %v2142 = vadd.f32 0.0, %v2141
    %2143 = vmatmul.bf16.gmra.mxu0 %v2102
    %v2144 = vpop.f32.mrf.mxu0
    %v2145 = vadd.f32 0.0, %v2144
    %v2146 = vpop.f32.mrf.mxu0
    %v2147 = vadd.f32 0.0, %v2146
    %2148 = vmatmul.bf16.gmra.mxu0 %v2105
    %v2149 = vpop.f32.mrf.mxu0
    %v2150 = vadd.f32 0.0, %v2149
    %v2151 = vpop.f32.mrf.mxu0
    %v2152 = vadd.f32 0.0, %v2151
    %2153 = vmatmul.bf16.gmra.mxu0 %v2108
    %v2154 = vpop.f32.mrf.mxu0
    %v2155 = vadd.f32 0.0, %v2154
    %v2156 = vpop.f32.mrf.mxu0
    %v2157 = vadd.f32 0.0, %v2156
    %2158 = vmatmul.bf16.gmra.mxu0 %v2111
    %v2159 = vpop.f32.mrf.mxu0
    %v2160 = vadd.f32 0.0, %v2159
    %v2161 = vpop.f32.mrf.mxu0
    %v2162 = vadd.f32 0.0, %v2161
    %2163 = vmatmul.bf16.gmra.mxu0 %v2114
    %v2164 = vpop.f32.mrf.mxu0
    %v2165 = vadd.f32 0.0, %v2164
    %v2166 = vpop.f32.mrf.mxu0
    %v2167 = vadd.f32 0.0, %v2166
    %2168 = vmatmul.bf16.gmra.mxu0 %v2117
    %v2169 = vpop.f32.mrf.mxu0
    %v2170 = vadd.f32 0.0, %v2169
    %v2171 = vpop.f32.mrf.mxu0
    %v2172 = vadd.f32 0.0, %v2171
    %2173 = vmatmul.bf16.gmra.mxu0 %v2120
    %v2174 = vpop.f32.mrf.mxu0
    %v2175 = vadd.f32 0.0, %v2174
    %v2176 = vpop.f32.mrf.mxu0
    %v2177 = vadd.f32 0.0, %v2176
    %2178 = vmatmul.bf16.gmra.mxu0 %v2123
    %v2179 = vpop.f32.mrf.mxu0
    %v2180 = vadd.f32 0.0, %v2179
    %v2181 = vpop.f32.mrf.mxu0
    %v2182 = vadd.f32 0.0, %v2181
    %2183 = vdwg.mxu0
    %2184 = vmatpush.bf16.msra.mxu0 0
    %2185 = vmatpush.bf16.msra.mxu0 0
    %2186 = vmatpush.bf16.msra.mxu0 0
    %2187 = vmatpush.bf16.msra.mxu0 0
    %2188 = vmatpush.bf16.msra.mxu0 0
    %2189 = vmatpush.bf16.msra.mxu0 0
    %2190 = vmatpush.bf16.msra.mxu0 %v2072
    %2191 = vmatpush.bf16.msra.mxu0 %v2064
    %2192 = vmatmul.bf16.gmra.mxu0 %v2096
    %v2193 = vpop.f32.mrf.mxu0
    %v2194 = vadd.f32 0.0, %v2193
    %v2195 = vpop.f32.mrf.mxu0
    %v2196 = vadd.f32 0.0, %v2195
    %2197 = vmatmul.bf16.gmra.mxu0 %v2099
    %v2198 = vpop.f32.mrf.mxu0
    %v2199 = vadd.f32 0.0, %v2198
    %v2200 = vpop.f32.mrf.mxu0
    %v2201 = vadd.f32 0.0, %v2200
    %2202 = vmatmul.bf16.gmra.mxu0 %v2102
    %v2203 = vpop.f32.mrf.mxu0
    %v2204 = vadd.f32 0.0, %v2203
    %v2205 = vpop.f32.mrf.mxu0
    %v2206 = vadd.f32 0.0, %v2205
    %2207 = vmatmul.bf16.gmra.mxu0 %v2105
    %v2208 = vpop.f32.mrf.mxu0
    %v2209 = vadd.f32 0.0, %v2208
    %v2210 = vpop.f32.mrf.mxu0
    %v2211 = vadd.f32 0.0, %v2210
    %2212 = vmatmul.bf16.gmra.mxu0 %v2108
    %v2213 = vpop.f32.mrf.mxu0
    %v2214 = vadd.f32 0.0, %v2213
    %v2215 = vpop.f32.mrf.mxu0
    %v2216 = vadd.f32 0.0, %v2215
    %2217 = vmatmul.bf16.gmra.mxu0 %v2111
    %v2218 = vpop.f32.mrf.mxu0
    %v2219 = vadd.f32 0.0, %v2218
    %v2220 = vpop.f32.mrf.mxu0
    %v2221 = vadd.f32 0.0, %v2220
    %2222 = vmatmul.bf16.gmra.mxu0 %v2114
    %v2223 = vpop.f32.mrf.mxu0
    %v2224 = vadd.f32 0.0, %v2223
    %v2225 = vpop.f32.mrf.mxu0
    %v2226 = vadd.f32 0.0, %v2225
    %2227 = vmatmul.bf16.gmra.mxu0 %v2117
    %v2228 = vpop.f32.mrf.mxu0
    %v2229 = vadd.f32 0.0, %v2228
    %v2230 = vpop.f32.mrf.mxu0
    %v2231 = vadd.f32 0.0, %v2230
    %2232 = vmatmul.bf16.gmra.mxu0 %v2120
    %v2233 = vpop.f32.mrf.mxu0
    %v2234 = vadd.f32 0.0, %v2233
    %v2235 = vpop.f32.mrf.mxu0
    %v2236 = vadd.f32 0.0, %v2235
    %2237 = vmatmul.bf16.gmra.mxu0 %v2123
    %v2238 = vpop.f32.mrf.mxu0
    %v2239 = vadd.f32 0.0, %v2238
    %v2240 = vpop.f32.mrf.mxu0
    %v2241 = vadd.f32 0.0, %v2240
    %2242 = vdwg.mxu0
    %2243 = vmatpush.bf16.msra.mxu0 0
    %2244 = vmatpush.bf16.msra.mxu0 0
    %2245 = vmatpush.bf16.msra.mxu0 0
    %2246 = vmatpush.bf16.msra.mxu0 0
    %2247 = vmatpush.bf16.msra.mxu0 0
    %2248 = vmatpush.bf16.msra.mxu0 0
    %2249 = vmatpush.bf16.msra.mxu0 %v2073
    %2250 = vmatpush.bf16.msra.mxu0 %v2065
    %2251 = vmatmul.bf16.gmra.mxu0 %v2096
    %v2252 = vpop.f32.mrf.mxu0
    %v2253 = vadd.f32 0.0, %v2252
    %v2254 = vpop.f32.mrf.mxu0
    %v2255 = vadd.f32 0.0, %v2254
    %2256 = vmatmul.bf16.gmra.mxu0 %v2099
    %v2257 = vpop.f32.mrf.mxu0
    %v2258 = vadd.f32 0.0, %v2257
    %v2259 = vpop.f32.mrf.mxu0
    %v2260 = vadd.f32 0.0, %v2259
    %2261 = vmatmul.bf16.gmra.mxu0 %v2102
    %v2262 = vpop.f32.mrf.mxu0
    %v2263 = vadd.f32 0.0, %v2262
    %v2264 = vpop.f32.mrf.mxu0
    %v2265 = vadd.f32 0.0, %v2264
    %2266 = vmatmul.bf16.gmra.mxu0 %v2105
    %v2267 = vpop.f32.mrf.mxu0
    %v2268 = vadd.f32 0.0, %v2267
    %v2269 = vpop.f32.mrf.mxu0
    %v2270 = vadd.f32 0.0, %v2269
    %2271 = vmatmul.bf16.gmra.mxu0 %v2108
    %v2272 = vpop.f32.mrf.mxu0
    %v2273 = vadd.f32 0.0, %v2272
    %v2274 = vpop.f32.mrf.mxu0
    %v2275 = vadd.f32 0.0, %v2274
    %2276 = vmatmul.bf16.gmra.mxu0 %v2111
    %v2277 = vpop.f32.mrf.mxu0
    %v2278 = vadd.f32 0.0, %v2277
    %v2279 = vpop.f32.mrf.mxu0
    %v2280 = vadd.f32 0.0, %v2279
    %2281 = vmatmul.bf16.gmra.mxu0 %v2114
    %v2282 = vpop.f32.mrf.mxu0
    %v2283 = vadd.f32 0.0, %v2282
    %v2284 = vpop.f32.mrf.mxu0
    %v2285 = vadd.f32 0.0, %v2284
    %2286 = vmatmul.bf16.gmra.mxu0 %v2117
    %v2287 = vpop.f32.mrf.mxu0
    %v2288 = vadd.f32 0.0, %v2287
    %v2289 = vpop.f32.mrf.mxu0
    %v2290 = vadd.f32 0.0, %v2289
    %2291 = vmatmul.bf16.gmra.mxu0 %v2120
    %v2292 = vpop.f32.mrf.mxu0
    %v2293 = vadd.f32 0.0, %v2292
    %v2294 = vpop.f32.mrf.mxu0
    %v2295 = vadd.f32 0.0, %v2294
    %2296 = vmatmul.bf16.gmra.mxu0 %v2123
    %v2297 = vpop.f32.mrf.mxu0
    %v2298 = vadd.f32 0.0, %v2297
    %v2299 = vpop.f32.mrf.mxu0
    %v2300 = vadd.f32 0.0, %v2299
    %2301 = vdwg.mxu0
    %2302 = vmatpush.bf16.msra.mxu0 0
    %2303 = vmatpush.bf16.msra.mxu0 0
    %2304 = vmatpush.bf16.msra.mxu0 0
    %2305 = vmatpush.bf16.msra.mxu0 0
    %2306 = vmatpush.bf16.msra.mxu0 0
    %2307 = vmatpush.bf16.msra.mxu0 0
    %2308 = vmatpush.bf16.msra.mxu0 %v2074
    %2309 = vmatpush.bf16.msra.mxu0 %v2066
    %2310 = vmatmul.bf16.gmra.mxu0 %v2096
    %v2311 = vpop.f32.mrf.mxu0
    %v2312 = vadd.f32 0.0, %v2311
    %v2313 = vpop.f32.mrf.mxu0
    %v2314 = vadd.f32 0.0, %v2313
    %2315 = vmatmul.bf16.gmra.mxu0 %v2099
    %v2316 = vpop.f32.mrf.mxu0
    %v2317 = vadd.f32 0.0, %v2316
    %v2318 = vpop.f32.mrf.mxu0
    %v2319 = vadd.f32 0.0, %v2318
    %2320 = vmatmul.bf16.gmra.mxu0 %v2102
    %v2321 = vpop.f32.mrf.mxu0
    %v2322 = vadd.f32 0.0, %v2321
    %v2323 = vpop.f32.mrf.mxu0
    %v2324 = vadd.f32 0.0, %v2323
    %2325 = vmatmul.bf16.gmra.mxu0 %v2105
    %v2326 = vpop.f32.mrf.mxu0
    %v2327 = vadd.f32 0.0, %v2326
    %v2328 = vpop.f32.mrf.mxu0
    %v2329 = vadd.f32 0.0, %v2328
    %2330 = vmatmul.bf16.gmra.mxu0 %v2108
    %v2331 = vpop.f32.mrf.mxu0
    %v2332 = vadd.f32 0.0, %v2331
    %v2333 = vpop.f32.mrf.mxu0
    %v2334 = vadd.f32 0.0, %v2333
    %2335 = vmatmul.bf16.gmra.mxu0 %v2111
    %v2336 = vpop.f32.mrf.mxu0
    %v2337 = vadd.f32 0.0, %v2336
    %v2338 = vpop.f32.mrf.mxu0
    %v2339 = vadd.f32 0.0, %v2338
    %2340 = vmatmul.bf16.gmra.mxu0 %v2114
    %v2341 = vpop.f32.mrf.mxu0
    %v2342 = vadd.f32 0.0, %v2341
    %v2343 = vpop.f32.mrf.mxu0
    %v2344 = vadd.f32 0.0, %v2343
    %2345 = vmatmul.bf16.gmra.mxu0 %v2117
    %v2346 = vpop.f32.mrf.mxu0
    %v2347 = vadd.f32 0.0, %v2346
    %v2348 = vpop.f32.mrf.mxu0
    %v2349 = vadd.f32 0.0, %v2348
    %2350 = vmatmul.bf16.gmra.mxu0 %v2120
    %v2351 = vpop.f32.mrf.mxu0
    %v2352 = vadd.f32 0.0, %v2351
    %v2353 = vpop.f32.mrf.mxu0
    %v2354 = vadd.f32 0.0, %v2353
    %2355 = vmatmul.bf16.gmra.mxu0 %v2123
    %v2356 = vpop.f32.mrf.mxu0
    %v2357 = vadd.f32 0.0, %v2356
    %v2358 = vpop.f32.mrf.mxu0
    %v2359 = vadd.f32 0.0, %v2358
    %2360 = vdwg.mxu0
    %2361 = vmatpush.bf16.msra.mxu0 0
    %2362 = vmatpush.bf16.msra.mxu0 0
    %2363 = vmatpush.bf16.msra.mxu0 0
    %2364 = vmatpush.bf16.msra.mxu0 0
    %2365 = vmatpush.bf16.msra.mxu0 0
    %2366 = vmatpush.bf16.msra.mxu0 0
    %2367 = vmatpush.bf16.msra.mxu0 %v2075
    %2368 = vmatpush.bf16.msra.mxu0 %v2067
    %2369 = vmatmul.bf16.gmra.mxu0 %v2096
    %v2370 = vpop.f32.mrf.mxu0
    %v2371 = vadd.f32 0.0, %v2370
    %v2372 = vpop.f32.mrf.mxu0
    %v2373 = vadd.f32 0.0, %v2372
    %2374 = vmatmul.bf16.gmra.mxu0 %v2099
    %v2375 = vpop.f32.mrf.mxu0
    %v2376 = vadd.f32 0.0, %v2375
    %v2377 = vpop.f32.mrf.mxu0
    %v2378 = vadd.f32 0.0, %v2377
    %2379 = vmatmul.bf16.gmra.mxu0 %v2102
    %v2380 = vpop.f32.mrf.mxu0
    %v2381 = vadd.f32 0.0, %v2380
    %v2382 = vpop.f32.mrf.mxu0
    %v2383 = vadd.f32 0.0, %v2382
    %2384 = vmatmul.bf16.gmra.mxu0 %v2105
    %v2385 = vpop.f32.mrf.mxu0
    %v2386 = vadd.f32 0.0, %v2385
    %v2387 = vpop.f32.mrf.mxu0
    %v2388 = vadd.f32 0.0, %v2387
    %2389 = vmatmul.bf16.gmra.mxu0 %v2108
    %v2390 = vpop.f32.mrf.mxu0
    %v2391 = vadd.f32 0.0, %v2390
    %v2392 = vpop.f32.mrf.mxu0
    %v2393 = vadd.f32 0.0, %v2392
    %2394 = vmatmul.bf16.gmra.mxu0 %v2111
    %v2395 = vpop.f32.mrf.mxu0
    %v2396 = vadd.f32 0.0, %v2395
    %v2397 = vpop.f32.mrf.mxu0
    %v2398 = vadd.f32 0.0, %v2397
    %2399 = vmatmul.bf16.gmra.mxu0 %v2114
    %v2400 = vpop.f32.mrf.mxu0
    %v2401 = vadd.f32 0.0, %v2400
    %v2402 = vpop.f32.mrf.mxu0
    %v2403 = vadd.f32 0.0, %v2402
    %2404 = vmatmul.bf16.gmra.mxu0 %v2117
    %v2405 = vpop.f32.mrf.mxu0
    %v2406 = vadd.f32 0.0, %v2405
    %v2407 = vpop.f32.mrf.mxu0
    %v2408 = vadd.f32 0.0, %v2407
    %2409 = vmatmul.bf16.gmra.mxu0 %v2120
    %v2410 = vpop.f32.mrf.mxu0
    %v2411 = vadd.f32 0.0, %v2410
    %v2412 = vpop.f32.mrf.mxu0
    %v2413 = vadd.f32 0.0, %v2412
    %2414 = vmatmul.bf16.gmra.mxu0 %v2123
    %v2415 = vpop.f32.mrf.mxu0
    %v2416 = vadd.f32 0.0, %v2415
    %v2417 = vpop.f32.mrf.mxu0
    %v2418 = vadd.f32 0.0, %v2417
    %2419 = vdwg.mxu0
    %2420 = vmatpush.bf16.msra.mxu0 0
    %2421 = vmatpush.bf16.msra.mxu0 0
    %2422 = vmatpush.bf16.msra.mxu0 0
    %2423 = vmatpush.bf16.msra.mxu0 0
    %2424 = vmatpush.bf16.msra.mxu0 0
    %2425 = vmatpush.bf16.msra.mxu0 0
    %2426 = vmatpush.bf16.msra.mxu0 %v2076
    %2427 = vmatpush.bf16.msra.mxu0 %v2068
    %2428 = vmatmul.bf16.gmra.mxu0 %v2096
    %v2429 = vpop.f32.mrf.mxu0
    %v2430 = vadd.f32 0.0, %v2429
    %v2431 = vpop.f32.mrf.mxu0
    %v2432 = vadd.f32 0.0, %v2431
    %2433 = vmatmul.bf16.gmra.mxu0 %v2099
    %v2434 = vpop.f32.mrf.mxu0
    %v2435 = vadd.f32 0.0, %v2434
    %v2436 = vpop.f32.mrf.mxu0
    %v2437 = vadd.f32 0.0, %v2436
    %2438 = vmatmul.bf16.gmra.mxu0 %v2102
    %v2439 = vpop.f32.mrf.mxu0
    %v2440 = vadd.f32 0.0, %v2439
    %v2441 = vpop.f32.mrf.mxu0
    %v2442 = vadd.f32 0.0, %v2441
    %2443 = vmatmul.bf16.gmra.mxu0 %v2105
    %v2444 = vpop.f32.mrf.mxu0
    %v2445 = vadd.f32 0.0, %v2444
    %v2446 = vpop.f32.mrf.mxu0
    %v2447 = vadd.f32 0.0, %v2446
    %2448 = vmatmul.bf16.gmra.mxu0 %v2108
    %v2449 = vpop.f32.mrf.mxu0
    %v2450 = vadd.f32 0.0, %v2449
    %v2451 = vpop.f32.mrf.mxu0
    %v2452 = vadd.f32 0.0, %v2451
    %2453 = vmatmul.bf16.gmra.mxu0 %v2111
    %v2454 = vpop.f32.mrf.mxu0
    %v2455 = vadd.f32 0.0, %v2454
    %v2456 = vpop.f32.mrf.mxu0
    %v2457 = vadd.f32 0.0, %v2456
    %2458 = vmatmul.bf16.gmra.mxu0 %v2114
    %v2459 = vpop.f32.mrf.mxu0
    %v2460 = vadd.f32 0.0, %v2459
    %v2461 = vpop.f32.mrf.mxu0
    %v2462 = vadd.f32 0.0, %v2461
    %2463 = vmatmul.bf16.gmra.mxu0 %v2117
    %v2464 = vpop.f32.mrf.mxu0
    %v2465 = vadd.f32 0.0, %v2464
    %v2466 = vpop.f32.mrf.mxu0
    %v2467 = vadd.f32 0.0, %v2466
    %2468 = vmatmul.bf16.gmra.mxu0 %v2120
    %v2469 = vpop.f32.mrf.mxu0
    %v2470 = vadd.f32 0.0, %v2469
    %v2471 = vpop.f32.mrf.mxu0
    %v2472 = vadd.f32 0.0, %v2471
    %2473 = vmatmul.bf16.gmra.mxu0 %v2123
    %v2474 = vpop.f32.mrf.mxu0
    %v2475 = vadd.f32 0.0, %v2474
    %v2476 = vpop.f32.mrf.mxu0
    %v2477 = vadd.f32 0.0, %v2476
    %2478 = vdwg.mxu0
    %2479 = vmatpush.bf16.msra.mxu0 0
    %2480 = vmatpush.bf16.msra.mxu0 0
    %2481 = vmatpush.bf16.msra.mxu0 0
    %2482 = vmatpush.bf16.msra.mxu0 0
    %2483 = vmatpush.bf16.msra.mxu0 0
    %2484 = vmatpush.bf16.msra.mxu0 0
    %2485 = vmatpush.bf16.msra.mxu0 %v2077
    %2486 = vmatpush.bf16.msra.mxu0 %v2069
    %2487 = vmatmul.bf16.gmra.mxu0 %v2096
    %v2488 = vpop.f32.mrf.mxu0
    %v2489 = vadd.f32 0.0, %v2488
    %v2490 = vpop.f32.mrf.mxu0
    %v2491 = vadd.f32 0.0, %v2490
    %2492 = vmatmul.bf16.gmra.mxu0 %v2099
    %v2493 = vpop.f32.mrf.mxu0
    %v2494 = vadd.f32 0.0, %v2493
    %v2495 = vpop.f32.mrf.mxu0
    %v2496 = vadd.f32 0.0, %v2495
    %2497 = vmatmul.bf16.gmra.mxu0 %v2102
    %v2498 = vpop.f32.mrf.mxu0
    %v2499 = vadd.f32 0.0, %v2498
    %v2500 = vpop.f32.mrf.mxu0
    %v2501 = vadd.f32 0.0, %v2500
    %2502 = vmatmul.bf16.gmra.mxu0 %v2105
    %v2503 = vpop.f32.mrf.mxu0
    %v2504 = vadd.f32 0.0, %v2503
    %v2505 = vpop.f32.mrf.mxu0
    %v2506 = vadd.f32 0.0, %v2505
    %2507 = vmatmul.bf16.gmra.mxu0 %v2108
    %v2508 = vpop.f32.mrf.mxu0
    %v2509 = vadd.f32 0.0, %v2508
    %v2510 = vpop.f32.mrf.mxu0
    %v2511 = vadd.f32 0.0, %v2510
    %2512 = vmatmul.bf16.gmra.mxu0 %v2111
    %v2513 = vpop.f32.mrf.mxu0
    %v2514 = vadd.f32 0.0, %v2513
    %v2515 = vpop.f32.mrf.mxu0
    %v2516 = vadd.f32 0.0, %v2515
    %2517 = vmatmul.bf16.gmra.mxu0 %v2114
    %v2518 = vpop.f32.mrf.mxu0
    %v2519 = vadd.f32 0.0, %v2518
    %v2520 = vpop.f32.mrf.mxu0
    %v2521 = vadd.f32 0.0, %v2520
    %2522 = vmatmul.bf16.gmra.mxu0 %v2117
    %v2523 = vpop.f32.mrf.mxu0
    %v2524 = vadd.f32 0.0, %v2523
    %v2525 = vpop.f32.mrf.mxu0
    %v2526 = vadd.f32 0.0, %v2525
    %2527 = vmatmul.bf16.gmra.mxu0 %v2120
    %v2528 = vpop.f32.mrf.mxu0
    %v2529 = vadd.f32 0.0, %v2528
    %v2530 = vpop.f32.mrf.mxu0
    %v2531 = vadd.f32 0.0, %v2530
    %2532 = vmatmul.bf16.gmra.mxu0 %v2123
    %v2533 = vpop.f32.mrf.mxu0
    %v2534 = vadd.f32 0.0, %v2533
    %v2535 = vpop.f32.mrf.mxu0
    %v2536 = vadd.f32 0.0, %v2535
    %2537 = vdwg.mxu0
    %2538 = vmatpush.bf16.msra.mxu0 0
    %2539 = vmatpush.bf16.msra.mxu0 0
    %2540 = vmatpush.bf16.msra.mxu0 0
    %2541 = vmatpush.bf16.msra.mxu0 0
    %2542 = vmatpush.bf16.msra.mxu0 0
    %2543 = vmatpush.bf16.msra.mxu0 0
    %2544 = vmatpush.bf16.msra.mxu0 %v2078
    %2545 = vmatpush.bf16.msra.mxu0 %v2070
    %2546 = vmatmul.bf16.gmra.mxu0 %v2096
    %v2547 = vpop.f32.mrf.mxu0
    %v2548 = vadd.f32 0.0, %v2547
    %v2549 = vpop.f32.mrf.mxu0
    %v2550 = vadd.f32 0.0, %v2549
    %2551 = vmatmul.bf16.gmra.mxu0 %v2099
    %v2552 = vpop.f32.mrf.mxu0
    %v2553 = vadd.f32 0.0, %v2552
    %v2554 = vpop.f32.mrf.mxu0
    %v2555 = vadd.f32 0.0, %v2554
    %2556 = vmatmul.bf16.gmra.mxu0 %v2102
    %v2557 = vpop.f32.mrf.mxu0
    %v2558 = vadd.f32 0.0, %v2557
    %v2559 = vpop.f32.mrf.mxu0
    %v2560 = vadd.f32 0.0, %v2559
    %2561 = vmatmul.bf16.gmra.mxu0 %v2105
    %v2562 = vpop.f32.mrf.mxu0
    %v2563 = vadd.f32 0.0, %v2562
    %v2564 = vpop.f32.mrf.mxu0
    %v2565 = vadd.f32 0.0, %v2564
    %2566 = vmatmul.bf16.gmra.mxu0 %v2108
    %v2567 = vpop.f32.mrf.mxu0
    %v2568 = vadd.f32 0.0, %v2567
    %v2569 = vpop.f32.mrf.mxu0
    %v2570 = vadd.f32 0.0, %v2569
    %2571 = vmatmul.bf16.gmra.mxu0 %v2111
    %v2572 = vpop.f32.mrf.mxu0
    %v2573 = vadd.f32 0.0, %v2572
    %v2574 = vpop.f32.mrf.mxu0
    %v2575 = vadd.f32 0.0, %v2574
    %2576 = vmatmul.bf16.gmra.mxu0 %v2114
    %v2577 = vpop.f32.mrf.mxu0
    %v2578 = vadd.f32 0.0, %v2577
    %v2579 = vpop.f32.mrf.mxu0
    %v2580 = vadd.f32 0.0, %v2579
    %2581 = vmatmul.bf16.gmra.mxu0 %v2117
    %v2582 = vpop.f32.mrf.mxu0
    %v2583 = vadd.f32 0.0, %v2582
    %v2584 = vpop.f32.mrf.mxu0
    %v2585 = vadd.f32 0.0, %v2584
    %2586 = vmatmul.bf16.gmra.mxu0 %v2120
    %v2587 = vpop.f32.mrf.mxu0
    %v2588 = vadd.f32 0.0, %v2587
    %v2589 = vpop.f32.mrf.mxu0
    %v2590 = vadd.f32 0.0, %v2589
    %2591 = vmatmul.bf16.gmra.mxu0 %v2123
    %v2592 = vpop.f32.mrf.mxu0
    %v2593 = vadd.f32 0.0, %v2592
    %v2594 = vpop.f32.mrf.mxu0
    %v2595 = vadd.f32 0.0, %v2594
    %2596 = vdwg.mxu0
    %v2597 = vpack.c.bf16 %v1807, %v1806
    %v2598 = vpack.c.bf16 %v1809, %v1808
    %v2599 = vpack.c.bf16 %v1811, %v1810
    %v2600 = vpack.c.bf16 %v1813, %v1812
    %v2601 = vpack.c.bf16 %v1815, %v1814
    %v2602 = vpack.c.bf16 %v1817, %v1816
    %v2603 = vpack.c.bf16 %v1819, %v1818
    %v2604 = vpack.c.bf16 %v1821, %v1820
    %v2605 = vpack.c.bf16 %v1823, %v1822
    %v2606 = vpack.c.bf16 %v1825, %v1824
    %v2607 = vld [vmem:[%s17] sm:$0xff]
    %v2608 = vld [vmem:[%s17 + $0x8] sm:$0xff]
    %v2609 = vld [vmem:[%s17 + $0x10] sm:$0xff]
    %v2610 = vld [vmem:[%s17 + $0x18] sm:$0xff]
    %v2611 = vld [vmem:[%s17 + $0x20] sm:$0xff]
    %v2612 = vld [vmem:[%s17 + $0x28] sm:$0xff]
    %v2613 = vld [vmem:[%s17 + $0x30] sm:$0xff]
    %v2614 = vld [vmem:[%s17 + $0x38] sm:$0xff]
    %v2615 = vld [vmem:[%s17 + $0x40] sm:$0xff]
    %v2616 = vld [vmem:[%s17 + $0x48] sm:$0xff]
    %v2617 = vld [vmem:[%s17 + $0x50] sm:$0xff]
    %v2618 = vld [vmem:[%s17 + $0x58] sm:$0xff]
    %v2619 = vld [vmem:[%s17 + $0x60] sm:$0xff]
    %v2620 = vld [vmem:[%s17 + $0x68] sm:$0xff]
    %v2621 = vld [vmem:[%s17 + $0x70] sm:$0xff]
    %v2622 = vld [vmem:[%s17 + $0x78] sm:$0xff]
    %v2639 = vunpack.c.l.b16 %v2607
    %v2640 = vunpack.c.h.b16 %v2607
    %v2641 = vunpack.c.l.b16 %v2608
    %v2642 = vunpack.c.h.b16 %v2608
    %v2643 = vunpack.c.l.b16 %v2609
    %v2644 = vunpack.c.h.b16 %v2609
    %v2645 = vunpack.c.l.b16 %v2610
    %v2646 = vunpack.c.h.b16 %v2610
    %v2647 = vunpack.c.l.b16 %v2611
    %v2648 = vunpack.c.h.b16 %v2611
    %v2649 = vunpack.c.l.b16 %v2612
    %v2650 = vunpack.c.h.b16 %v2612
    %v2651 = vunpack.c.l.b16 %v2613
    %v2652 = vunpack.c.h.b16 %v2613
    %v2653 = vunpack.c.l.b16 %v2614
    %v2654 = vunpack.c.h.b16 %v2614
    %v2655 = vunpack.c.l.b16 %v2615
    %v2656 = vunpack.c.h.b16 %v2615
    %v2657 = vunpack.c.l.b16 %v2616
    %v2658 = vunpack.c.h.b16 %v2616
    %v2659 = vunpack.c.l.b16 %v2617
    %v2660 = vunpack.c.h.b16 %v2617
    %v2661 = vunpack.c.l.b16 %v2618
    %v2662 = vunpack.c.h.b16 %v2618
    %v2663 = vunpack.c.l.b16 %v2619
    %v2664 = vunpack.c.h.b16 %v2619
    %v2665 = vunpack.c.l.b16 %v2620
    %v2666 = vunpack.c.h.b16 %v2620
    %v2667 = vunpack.c.l.b16 %v2621
    %v2668 = vunpack.c.h.b16 %v2621
    %v2669 = vunpack.c.l.b16 %v2622
    %v2670 = vunpack.c.h.b16 %v2622
    %v2671 = vpack.c.b16 %v2647, %v2639
    %v2672 = vpack.c.b16 %v2648, %v2640
    %v2673 = vpack.c.b16 %v2649, %v2641
    %v2674 = vpack.c.b16 %v2650, %v2642
    %v2675 = vpack.c.b16 %v2651, %v2643
    %v2676 = vpack.c.b16 %v2652, %v2644
    %v2677 = vpack.c.b16 %v2653, %v2645
    %v2678 = vpack.c.b16 %v2654, %v2646
    %v2679 = vpack.c.b16 %v2663, %v2655
    %v2680 = vpack.c.b16 %v2664, %v2656
    %v2681 = vpack.c.b16 %v2665, %v2657
    %v2682 = vpack.c.b16 %v2666, %v2658
    %v2683 = vpack.c.b16 %v2667, %v2659
    %v2684 = vpack.c.b16 %v2668, %v2660
    %v2685 = vpack.c.b16 %v2669, %v2661
    %v2686 = vpack.c.b16 %v2670, %v2662
    %v2704 = vsel %vm498, %v2597, 0
    %v2707 = vsel %vm498, %v2598, 0
    %v2710 = vsel %vm498, %v2599, 0
    %v2713 = vsel %vm498, %v2600, 0
    %v2716 = vsel %vm498, %v2601, 0
    %v2719 = vsel %vm498, %v2602, 0
    %v2722 = vsel %vm498, %v2603, 0
    %v2725 = vsel %vm498, %v2604, 0
    %v2728 = vsel %vm498, %v2605, 0
    %v2731 = vsel %vm498, %v2606, 0
    %2733 = vmatpush.bf16.msra.mxu0 0
    %2734 = vmatpush.bf16.msra.mxu0 0
    %2735 = vmatpush.bf16.msra.mxu0 0
    %2736 = vmatpush.bf16.msra.mxu0 0
    %2737 = vmatpush.bf16.msra.mxu0 0
    %2738 = vmatpush.bf16.msra.mxu0 0
    %2739 = vmatpush.bf16.msra.mxu0 %v2679
    %2740 = vmatpush.bf16.msra.mxu0 %v2671
    %2741 = vmatmul.bf16.gmra.mxu0 %v2704
    %v2742 = vpop.f32.mrf.mxu0
    %v2743 = vadd.f32 0.0, %v2742
    %v2744 = vpop.f32.mrf.mxu0
    %v2745 = vadd.f32 0.0, %v2744
    %2746 = vmatmul.bf16.gmra.mxu0 %v2707
    %v2747 = vpop.f32.mrf.mxu0
    %v2748 = vadd.f32 0.0, %v2747
    %v2749 = vpop.f32.mrf.mxu0
    %v2750 = vadd.f32 0.0, %v2749
    %2751 = vmatmul.bf16.gmra.mxu0 %v2710
    %v2752 = vpop.f32.mrf.mxu0
    %v2753 = vadd.f32 0.0, %v2752
    %v2754 = vpop.f32.mrf.mxu0
    %v2755 = vadd.f32 0.0, %v2754
    %2756 = vmatmul.bf16.gmra.mxu0 %v2713
    %v2757 = vpop.f32.mrf.mxu0
    %v2758 = vadd.f32 0.0, %v2757
    %v2759 = vpop.f32.mrf.mxu0
    %v2760 = vadd.f32 0.0, %v2759
    %2761 = vmatmul.bf16.gmra.mxu0 %v2716
    %v2762 = vpop.f32.mrf.mxu0
    %v2763 = vadd.f32 0.0, %v2762
    %v2764 = vpop.f32.mrf.mxu0
    %v2765 = vadd.f32 0.0, %v2764
    %2766 = vmatmul.bf16.gmra.mxu0 %v2719
    %v2767 = vpop.f32.mrf.mxu0
    %v2768 = vadd.f32 0.0, %v2767
    %v2769 = vpop.f32.mrf.mxu0
    %v2770 = vadd.f32 0.0, %v2769
    %2771 = vmatmul.bf16.gmra.mxu0 %v2722
    %v2772 = vpop.f32.mrf.mxu0
    %v2773 = vadd.f32 0.0, %v2772
    %v2774 = vpop.f32.mrf.mxu0
    %v2775 = vadd.f32 0.0, %v2774
    %2776 = vmatmul.bf16.gmra.mxu0 %v2725
    %v2777 = vpop.f32.mrf.mxu0
    %v2778 = vadd.f32 0.0, %v2777
    %v2779 = vpop.f32.mrf.mxu0
    %v2780 = vadd.f32 0.0, %v2779
    %2781 = vmatmul.bf16.gmra.mxu0 %v2728
    %v2782 = vpop.f32.mrf.mxu0
    %v2783 = vadd.f32 0.0, %v2782
    %v2784 = vpop.f32.mrf.mxu0
    %v2785 = vadd.f32 0.0, %v2784
    %2786 = vmatmul.bf16.gmra.mxu0 %v2731
    %v2787 = vpop.f32.mrf.mxu0
    %v2788 = vadd.f32 0.0, %v2787
    %v2789 = vpop.f32.mrf.mxu0
    %v2790 = vadd.f32 0.0, %v2789
    %2791 = vdwg.mxu0
    %2792 = vmatpush.bf16.msra.mxu0 0
    %2793 = vmatpush.bf16.msra.mxu0 0
    %2794 = vmatpush.bf16.msra.mxu0 0
    %2795 = vmatpush.bf16.msra.mxu0 0
    %2796 = vmatpush.bf16.msra.mxu0 0
    %2797 = vmatpush.bf16.msra.mxu0 0
    %2798 = vmatpush.bf16.msra.mxu0 %v2680
    %2799 = vmatpush.bf16.msra.mxu0 %v2672
    %2800 = vmatmul.bf16.gmra.mxu0 %v2704
    %v2801 = vpop.f32.mrf.mxu0
    %v2802 = vadd.f32 0.0, %v2801
    %v2803 = vpop.f32.mrf.mxu0
    %v2804 = vadd.f32 0.0, %v2803
    %2805 = vmatmul.bf16.gmra.mxu0 %v2707
    %v2806 = vpop.f32.mrf.mxu0
    %v2807 = vadd.f32 0.0, %v2806
    %v2808 = vpop.f32.mrf.mxu0
    %v2809 = vadd.f32 0.0, %v2808
    %2810 = vmatmul.bf16.gmra.mxu0 %v2710
    %v2811 = vpop.f32.mrf.mxu0
    %v2812 = vadd.f32 0.0, %v2811
    %v2813 = vpop.f32.mrf.mxu0
    %v2814 = vadd.f32 0.0, %v2813
    %2815 = vmatmul.bf16.gmra.mxu0 %v2713
    %v2816 = vpop.f32.mrf.mxu0
    %v2817 = vadd.f32 0.0, %v2816
    %v2818 = vpop.f32.mrf.mxu0
    %v2819 = vadd.f32 0.0, %v2818
    %2820 = vmatmul.bf16.gmra.mxu0 %v2716
    %v2821 = vpop.f32.mrf.mxu0
    %v2822 = vadd.f32 0.0, %v2821
    %v2823 = vpop.f32.mrf.mxu0
    %v2824 = vadd.f32 0.0, %v2823
    %2825 = vmatmul.bf16.gmra.mxu0 %v2719
    %v2826 = vpop.f32.mrf.mxu0
    %v2827 = vadd.f32 0.0, %v2826
    %v2828 = vpop.f32.mrf.mxu0
    %v2829 = vadd.f32 0.0, %v2828
    %2830 = vmatmul.bf16.gmra.mxu0 %v2722
    %v2831 = vpop.f32.mrf.mxu0
    %v2832 = vadd.f32 0.0, %v2831
    %v2833 = vpop.f32.mrf.mxu0
    %v2834 = vadd.f32 0.0, %v2833
    %2835 = vmatmul.bf16.gmra.mxu0 %v2725
    %v2836 = vpop.f32.mrf.mxu0
    %v2837 = vadd.f32 0.0, %v2836
    %v2838 = vpop.f32.mrf.mxu0
    %v2839 = vadd.f32 0.0, %v2838
    %2840 = vmatmul.bf16.gmra.mxu0 %v2728
    %v2841 = vpop.f32.mrf.mxu0
    %v2842 = vadd.f32 0.0, %v2841
    %v2843 = vpop.f32.mrf.mxu0
    %v2844 = vadd.f32 0.0, %v2843
    %2845 = vmatmul.bf16.gmra.mxu0 %v2731
    %v2846 = vpop.f32.mrf.mxu0
    %v2847 = vadd.f32 0.0, %v2846
    %v2848 = vpop.f32.mrf.mxu0
    %v2849 = vadd.f32 0.0, %v2848
    %2850 = vdwg.mxu0
    %2851 = vmatpush.bf16.msra.mxu0 0
    %2852 = vmatpush.bf16.msra.mxu0 0
    %2853 = vmatpush.bf16.msra.mxu0 0
    %2854 = vmatpush.bf16.msra.mxu0 0
    %2855 = vmatpush.bf16.msra.mxu0 0
    %2856 = vmatpush.bf16.msra.mxu0 0
    %2857 = vmatpush.bf16.msra.mxu0 %v2681
    %2858 = vmatpush.bf16.msra.mxu0 %v2673
    %2859 = vmatmul.bf16.gmra.mxu0 %v2704
    %v2860 = vpop.f32.mrf.mxu0
    %v2861 = vadd.f32 0.0, %v2860
    %v2862 = vpop.f32.mrf.mxu0
    %v2863 = vadd.f32 0.0, %v2862
    %2864 = vmatmul.bf16.gmra.mxu0 %v2707
    %v2865 = vpop.f32.mrf.mxu0
    %v2866 = vadd.f32 0.0, %v2865
    %v2867 = vpop.f32.mrf.mxu0
    %v2868 = vadd.f32 0.0, %v2867
    %2869 = vmatmul.bf16.gmra.mxu0 %v2710
    %v2870 = vpop.f32.mrf.mxu0
    %v2871 = vadd.f32 0.0, %v2870
    %v2872 = vpop.f32.mrf.mxu0
    %v2873 = vadd.f32 0.0, %v2872
    %2874 = vmatmul.bf16.gmra.mxu0 %v2713
    %v2875 = vpop.f32.mrf.mxu0
    %v2876 = vadd.f32 0.0, %v2875
    %v2877 = vpop.f32.mrf.mxu0
    %v2878 = vadd.f32 0.0, %v2877
    %2879 = vmatmul.bf16.gmra.mxu0 %v2716
    %v2880 = vpop.f32.mrf.mxu0
    %v2881 = vadd.f32 0.0, %v2880
    %v2882 = vpop.f32.mrf.mxu0
    %v2883 = vadd.f32 0.0, %v2882
    %2884 = vmatmul.bf16.gmra.mxu0 %v2719
    %v2885 = vpop.f32.mrf.mxu0
    %v2886 = vadd.f32 0.0, %v2885
    %v2887 = vpop.f32.mrf.mxu0
    %v2888 = vadd.f32 0.0, %v2887
    %2889 = vmatmul.bf16.gmra.mxu0 %v2722
    %v2890 = vpop.f32.mrf.mxu0
    %v2891 = vadd.f32 0.0, %v2890
    %v2892 = vpop.f32.mrf.mxu0
    %v2893 = vadd.f32 0.0, %v2892
    %2894 = vmatmul.bf16.gmra.mxu0 %v2725
    %v2895 = vpop.f32.mrf.mxu0
    %v2896 = vadd.f32 0.0, %v2895
    %v2897 = vpop.f32.mrf.mxu0
    %v2898 = vadd.f32 0.0, %v2897
    %2899 = vmatmul.bf16.gmra.mxu0 %v2728
    %v2900 = vpop.f32.mrf.mxu0
    %v2901 = vadd.f32 0.0, %v2900
    %v2902 = vpop.f32.mrf.mxu0
    %v2903 = vadd.f32 0.0, %v2902
    %2904 = vmatmul.bf16.gmra.mxu0 %v2731
    %v2905 = vpop.f32.mrf.mxu0
    %v2906 = vadd.f32 0.0, %v2905
    %v2907 = vpop.f32.mrf.mxu0
    %v2908 = vadd.f32 0.0, %v2907
    %2909 = vdwg.mxu0
    %2910 = vmatpush.bf16.msra.mxu0 0
    %2911 = vmatpush.bf16.msra.mxu0 0
    %2912 = vmatpush.bf16.msra.mxu0 0
    %2913 = vmatpush.bf16.msra.mxu0 0
    %2914 = vmatpush.bf16.msra.mxu0 0
    %2915 = vmatpush.bf16.msra.mxu0 0
    %2916 = vmatpush.bf16.msra.mxu0 %v2682
    %2917 = vmatpush.bf16.msra.mxu0 %v2674
    %2918 = vmatmul.bf16.gmra.mxu0 %v2704
    %v2919 = vpop.f32.mrf.mxu0
    %v2920 = vadd.f32 0.0, %v2919
    %v2921 = vpop.f32.mrf.mxu0
    %v2922 = vadd.f32 0.0, %v2921
    %2923 = vmatmul.bf16.gmra.mxu0 %v2707
    %v2924 = vpop.f32.mrf.mxu0
    %v2925 = vadd.f32 0.0, %v2924
    %v2926 = vpop.f32.mrf.mxu0
    %v2927 = vadd.f32 0.0, %v2926
    %2928 = vmatmul.bf16.gmra.mxu0 %v2710
    %v2929 = vpop.f32.mrf.mxu0
    %v2930 = vadd.f32 0.0, %v2929
    %v2931 = vpop.f32.mrf.mxu0
    %v2932 = vadd.f32 0.0, %v2931
    %2933 = vmatmul.bf16.gmra.mxu0 %v2713
    %v2934 = vpop.f32.mrf.mxu0
    %v2935 = vadd.f32 0.0, %v2934
    %v2936 = vpop.f32.mrf.mxu0
    %v2937 = vadd.f32 0.0, %v2936
    %2938 = vmatmul.bf16.gmra.mxu0 %v2716
    %v2939 = vpop.f32.mrf.mxu0
    %v2940 = vadd.f32 0.0, %v2939
    %v2941 = vpop.f32.mrf.mxu0
    %v2942 = vadd.f32 0.0, %v2941
    %2943 = vmatmul.bf16.gmra.mxu0 %v2719
    %v2944 = vpop.f32.mrf.mxu0
    %v2945 = vadd.f32 0.0, %v2944
    %v2946 = vpop.f32.mrf.mxu0
    %v2947 = vadd.f32 0.0, %v2946
    %2948 = vmatmul.bf16.gmra.mxu0 %v2722
    %v2949 = vpop.f32.mrf.mxu0
    %v2950 = vadd.f32 0.0, %v2949
    %v2951 = vpop.f32.mrf.mxu0
    %v2952 = vadd.f32 0.0, %v2951
    %2953 = vmatmul.bf16.gmra.mxu0 %v2725
    %v2954 = vpop.f32.mrf.mxu0
    %v2955 = vadd.f32 0.0, %v2954
    %v2956 = vpop.f32.mrf.mxu0
    %v2957 = vadd.f32 0.0, %v2956
    %2958 = vmatmul.bf16.gmra.mxu0 %v2728
    %v2959 = vpop.f32.mrf.mxu0
    %v2960 = vadd.f32 0.0, %v2959
    %v2961 = vpop.f32.mrf.mxu0
    %v2962 = vadd.f32 0.0, %v2961
    %2963 = vmatmul.bf16.gmra.mxu0 %v2731
    %v2964 = vpop.f32.mrf.mxu0
    %v2965 = vadd.f32 0.0, %v2964
    %v2966 = vpop.f32.mrf.mxu0
    %v2967 = vadd.f32 0.0, %v2966
    %2968 = vdwg.mxu0
    %2969 = vmatpush.bf16.msra.mxu0 0
    %2970 = vmatpush.bf16.msra.mxu0 0
    %2971 = vmatpush.bf16.msra.mxu0 0
    %2972 = vmatpush.bf16.msra.mxu0 0
    %2973 = vmatpush.bf16.msra.mxu0 0
    %2974 = vmatpush.bf16.msra.mxu0 0
    %2975 = vmatpush.bf16.msra.mxu0 %v2683
    %2976 = vmatpush.bf16.msra.mxu0 %v2675
    %2977 = vmatmul.bf16.gmra.mxu0 %v2704
    %v2978 = vpop.f32.mrf.mxu0
    %v2979 = vadd.f32 0.0, %v2978
    %v2980 = vpop.f32.mrf.mxu0
    %v2981 = vadd.f32 0.0, %v2980
    %2982 = vmatmul.bf16.gmra.mxu0 %v2707
    %v2983 = vpop.f32.mrf.mxu0
    %v2984 = vadd.f32 0.0, %v2983
    %v2985 = vpop.f32.mrf.mxu0
    %v2986 = vadd.f32 0.0, %v2985
    %2987 = vmatmul.bf16.gmra.mxu0 %v2710
    %v2988 = vpop.f32.mrf.mxu0
    %v2989 = vadd.f32 0.0, %v2988
    %v2990 = vpop.f32.mrf.mxu0
    %v2991 = vadd.f32 0.0, %v2990
    %2992 = vmatmul.bf16.gmra.mxu0 %v2713
    %v2993 = vpop.f32.mrf.mxu0
    %v2994 = vadd.f32 0.0, %v2993
    %v2995 = vpop.f32.mrf.mxu0
    %v2996 = vadd.f32 0.0, %v2995
    %2997 = vmatmul.bf16.gmra.mxu0 %v2716
    %v2998 = vpop.f32.mrf.mxu0
    %v2999 = vadd.f32 0.0, %v2998
    %v3000 = vpop.f32.mrf.mxu0
    %v3001 = vadd.f32 0.0, %v3000
    %3002 = vmatmul.bf16.gmra.mxu0 %v2719
    %v3003 = vpop.f32.mrf.mxu0
    %v3004 = vadd.f32 0.0, %v3003
    %v3005 = vpop.f32.mrf.mxu0
    %v3006 = vadd.f32 0.0, %v3005
    %3007 = vmatmul.bf16.gmra.mxu0 %v2722
    %v3008 = vpop.f32.mrf.mxu0
    %v3009 = vadd.f32 0.0, %v3008
    %v3010 = vpop.f32.mrf.mxu0
    %v3011 = vadd.f32 0.0, %v3010
    %3012 = vmatmul.bf16.gmra.mxu0 %v2725
    %v3013 = vpop.f32.mrf.mxu0
    %v3014 = vadd.f32 0.0, %v3013
    %v3015 = vpop.f32.mrf.mxu0
    %v3016 = vadd.f32 0.0, %v3015
    %3017 = vmatmul.bf16.gmra.mxu0 %v2728
    %v3018 = vpop.f32.mrf.mxu0
    %v3019 = vadd.f32 0.0, %v3018
    %v3020 = vpop.f32.mrf.mxu0
    %v3021 = vadd.f32 0.0, %v3020
    %3022 = vmatmul.bf16.gmra.mxu0 %v2731
    %v3023 = vpop.f32.mrf.mxu0
    %v3024 = vadd.f32 0.0, %v3023
    %v3025 = vpop.f32.mrf.mxu0
    %v3026 = vadd.f32 0.0, %v3025
    %3027 = vdwg.mxu0
    %3028 = vmatpush.bf16.msra.mxu0 0
    %3029 = vmatpush.bf16.msra.mxu0 0
    %3030 = vmatpush.bf16.msra.mxu0 0
    %3031 = vmatpush.bf16.msra.mxu0 0
    %3032 = vmatpush.bf16.msra.mxu0 0
    %3033 = vmatpush.bf16.msra.mxu0 0
    %3034 = vmatpush.bf16.msra.mxu0 %v2684
    %3035 = vmatpush.bf16.msra.mxu0 %v2676
    %3036 = vmatmul.bf16.gmra.mxu0 %v2704
    %v3037 = vpop.f32.mrf.mxu0
    %v3038 = vadd.f32 0.0, %v3037
    %v3039 = vpop.f32.mrf.mxu0
    %v3040 = vadd.f32 0.0, %v3039
    %3041 = vmatmul.bf16.gmra.mxu0 %v2707
    %v3042 = vpop.f32.mrf.mxu0
    %v3043 = vadd.f32 0.0, %v3042
    %v3044 = vpop.f32.mrf.mxu0
    %v3045 = vadd.f32 0.0, %v3044
    %3046 = vmatmul.bf16.gmra.mxu0 %v2710
    %v3047 = vpop.f32.mrf.mxu0
    %v3048 = vadd.f32 0.0, %v3047
    %v3049 = vpop.f32.mrf.mxu0
    %v3050 = vadd.f32 0.0, %v3049
    %3051 = vmatmul.bf16.gmra.mxu0 %v2713
    %v3052 = vpop.f32.mrf.mxu0
    %v3053 = vadd.f32 0.0, %v3052
    %v3054 = vpop.f32.mrf.mxu0
    %v3055 = vadd.f32 0.0, %v3054
    %3056 = vmatmul.bf16.gmra.mxu0 %v2716
    %v3057 = vpop.f32.mrf.mxu0
    %v3058 = vadd.f32 0.0, %v3057
    %v3059 = vpop.f32.mrf.mxu0
    %v3060 = vadd.f32 0.0, %v3059
    %3061 = vmatmul.bf16.gmra.mxu0 %v2719
    %v3062 = vpop.f32.mrf.mxu0
    %v3063 = vadd.f32 0.0, %v3062
    %v3064 = vpop.f32.mrf.mxu0
    %v3065 = vadd.f32 0.0, %v3064
    %3066 = vmatmul.bf16.gmra.mxu0 %v2722
    %v3067 = vpop.f32.mrf.mxu0
    %v3068 = vadd.f32 0.0, %v3067
    %v3069 = vpop.f32.mrf.mxu0
    %v3070 = vadd.f32 0.0, %v3069
    %3071 = vmatmul.bf16.gmra.mxu0 %v2725
    %v3072 = vpop.f32.mrf.mxu0
    %v3073 = vadd.f32 0.0, %v3072
    %v3074 = vpop.f32.mrf.mxu0
    %v3075 = vadd.f32 0.0, %v3074
    %3076 = vmatmul.bf16.gmra.mxu0 %v2728
    %v3077 = vpop.f32.mrf.mxu0
    %v3078 = vadd.f32 0.0, %v3077
    %v3079 = vpop.f32.mrf.mxu0
    %v3080 = vadd.f32 0.0, %v3079
    %3081 = vmatmul.bf16.gmra.mxu0 %v2731
    %v3082 = vpop.f32.mrf.mxu0
    %v3083 = vadd.f32 0.0, %v3082
    %v3084 = vpop.f32.mrf.mxu0
    %v3085 = vadd.f32 0.0, %v3084
    %3086 = vdwg.mxu0
    %3087 = vmatpush.bf16.msra.mxu0 0
    %3088 = vmatpush.bf16.msra.mxu0 0
    %3089 = vmatpush.bf16.msra.mxu0 0
    %3090 = vmatpush.bf16.msra.mxu0 0
    %3091 = vmatpush.bf16.msra.mxu0 0
    %3092 = vmatpush.bf16.msra.mxu0 0
    %3093 = vmatpush.bf16.msra.mxu0 %v2685
    %3094 = vmatpush.bf16.msra.mxu0 %v2677
    %3095 = vmatmul.bf16.gmra.mxu0 %v2704
    %v3096 = vpop.f32.mrf.mxu0
    %v3097 = vadd.f32 0.0, %v3096
    %v3098 = vpop.f32.mrf.mxu0
    %v3099 = vadd.f32 0.0, %v3098
    %3100 = vmatmul.bf16.gmra.mxu0 %v2707
    %v3101 = vpop.f32.mrf.mxu0
    %v3102 = vadd.f32 0.0, %v3101
    %v3103 = vpop.f32.mrf.mxu0
    %v3104 = vadd.f32 0.0, %v3103
    %3105 = vmatmul.bf16.gmra.mxu0 %v2710
    %v3106 = vpop.f32.mrf.mxu0
    %v3107 = vadd.f32 0.0, %v3106
    %v3108 = vpop.f32.mrf.mxu0
    %v3109 = vadd.f32 0.0, %v3108
    %3110 = vmatmul.bf16.gmra.mxu0 %v2713
    %v3111 = vpop.f32.mrf.mxu0
    %v3112 = vadd.f32 0.0, %v3111
    %v3113 = vpop.f32.mrf.mxu0
    %v3114 = vadd.f32 0.0, %v3113
    %3115 = vmatmul.bf16.gmra.mxu0 %v2716
    %v3116 = vpop.f32.mrf.mxu0
    %v3117 = vadd.f32 0.0, %v3116
    %v3118 = vpop.f32.mrf.mxu0
    %v3119 = vadd.f32 0.0, %v3118
    %3120 = vmatmul.bf16.gmra.mxu0 %v2719
    %v3121 = vpop.f32.mrf.mxu0
    %v3122 = vadd.f32 0.0, %v3121
    %v3123 = vpop.f32.mrf.mxu0
    %v3124 = vadd.f32 0.0, %v3123
    %3125 = vmatmul.bf16.gmra.mxu0 %v2722
    %v3126 = vpop.f32.mrf.mxu0
    %v3127 = vadd.f32 0.0, %v3126
    %v3128 = vpop.f32.mrf.mxu0
    %v3129 = vadd.f32 0.0, %v3128
    %3130 = vmatmul.bf16.gmra.mxu0 %v2725
    %v3131 = vpop.f32.mrf.mxu0
    %v3132 = vadd.f32 0.0, %v3131
    %v3133 = vpop.f32.mrf.mxu0
    %v3134 = vadd.f32 0.0, %v3133
    %3135 = vmatmul.bf16.gmra.mxu0 %v2728
    %v3136 = vpop.f32.mrf.mxu0
    %v3137 = vadd.f32 0.0, %v3136
    %v3138 = vpop.f32.mrf.mxu0
    %v3139 = vadd.f32 0.0, %v3138
    %3140 = vmatmul.bf16.gmra.mxu0 %v2731
    %v3141 = vpop.f32.mrf.mxu0
    %v3142 = vadd.f32 0.0, %v3141
    %v3143 = vpop.f32.mrf.mxu0
    %v3144 = vadd.f32 0.0, %v3143
    %3145 = vdwg.mxu0
    %3146 = vmatpush.bf16.msra.mxu0 0
    %3147 = vmatpush.bf16.msra.mxu0 0
    %3148 = vmatpush.bf16.msra.mxu0 0
    %3149 = vmatpush.bf16.msra.mxu0 0
    %3150 = vmatpush.bf16.msra.mxu0 0
    %3151 = vmatpush.bf16.msra.mxu0 0
    %3152 = vmatpush.bf16.msra.mxu0 %v2686
    %3153 = vmatpush.bf16.msra.mxu0 %v2678
    %3154 = vmatmul.bf16.gmra.mxu0 %v2704
    %v3155 = vpop.f32.mrf.mxu0
    %v3156 = vadd.f32 0.0, %v3155
    %v3157 = vpop.f32.mrf.mxu0
    %v3158 = vadd.f32 0.0, %v3157
    %3159 = vmatmul.bf16.gmra.mxu0 %v2707
    %v3160 = vpop.f32.mrf.mxu0
    %v3161 = vadd.f32 0.0, %v3160
    %v3162 = vpop.f32.mrf.mxu0
    %v3163 = vadd.f32 0.0, %v3162
    %3164 = vmatmul.bf16.gmra.mxu0 %v2710
    %v3165 = vpop.f32.mrf.mxu0
    %v3166 = vadd.f32 0.0, %v3165
    %v3167 = vpop.f32.mrf.mxu0
    %v3168 = vadd.f32 0.0, %v3167
    %3169 = vmatmul.bf16.gmra.mxu0 %v2713
    %v3170 = vpop.f32.mrf.mxu0
    %v3171 = vadd.f32 0.0, %v3170
    %v3172 = vpop.f32.mrf.mxu0
    %v3173 = vadd.f32 0.0, %v3172
    %3174 = vmatmul.bf16.gmra.mxu0 %v2716
    %v3175 = vpop.f32.mrf.mxu0
    %v3176 = vadd.f32 0.0, %v3175
    %v3177 = vpop.f32.mrf.mxu0
    %v3178 = vadd.f32 0.0, %v3177
    %3179 = vmatmul.bf16.gmra.mxu0 %v2719
    %v3180 = vpop.f32.mrf.mxu0
    %v3181 = vadd.f32 0.0, %v3180
    %v3182 = vpop.f32.mrf.mxu0
    %v3183 = vadd.f32 0.0, %v3182
    %3184 = vmatmul.bf16.gmra.mxu0 %v2722
    %v3185 = vpop.f32.mrf.mxu0
    %v3186 = vadd.f32 0.0, %v3185
    %v3187 = vpop.f32.mrf.mxu0
    %v3188 = vadd.f32 0.0, %v3187
    %3189 = vmatmul.bf16.gmra.mxu0 %v2725
    %v3190 = vpop.f32.mrf.mxu0
    %v3191 = vadd.f32 0.0, %v3190
    %v3192 = vpop.f32.mrf.mxu0
    %v3193 = vadd.f32 0.0, %v3192
    %3194 = vmatmul.bf16.gmra.mxu0 %v2728
    %v3195 = vpop.f32.mrf.mxu0
    %v3196 = vadd.f32 0.0, %v3195
    %v3197 = vpop.f32.mrf.mxu0
    %v3198 = vadd.f32 0.0, %v3197
    %3199 = vmatmul.bf16.gmra.mxu0 %v2731
    %v3200 = vpop.f32.mrf.mxu0
    %v3201 = vadd.f32 0.0, %v3200
    %v3202 = vpop.f32.mrf.mxu0
    %v3203 = vadd.f32 0.0, %v3202
    %3204 = vdwg.mxu0
    %v3205 = vmul.f32 %v2135, %v2743
    %v3206 = vmul.f32 %v2194, %v2802
    %v3207 = vmul.f32 %v2253, %v2861
    %v3208 = vmul.f32 %v2312, %v2920
    %v3209 = vmul.f32 %v2371, %v2979
    %v3210 = vmul.f32 %v2430, %v3038
    %v3211 = vmul.f32 %v2489, %v3097
    %v3212 = vmul.f32 %v2548, %v3156
    %v3213 = vmul.f32 %v2137, %v2745
    %v3214 = vmul.f32 %v2196, %v2804
    %v3215 = vmul.f32 %v2255, %v2863
    %v3216 = vmul.f32 %v2314, %v2922
    %v3217 = vmul.f32 %v2373, %v2981
    %v3218 = vmul.f32 %v2432, %v3040
    %v3219 = vmul.f32 %v2491, %v3099
    %v3220 = vmul.f32 %v2550, %v3158
    %v3221 = vmul.f32 %v2140, %v2748
    %v3222 = vmul.f32 %v2199, %v2807
    %v3223 = vmul.f32 %v2258, %v2866
    %v3224 = vmul.f32 %v2317, %v2925
    %v3225 = vmul.f32 %v2376, %v2984
    %v3226 = vmul.f32 %v2435, %v3043
    %v3227 = vmul.f32 %v2494, %v3102
    %v3228 = vmul.f32 %v2553, %v3161
    %v3229 = vmul.f32 %v2142, %v2750
    %v3230 = vmul.f32 %v2201, %v2809
    %v3231 = vmul.f32 %v2260, %v2868
    %v3232 = vmul.f32 %v2319, %v2927
    %v3233 = vmul.f32 %v2378, %v2986
    %v3234 = vmul.f32 %v2437, %v3045
    %v3235 = vmul.f32 %v2496, %v3104
    %v3236 = vmul.f32 %v2555, %v3163
    %v3237 = vmul.f32 %v2145, %v2753
    %v3238 = vmul.f32 %v2204, %v2812
    %v3239 = vmul.f32 %v2263, %v2871
    %v3240 = vmul.f32 %v2322, %v2930
    %v3241 = vmul.f32 %v2381, %v2989
    %v3242 = vmul.f32 %v2440, %v3048
    %v3243 = vmul.f32 %v2499, %v3107
    %v3244 = vmul.f32 %v2558, %v3166
    %v3245 = vmul.f32 %v2147, %v2755
    %v3246 = vmul.f32 %v2206, %v2814
    %v3247 = vmul.f32 %v2265, %v2873
    %v3248 = vmul.f32 %v2324, %v2932
    %v3249 = vmul.f32 %v2383, %v2991
    %v3250 = vmul.f32 %v2442, %v3050
    %v3251 = vmul.f32 %v2501, %v3109
    %v3252 = vmul.f32 %v2560, %v3168
    %v3253 = vmul.f32 %v2150, %v2758
    %v3254 = vmul.f32 %v2209, %v2817
    %v3255 = vmul.f32 %v2268, %v2876
    %v3256 = vmul.f32 %v2327, %v2935
    %v3257 = vmul.f32 %v2386, %v2994
    %v3258 = vmul.f32 %v2445, %v3053
    %v3259 = vmul.f32 %v2504, %v3112
    %v3260 = vmul.f32 %v2563, %v3171
    %v3261 = vmul.f32 %v2152, %v2760
    %v3262 = vmul.f32 %v2211, %v2819
    %v3263 = vmul.f32 %v2270, %v2878
    %v3264 = vmul.f32 %v2329, %v2937
    %v3265 = vmul.f32 %v2388, %v2996
    %v3266 = vmul.f32 %v2447, %v3055
    %v3267 = vmul.f32 %v2506, %v3114
    %v3268 = vmul.f32 %v2565, %v3173
    %v3269 = vmul.f32 %v2155, %v2763
    %v3270 = vmul.f32 %v2214, %v2822
    %v3271 = vmul.f32 %v2273, %v2881
    %v3272 = vmul.f32 %v2332, %v2940
    %v3273 = vmul.f32 %v2391, %v2999
    %v3274 = vmul.f32 %v2450, %v3058
    %v3275 = vmul.f32 %v2509, %v3117
    %v3276 = vmul.f32 %v2568, %v3176
    %v3277 = vmul.f32 %v2157, %v2765
    %v3278 = vmul.f32 %v2216, %v2824
    %v3279 = vmul.f32 %v2275, %v2883
    %v3280 = vmul.f32 %v2334, %v2942
    %v3281 = vmul.f32 %v2393, %v3001
    %v3282 = vmul.f32 %v2452, %v3060
    %v3283 = vmul.f32 %v2511, %v3119
    %v3284 = vmul.f32 %v2570, %v3178
    %v3285 = vmul.f32 %v2160, %v2768
    %v3286 = vmul.f32 %v2219, %v2827
    %v3287 = vmul.f32 %v2278, %v2886
    %v3288 = vmul.f32 %v2337, %v2945
    %v3289 = vmul.f32 %v2396, %v3004
    %v3290 = vmul.f32 %v2455, %v3063
    %v3291 = vmul.f32 %v2514, %v3122
    %v3292 = vmul.f32 %v2573, %v3181
    %v3293 = vmul.f32 %v2162, %v2770
    %v3294 = vmul.f32 %v2221, %v2829
    %v3295 = vmul.f32 %v2280, %v2888
    %v3296 = vmul.f32 %v2339, %v2947
    %v3297 = vmul.f32 %v2398, %v3006
    %v3298 = vmul.f32 %v2457, %v3065
    %v3299 = vmul.f32 %v2516, %v3124
    %v3300 = vmul.f32 %v2575, %v3183
    %v3301 = vmul.f32 %v2165, %v2773
    %v3302 = vmul.f32 %v2224, %v2832
    %v3303 = vmul.f32 %v2283, %v2891
    %v3304 = vmul.f32 %v2342, %v2950
    %v3305 = vmul.f32 %v2401, %v3009
    %v3306 = vmul.f32 %v2460, %v3068
    %v3307 = vmul.f32 %v2519, %v3127
    %v3308 = vmul.f32 %v2578, %v3186
    %v3309 = vmul.f32 %v2167, %v2775
    %v3310 = vmul.f32 %v2226, %v2834
    %v3311 = vmul.f32 %v2285, %v2893
    %v3312 = vmul.f32 %v2344, %v2952
    %v3313 = vmul.f32 %v2403, %v3011
    %v3314 = vmul.f32 %v2462, %v3070
    %v3315 = vmul.f32 %v2521, %v3129
    %v3316 = vmul.f32 %v2580, %v3188
    %v3317 = vmul.f32 %v2170, %v2778
    %v3318 = vmul.f32 %v2229, %v2837
    %v3319 = vmul.f32 %v2288, %v2896
    %v3320 = vmul.f32 %v2347, %v2955
    %v3321 = vmul.f32 %v2406, %v3014
    %v3322 = vmul.f32 %v2465, %v3073
    %v3323 = vmul.f32 %v2524, %v3132
    %v3324 = vmul.f32 %v2583, %v3191
    %v3325 = vmul.f32 %v2172, %v2780
    %v3326 = vmul.f32 %v2231, %v2839
    %v3327 = vmul.f32 %v2290, %v2898
    %v3328 = vmul.f32 %v2349, %v2957
    %v3329 = vmul.f32 %v2408, %v3016
    %v3330 = vmul.f32 %v2467, %v3075
    %v3331 = vmul.f32 %v2526, %v3134
    %v3332 = vmul.f32 %v2585, %v3193
    %v3333 = vmul.f32 %v2175, %v2783
    %v3334 = vmul.f32 %v2234, %v2842
    %v3335 = vmul.f32 %v2293, %v2901
    %v3336 = vmul.f32 %v2352, %v2960
    %v3337 = vmul.f32 %v2411, %v3019
    %v3338 = vmul.f32 %v2470, %v3078
    %v3339 = vmul.f32 %v2529, %v3137
    %v3340 = vmul.f32 %v2588, %v3196
    %v3341 = vmul.f32 %v2177, %v2785
    %v3342 = vmul.f32 %v2236, %v2844
    %v3343 = vmul.f32 %v2295, %v2903
    %v3344 = vmul.f32 %v2354, %v2962
    %v3345 = vmul.f32 %v2413, %v3021
    %v3346 = vmul.f32 %v2472, %v3080
    %v3347 = vmul.f32 %v2531, %v3139
    %v3348 = vmul.f32 %v2590, %v3198
    %v3349 = vmul.f32 %v2180, %v2788
    %v3350 = vmul.f32 %v2239, %v2847
    %v3351 = vmul.f32 %v2298, %v2906
    %v3352 = vmul.f32 %v2357, %v2965
    %v3353 = vmul.f32 %v2416, %v3024
    %v3354 = vmul.f32 %v2475, %v3083
    %v3355 = vmul.f32 %v2534, %v3142
    %v3356 = vmul.f32 %v2593, %v3201
    %v3357 = vmul.f32 %v2182, %v2790
    %v3358 = vmul.f32 %v2241, %v2849
    %v3359 = vmul.f32 %v2300, %v2908
    %v3360 = vmul.f32 %v2359, %v2967
    %v3361 = vmul.f32 %v2418, %v3026
    %v3362 = vmul.f32 %v2477, %v3085
    %v3363 = vmul.f32 %v2536, %v3144
    %v3364 = vmul.f32 %v2595, %v3203
    %v3365 = vpack.c.bf16 %v3213, %v3205
    %v3366 = vpack.c.bf16 %v3214, %v3206
    %v3367 = vpack.c.bf16 %v3215, %v3207
    %v3368 = vpack.c.bf16 %v3216, %v3208
    %v3369 = vpack.c.bf16 %v3217, %v3209
    %v3370 = vpack.c.bf16 %v3218, %v3210
    %v3371 = vpack.c.bf16 %v3219, %v3211
    %v3372 = vpack.c.bf16 %v3220, %v3212
    %v3373 = vpack.c.bf16 %v3229, %v3221
    %v3374 = vpack.c.bf16 %v3230, %v3222
    %v3375 = vpack.c.bf16 %v3231, %v3223
    %v3376 = vpack.c.bf16 %v3232, %v3224
    %v3377 = vpack.c.bf16 %v3233, %v3225
    %v3378 = vpack.c.bf16 %v3234, %v3226
    %v3379 = vpack.c.bf16 %v3235, %v3227
    %v3380 = vpack.c.bf16 %v3236, %v3228
    %v3381 = vpack.c.bf16 %v3245, %v3237
    %v3382 = vpack.c.bf16 %v3246, %v3238
    %v3383 = vpack.c.bf16 %v3247, %v3239
    %v3384 = vpack.c.bf16 %v3248, %v3240
    %v3385 = vpack.c.bf16 %v3249, %v3241
    %v3386 = vpack.c.bf16 %v3250, %v3242
    %v3387 = vpack.c.bf16 %v3251, %v3243
    %v3388 = vpack.c.bf16 %v3252, %v3244
    %v3389 = vpack.c.bf16 %v3261, %v3253
    %v3390 = vpack.c.bf16 %v3262, %v3254
    %v3391 = vpack.c.bf16 %v3263, %v3255
    %v3392 = vpack.c.bf16 %v3264, %v3256
    %v3393 = vpack.c.bf16 %v3265, %v3257
    %v3394 = vpack.c.bf16 %v3266, %v3258
    %v3395 = vpack.c.bf16 %v3267, %v3259
    %v3396 = vpack.c.bf16 %v3268, %v3260
    %v3397 = vpack.c.bf16 %v3277, %v3269
    %v3398 = vpack.c.bf16 %v3278, %v3270
    %v3399 = vpack.c.bf16 %v3279, %v3271
    %v3400 = vpack.c.bf16 %v3280, %v3272
    %v3401 = vpack.c.bf16 %v3281, %v3273
    %v3402 = vpack.c.bf16 %v3282, %v3274
    %v3403 = vpack.c.bf16 %v3283, %v3275
    %v3404 = vpack.c.bf16 %v3284, %v3276
    %v3405 = vpack.c.bf16 %v3293, %v3285
    %v3406 = vpack.c.bf16 %v3294, %v3286
    %v3407 = vpack.c.bf16 %v3295, %v3287
    %v3408 = vpack.c.bf16 %v3296, %v3288
    %v3409 = vpack.c.bf16 %v3297, %v3289
    %v3410 = vpack.c.bf16 %v3298, %v3290
    %v3411 = vpack.c.bf16 %v3299, %v3291
    %v3412 = vpack.c.bf16 %v3300, %v3292
    %v3413 = vpack.c.bf16 %v3309, %v3301
    %v3414 = vpack.c.bf16 %v3310, %v3302
    %v3415 = vpack.c.bf16 %v3311, %v3303
    %v3416 = vpack.c.bf16 %v3312, %v3304
    %v3417 = vpack.c.bf16 %v3313, %v3305
    %v3418 = vpack.c.bf16 %v3314, %v3306
    %v3419 = vpack.c.bf16 %v3315, %v3307
    %v3420 = vpack.c.bf16 %v3316, %v3308
    %v3421 = vpack.c.bf16 %v3325, %v3317
    %v3422 = vpack.c.bf16 %v3326, %v3318
    %v3423 = vpack.c.bf16 %v3327, %v3319
    %v3424 = vpack.c.bf16 %v3328, %v3320
    %v3425 = vpack.c.bf16 %v3329, %v3321
    %v3426 = vpack.c.bf16 %v3330, %v3322
    %v3427 = vpack.c.bf16 %v3331, %v3323
    %v3428 = vpack.c.bf16 %v3332, %v3324
    %v3429 = vpack.c.bf16 %v3341, %v3333
    %v3430 = vpack.c.bf16 %v3342, %v3334
    %v3431 = vpack.c.bf16 %v3343, %v3335
    %v3432 = vpack.c.bf16 %v3344, %v3336
    %v3433 = vpack.c.bf16 %v3345, %v3337
    %v3434 = vpack.c.bf16 %v3346, %v3338
    %v3435 = vpack.c.bf16 %v3347, %v3339
    %v3436 = vpack.c.bf16 %v3348, %v3340
    %v3437 = vpack.c.bf16 %v3357, %v3349
    %v3438 = vpack.c.bf16 %v3358, %v3350
    %v3439 = vpack.c.bf16 %v3359, %v3351
    %v3440 = vpack.c.bf16 %v3360, %v3352
    %v3441 = vpack.c.bf16 %v3361, %v3353
    %v3442 = vpack.c.bf16 %v3362, %v3354
    %v3443 = vpack.c.bf16 %v3363, %v3355
    %v3444 = vpack.c.bf16 %v3364, %v3356
    %v3445 = vld [vmem:[%s18] sm:$0xf]
    %v3446 = vld [vmem:[%s18 + $0x4] sm:$0xf]
    %v3447 = vld [vmem:[%s18 + $0x8] sm:$0xf]
    %v3448 = vld [vmem:[%s18 + $0xc] sm:$0xf]
    %v3449 = vld [vmem:[%s18 + $0x10] sm:$0xf]
    %v3450 = vld [vmem:[%s18 + $0x14] sm:$0xf]
    %v3451 = vld [vmem:[%s18 + $0x18] sm:$0xf]
    %v3452 = vld [vmem:[%s18 + $0x1c] sm:$0xf]
    %v3453 = vld [vmem:[%s18 + $0x20] sm:$0xf]
    %v3454 = vld [vmem:[%s18 + $0x24] sm:$0xf]
    %v3455 = vld [vmem:[%s18 + $0x28] sm:$0xf]
    %v3456 = vld [vmem:[%s18 + $0x2c] sm:$0xf]
    %v3457 = vld [vmem:[%s18 + $0x30] sm:$0xf]
    %v3458 = vld [vmem:[%s18 + $0x34] sm:$0xf]
    %v3459 = vld [vmem:[%s18 + $0x38] sm:$0xf]
    %v3460 = vld [vmem:[%s18 + $0x3c] sm:$0xf]
    %v3461 = vld [vmem:[%s18 + $0x40] sm:$0xf]
    %v3462 = vld [vmem:[%s18 + $0x44] sm:$0xf]
    %v3463 = vld [vmem:[%s18 + $0x48] sm:$0xf]
    %v3464 = vld [vmem:[%s18 + $0x4c] sm:$0xf]
    %v3465 = vld [vmem:[%s18 + $0x50] sm:$0xf]
    %v3466 = vld [vmem:[%s18 + $0x54] sm:$0xf]
    %v3467 = vld [vmem:[%s18 + $0x58] sm:$0xf]
    %v3468 = vld [vmem:[%s18 + $0x5c] sm:$0xf]
    %v3469 = vld [vmem:[%s18 + $0x60] sm:$0xf]
    %v3470 = vld [vmem:[%s18 + $0x64] sm:$0xf]
    %v3471 = vld [vmem:[%s18 + $0x68] sm:$0xf]
    %v3472 = vld [vmem:[%s18 + $0x6c] sm:$0xf]
    %v3473 = vld [vmem:[%s18 + $0x70] sm:$0xf]
    %v3474 = vld [vmem:[%s18 + $0x74] sm:$0xf]
    %v3475 = vld [vmem:[%s18 + $0x78] sm:$0xf]
    %v3476 = vld [vmem:[%s18 + $0x7c] sm:$0xf]
    %v3477 = vld [vmem:[%s18 + $0x80] sm:$0xf]
    %v3478 = vld [vmem:[%s18 + $0x84] sm:$0xf]
    %v3479 = vld [vmem:[%s18 + $0x88] sm:$0xf]
    %v3480 = vld [vmem:[%s18 + $0x8c] sm:$0xf]
    %v3481 = vld [vmem:[%s18 + $0x90] sm:$0xf]
    %v3482 = vld [vmem:[%s18 + $0x94] sm:$0xf]
    %v3483 = vld [vmem:[%s18 + $0x98] sm:$0xf]
    %v3484 = vld [vmem:[%s18 + $0x9c] sm:$0xf]
    %v3485 = vld [vmem:[%s18 + $0xa0] sm:$0xf]
    %v3486 = vld [vmem:[%s18 + $0xa4] sm:$0xf]
    %v3487 = vld [vmem:[%s18 + $0xa8] sm:$0xf]
    %v3488 = vld [vmem:[%s18 + $0xac] sm:$0xf]
    %v3489 = vld [vmem:[%s18 + $0xb0] sm:$0xf]
    %v3490 = vld [vmem:[%s18 + $0xb4] sm:$0xf]
    %v3491 = vld [vmem:[%s18 + $0xb8] sm:$0xf]
    %v3492 = vld [vmem:[%s18 + $0xbc] sm:$0xf]
    %v3493 = vld [vmem:[%s18 + $0xc0] sm:$0xf]
    %v3494 = vld [vmem:[%s18 + $0xc4] sm:$0xf]
    %v3495 = vld [vmem:[%s18 + $0xc8] sm:$0xf]
    %v3496 = vld [vmem:[%s18 + $0xcc] sm:$0xf]
    %v3497 = vld [vmem:[%s18 + $0xd0] sm:$0xf]
    %v3498 = vld [vmem:[%s18 + $0xd4] sm:$0xf]
    %v3499 = vld [vmem:[%s18 + $0xd8] sm:$0xf]
    %v3500 = vld [vmem:[%s18 + $0xdc] sm:$0xf]
    %v3501 = vld [vmem:[%s18 + $0xe0] sm:$0xf]
    %v3502 = vld [vmem:[%s18 + $0xe4] sm:$0xf]
    %v3503 = vld [vmem:[%s18 + $0xe8] sm:$0xf]
    %v3504 = vld [vmem:[%s18 + $0xec] sm:$0xf]
    %v3505 = vld [vmem:[%s18 + $0xf0] sm:$0xf]
    %v3506 = vld [vmem:[%s18 + $0xf4] sm:$0xf]
    %v3507 = vld [vmem:[%s18 + $0xf8] sm:$0xf]
    %v3508 = vld [vmem:[%s18 + $0xfc] sm:$0xf]
    %v3509 = vld [vmem:[%s18 + $0x100] sm:$0xf]
    %v3510 = vld [vmem:[%s18 + $0x104] sm:$0xf]
    %v3511 = vld [vmem:[%s18 + $0x108] sm:$0xf]
    %v3512 = vld [vmem:[%s18 + $0x10c] sm:$0xf]
    %v3513 = vld [vmem:[%s18 + $0x110] sm:$0xf]
    %v3514 = vld [vmem:[%s18 + $0x114] sm:$0xf]
    %v3515 = vld [vmem:[%s18 + $0x118] sm:$0xf]
    %v3516 = vld [vmem:[%s18 + $0x11c] sm:$0xf]
    %v3517 = vld [vmem:[%s18 + $0x120] sm:$0xf]
    %v3518 = vld [vmem:[%s18 + $0x124] sm:$0xf]
    %v3519 = vld [vmem:[%s18 + $0x128] sm:$0xf]
    %v3520 = vld [vmem:[%s18 + $0x12c] sm:$0xf]
    %v3521 = vld [vmem:[%s18 + $0x130] sm:$0xf]
    %v3522 = vld [vmem:[%s18 + $0x134] sm:$0xf]
    %v3523 = vld [vmem:[%s18 + $0x138] sm:$0xf]
    %v3524 = vld [vmem:[%s18 + $0x13c] sm:$0xf]
    %v3525 = vld [vmem:[%s18 + $0x140] sm:$0xf]
    %v3526 = vld [vmem:[%s18 + $0x144] sm:$0xf]
    %v3527 = vld [vmem:[%s18 + $0x148] sm:$0xf]
    %v3528 = vld [vmem:[%s18 + $0x14c] sm:$0xf]
    %v3529 = vld [vmem:[%s18 + $0x150] sm:$0xf]
    %v3530 = vld [vmem:[%s18 + $0x154] sm:$0xf]
    %v3531 = vld [vmem:[%s18 + $0x158] sm:$0xf]
    %v3532 = vld [vmem:[%s18 + $0x15c] sm:$0xf]
    %v3533 = vld [vmem:[%s18 + $0x160] sm:$0xf]
    %v3534 = vld [vmem:[%s18 + $0x164] sm:$0xf]
    %v3535 = vld [vmem:[%s18 + $0x168] sm:$0xf]
    %v3536 = vld [vmem:[%s18 + $0x16c] sm:$0xf]
    %v3537 = vld [vmem:[%s18 + $0x170] sm:$0xf]
    %v3538 = vld [vmem:[%s18 + $0x174] sm:$0xf]
    %v3539 = vld [vmem:[%s18 + $0x178] sm:$0xf]
    %v3540 = vld [vmem:[%s18 + $0x17c] sm:$0xf]
    %v3541 = vld [vmem:[%s18 + $0x180] sm:$0xf]
    %v3542 = vld [vmem:[%s18 + $0x184] sm:$0xf]
    %v3543 = vld [vmem:[%s18 + $0x188] sm:$0xf]
    %v3544 = vld [vmem:[%s18 + $0x18c] sm:$0xf]
    %v3545 = vld [vmem:[%s18 + $0x190] sm:$0xf]
    %v3546 = vld [vmem:[%s18 + $0x194] sm:$0xf]
    %v3547 = vld [vmem:[%s18 + $0x198] sm:$0xf]
    %v3548 = vld [vmem:[%s18 + $0x19c] sm:$0xf]
    %v3549 = vld [vmem:[%s18 + $0x1a0] sm:$0xf]
    %v3550 = vld [vmem:[%s18 + $0x1a4] sm:$0xf]
    %v3551 = vld [vmem:[%s18 + $0x1a8] sm:$0xf]
    %v3552 = vld [vmem:[%s18 + $0x1ac] sm:$0xf]
    %v3553 = vld [vmem:[%s18 + $0x1b0] sm:$0xf]
    %v3554 = vld [vmem:[%s18 + $0x1b4] sm:$0xf]
    %v3555 = vld [vmem:[%s18 + $0x1b8] sm:$0xf]
    %v3556 = vld [vmem:[%s18 + $0x1bc] sm:$0xf]
    %v3557 = vld [vmem:[%s18 + $0x1c0] sm:$0xf]
    %v3558 = vld [vmem:[%s18 + $0x1c4] sm:$0xf]
    %v3559 = vld [vmem:[%s18 + $0x1c8] sm:$0xf]
    %v3560 = vld [vmem:[%s18 + $0x1cc] sm:$0xf]
    %v3561 = vld [vmem:[%s18 + $0x1d0] sm:$0xf]
    %v3562 = vld [vmem:[%s18 + $0x1d4] sm:$0xf]
    %v3563 = vld [vmem:[%s18 + $0x1d8] sm:$0xf]
    %v3564 = vld [vmem:[%s18 + $0x1dc] sm:$0xf]
    %v3565 = vld [vmem:[%s18 + $0x1e0] sm:$0xf]
    %v3566 = vld [vmem:[%s18 + $0x1e4] sm:$0xf]
    %v3567 = vld [vmem:[%s18 + $0x1e8] sm:$0xf]
    %v3568 = vld [vmem:[%s18 + $0x1ec] sm:$0xf]
    %v3569 = vld [vmem:[%s18 + $0x1f0] sm:$0xf]
    %v3570 = vld [vmem:[%s18 + $0x1f4] sm:$0xf]
    %v3571 = vld [vmem:[%s18 + $0x1f8] sm:$0xf]
    %v3572 = vld [vmem:[%s18 + $0x1fc] sm:$0xf]
    %v3701 = vunpack.c.l.b16 %v3445
    %v3702 = vunpack.c.l.b16 %v3446
    %v3703 = vunpack.c.l.b16 %v3447
    %v3704 = vunpack.c.l.b16 %v3448
    %v3705 = vunpack.c.l.b16 %v3449
    %v3706 = vunpack.c.l.b16 %v3450
    %v3707 = vunpack.c.l.b16 %v3451
    %v3708 = vunpack.c.l.b16 %v3452
    %v3709 = vunpack.c.l.b16 %v3453
    %v3710 = vunpack.c.l.b16 %v3454
    %v3711 = vunpack.c.l.b16 %v3455
    %v3712 = vunpack.c.l.b16 %v3456
    %v3713 = vunpack.c.l.b16 %v3457
    %v3714 = vunpack.c.l.b16 %v3458
    %v3715 = vunpack.c.l.b16 %v3459
    %v3716 = vunpack.c.l.b16 %v3460
    %v3717 = vunpack.c.l.b16 %v3461
    %v3718 = vunpack.c.l.b16 %v3462
    %v3719 = vunpack.c.l.b16 %v3463
    %v3720 = vunpack.c.l.b16 %v3464
    %v3721 = vunpack.c.l.b16 %v3465
    %v3722 = vunpack.c.l.b16 %v3466
    %v3723 = vunpack.c.l.b16 %v3467
    %v3724 = vunpack.c.l.b16 %v3468
    %v3725 = vunpack.c.l.b16 %v3469
    %v3726 = vunpack.c.l.b16 %v3470
    %v3727 = vunpack.c.l.b16 %v3471
    %v3728 = vunpack.c.l.b16 %v3472
    %v3729 = vunpack.c.l.b16 %v3473
    %v3730 = vunpack.c.l.b16 %v3474
    %v3731 = vunpack.c.l.b16 %v3475
    %v3732 = vunpack.c.l.b16 %v3476
    %v3733 = vunpack.c.l.b16 %v3477
    %v3734 = vunpack.c.l.b16 %v3478
    %v3735 = vunpack.c.l.b16 %v3479
    %v3736 = vunpack.c.l.b16 %v3480
    %v3737 = vunpack.c.l.b16 %v3481
    %v3738 = vunpack.c.l.b16 %v3482
    %v3739 = vunpack.c.l.b16 %v3483
    %v3740 = vunpack.c.l.b16 %v3484
    %v3741 = vunpack.c.l.b16 %v3485
    %v3742 = vunpack.c.l.b16 %v3486
    %v3743 = vunpack.c.l.b16 %v3487
    %v3744 = vunpack.c.l.b16 %v3488
    %v3745 = vunpack.c.l.b16 %v3489
    %v3746 = vunpack.c.l.b16 %v3490
    %v3747 = vunpack.c.l.b16 %v3491
    %v3748 = vunpack.c.l.b16 %v3492
    %v3749 = vunpack.c.l.b16 %v3493
    %v3750 = vunpack.c.l.b16 %v3494
    %v3751 = vunpack.c.l.b16 %v3495
    %v3752 = vunpack.c.l.b16 %v3496
    %v3753 = vunpack.c.l.b16 %v3497
    %v3754 = vunpack.c.l.b16 %v3498
    %v3755 = vunpack.c.l.b16 %v3499
    %v3756 = vunpack.c.l.b16 %v3500
    %v3757 = vunpack.c.l.b16 %v3501
    %v3758 = vunpack.c.l.b16 %v3502
    %v3759 = vunpack.c.l.b16 %v3503
    %v3760 = vunpack.c.l.b16 %v3504
    %v3761 = vunpack.c.l.b16 %v3505
    %v3762 = vunpack.c.l.b16 %v3506
    %v3763 = vunpack.c.l.b16 %v3507
    %v3764 = vunpack.c.l.b16 %v3508
    %v3765 = vunpack.c.l.b16 %v3509
    %v3766 = vunpack.c.l.b16 %v3510
    %v3767 = vunpack.c.l.b16 %v3511
    %v3768 = vunpack.c.l.b16 %v3512
    %v3769 = vunpack.c.l.b16 %v3513
    %v3770 = vunpack.c.l.b16 %v3514
    %v3771 = vunpack.c.l.b16 %v3515
    %v3772 = vunpack.c.l.b16 %v3516
    %v3773 = vunpack.c.l.b16 %v3517
    %v3774 = vunpack.c.l.b16 %v3518
    %v3775 = vunpack.c.l.b16 %v3519
    %v3776 = vunpack.c.l.b16 %v3520
    %v3777 = vunpack.c.l.b16 %v3521
    %v3778 = vunpack.c.l.b16 %v3522
    %v3779 = vunpack.c.l.b16 %v3523
    %v3780 = vunpack.c.l.b16 %v3524
    %v3781 = vunpack.c.l.b16 %v3525
    %v3782 = vunpack.c.l.b16 %v3526
    %v3783 = vunpack.c.l.b16 %v3527
    %v3784 = vunpack.c.l.b16 %v3528
    %v3785 = vunpack.c.l.b16 %v3529
    %v3786 = vunpack.c.l.b16 %v3530
    %v3787 = vunpack.c.l.b16 %v3531
    %v3788 = vunpack.c.l.b16 %v3532
    %v3789 = vunpack.c.l.b16 %v3533
    %v3790 = vunpack.c.l.b16 %v3534
    %v3791 = vunpack.c.l.b16 %v3535
    %v3792 = vunpack.c.l.b16 %v3536
    %v3793 = vunpack.c.l.b16 %v3537
    %v3794 = vunpack.c.l.b16 %v3538
    %v3795 = vunpack.c.l.b16 %v3539
    %v3796 = vunpack.c.l.b16 %v3540
    %v3797 = vunpack.c.l.b16 %v3541
    %v3798 = vunpack.c.l.b16 %v3542
    %v3799 = vunpack.c.l.b16 %v3543
    %v3800 = vunpack.c.l.b16 %v3544
    %v3801 = vunpack.c.l.b16 %v3545
    %v3802 = vunpack.c.l.b16 %v3546
    %v3803 = vunpack.c.l.b16 %v3547
    %v3804 = vunpack.c.l.b16 %v3548
    %v3805 = vunpack.c.l.b16 %v3549
    %v3806 = vunpack.c.l.b16 %v3550
    %v3807 = vunpack.c.l.b16 %v3551
    %v3808 = vunpack.c.l.b16 %v3552
    %v3809 = vunpack.c.l.b16 %v3553
    %v3810 = vunpack.c.l.b16 %v3554
    %v3811 = vunpack.c.l.b16 %v3555
    %v3812 = vunpack.c.l.b16 %v3556
    %v3813 = vunpack.c.l.b16 %v3557
    %v3814 = vunpack.c.l.b16 %v3558
    %v3815 = vunpack.c.l.b16 %v3559
    %v3816 = vunpack.c.l.b16 %v3560
    %v3817 = vunpack.c.l.b16 %v3561
    %v3818 = vunpack.c.l.b16 %v3562
    %v3819 = vunpack.c.l.b16 %v3563
    %v3820 = vunpack.c.l.b16 %v3564
    %v3821 = vunpack.c.l.b16 %v3565
    %v3822 = vunpack.c.l.b16 %v3566
    %v3823 = vunpack.c.l.b16 %v3567
    %v3824 = vunpack.c.l.b16 %v3568
    %v3825 = vunpack.c.l.b16 %v3569
    %v3826 = vunpack.c.l.b16 %v3570
    %v3827 = vunpack.c.l.b16 %v3571
    %v3828 = vunpack.c.l.b16 %v3572
    %v3829 = vpack.c.b16 %v3702, %v3701
    %v3830 = vpack.c.b16 %v3704, %v3703
    %v3831 = vpack.c.b16 %v3706, %v3705
    %v3832 = vpack.c.b16 %v3708, %v3707
    %v3833 = vpack.c.b16 %v3710, %v3709
    %v3834 = vpack.c.b16 %v3712, %v3711
    %v3835 = vpack.c.b16 %v3714, %v3713
    %v3836 = vpack.c.b16 %v3716, %v3715
    %v3837 = vpack.c.b16 %v3718, %v3717
    %v3838 = vpack.c.b16 %v3720, %v3719
    %v3839 = vpack.c.b16 %v3722, %v3721
    %v3840 = vpack.c.b16 %v3724, %v3723
    %v3841 = vpack.c.b16 %v3726, %v3725
    %v3842 = vpack.c.b16 %v3728, %v3727
    %v3843 = vpack.c.b16 %v3730, %v3729
    %v3844 = vpack.c.b16 %v3732, %v3731
    %v3845 = vpack.c.b16 %v3734, %v3733
    %v3846 = vpack.c.b16 %v3736, %v3735
    %v3847 = vpack.c.b16 %v3738, %v3737
    %v3848 = vpack.c.b16 %v3740, %v3739
    %v3849 = vpack.c.b16 %v3742, %v3741
    %v3850 = vpack.c.b16 %v3744, %v3743
    %v3851 = vpack.c.b16 %v3746, %v3745
    %v3852 = vpack.c.b16 %v3748, %v3747
    %v3853 = vpack.c.b16 %v3750, %v3749
    %v3854 = vpack.c.b16 %v3752, %v3751
    %v3855 = vpack.c.b16 %v3754, %v3753
    %v3856 = vpack.c.b16 %v3756, %v3755
    %v3857 = vpack.c.b16 %v3758, %v3757
    %v3858 = vpack.c.b16 %v3760, %v3759
    %v3859 = vpack.c.b16 %v3762, %v3761
    %v3860 = vpack.c.b16 %v3764, %v3763
    %v3861 = vpack.c.b16 %v3766, %v3765
    %v3862 = vpack.c.b16 %v3768, %v3767
    %v3863 = vpack.c.b16 %v3770, %v3769
    %v3864 = vpack.c.b16 %v3772, %v3771
    %v3865 = vpack.c.b16 %v3774, %v3773
    %v3866 = vpack.c.b16 %v3776, %v3775
    %v3867 = vpack.c.b16 %v3778, %v3777
    %v3868 = vpack.c.b16 %v3780, %v3779
    %v3869 = vpack.c.b16 %v3782, %v3781
    %v3870 = vpack.c.b16 %v3784, %v3783
    %v3871 = vpack.c.b16 %v3786, %v3785
    %v3872 = vpack.c.b16 %v3788, %v3787
    %v3873 = vpack.c.b16 %v3790, %v3789
    %v3874 = vpack.c.b16 %v3792, %v3791
    %v3875 = vpack.c.b16 %v3794, %v3793
    %v3876 = vpack.c.b16 %v3796, %v3795
    %v3877 = vpack.c.b16 %v3798, %v3797
    %v3878 = vpack.c.b16 %v3800, %v3799
    %v3879 = vpack.c.b16 %v3802, %v3801
    %v3880 = vpack.c.b16 %v3804, %v3803
    %v3881 = vpack.c.b16 %v3806, %v3805
    %v3882 = vpack.c.b16 %v3808, %v3807
    %v3883 = vpack.c.b16 %v3810, %v3809
    %v3884 = vpack.c.b16 %v3812, %v3811
    %v3885 = vpack.c.b16 %v3814, %v3813
    %v3886 = vpack.c.b16 %v3816, %v3815
    %v3887 = vpack.c.b16 %v3818, %v3817
    %v3888 = vpack.c.b16 %v3820, %v3819
    %v3889 = vpack.c.b16 %v3822, %v3821
    %v3890 = vpack.c.b16 %v3824, %v3823
    %v3891 = vpack.c.b16 %v3826, %v3825
    %v3892 = vpack.c.b16 %v3828, %v3827
    %3957 = vmatpush.bf16.msra.mxu0 %v3836
    %3958 = vmatpush.bf16.msra.mxu0 %v3835
    %3959 = vmatpush.bf16.msra.mxu0 %v3834
    %3960 = vmatpush.bf16.msra.mxu0 %v3833
    %3961 = vmatpush.bf16.msra.mxu0 %v3832
    %3962 = vmatpush.bf16.msra.mxu0 %v3831
    %3963 = vmatpush.bf16.msra.mxu0 %v3830
    %3964 = vmatpush.bf16.msra.mxu0 %v3829
    %3965 = vmatmul.bf16.gmra.mxu0 %v3365
    %v3966 = vpop.f32.mrf.mxu0
    %v3967 = vadd.f32 0.0, %v3966
    %v3968 = vpop.f32.mrf.mxu0
    %v3969 = vadd.f32 0.0, %v3968
    %3970 = vmatmul.bf16.gmra.mxu0 %v3373
    %v3971 = vpop.f32.mrf.mxu0
    %v3972 = vadd.f32 0.0, %v3971
    %v3973 = vpop.f32.mrf.mxu0
    %v3974 = vadd.f32 0.0, %v3973
    %3975 = vmatmul.bf16.gmra.mxu0 %v3381
    %v3976 = vpop.f32.mrf.mxu0
    %v3977 = vadd.f32 0.0, %v3976
    %v3978 = vpop.f32.mrf.mxu0
    %v3979 = vadd.f32 0.0, %v3978
    %3980 = vmatmul.bf16.gmra.mxu0 %v3389
    %v3981 = vpop.f32.mrf.mxu0
    %v3982 = vadd.f32 0.0, %v3981
    %v3983 = vpop.f32.mrf.mxu0
    %v3984 = vadd.f32 0.0, %v3983
    %3985 = vmatmul.bf16.gmra.mxu0 %v3397
    %v3986 = vpop.f32.mrf.mxu0
    %v3987 = vadd.f32 0.0, %v3986
    %v3988 = vpop.f32.mrf.mxu0
    %v3989 = vadd.f32 0.0, %v3988
    %3990 = vmatmul.bf16.gmra.mxu0 %v3405
    %v3991 = vpop.f32.mrf.mxu0
    %v3992 = vadd.f32 0.0, %v3991
    %v3993 = vpop.f32.mrf.mxu0
    %v3994 = vadd.f32 0.0, %v3993
    %3995 = vmatmul.bf16.gmra.mxu0 %v3413
    %v3996 = vpop.f32.mrf.mxu0
    %v3997 = vadd.f32 0.0, %v3996
    %v3998 = vpop.f32.mrf.mxu0
    %v3999 = vadd.f32 0.0, %v3998
    %4000 = vmatmul.bf16.gmra.mxu0 %v3421
    %v4001 = vpop.f32.mrf.mxu0
    %v4002 = vadd.f32 0.0, %v4001
    %v4003 = vpop.f32.mrf.mxu0
    %v4004 = vadd.f32 0.0, %v4003
    %4005 = vmatmul.bf16.gmra.mxu0 %v3429
    %v4006 = vpop.f32.mrf.mxu0
    %v4007 = vadd.f32 0.0, %v4006
    %v4008 = vpop.f32.mrf.mxu0
    %v4009 = vadd.f32 0.0, %v4008
    %4010 = vmatmul.bf16.gmra.mxu0 %v3437
    %v4011 = vpop.f32.mrf.mxu0
    %v4012 = vadd.f32 0.0, %v4011
    %v4013 = vpop.f32.mrf.mxu0
    %v4014 = vadd.f32 0.0, %v4013
    %4015 = vdwg.mxu0
    %4016 = vmatpush.bf16.msra.mxu0 %v3844
    %4017 = vmatpush.bf16.msra.mxu0 %v3843
    %4018 = vmatpush.bf16.msra.mxu0 %v3842
    %4019 = vmatpush.bf16.msra.mxu0 %v3841
    %4020 = vmatpush.bf16.msra.mxu0 %v3840
    %4021 = vmatpush.bf16.msra.mxu0 %v3839
    %4022 = vmatpush.bf16.msra.mxu0 %v3838
    %4023 = vmatpush.bf16.msra.mxu0 %v3837
    %4024 = vmatmul.bf16.gmra.mxu0 %v3366
    %v4025 = vpop.f32.mrf.mxu0
    %v4026 = vadd.f32 %v3967, %v4025
    %v4027 = vpop.f32.mrf.mxu0
    %v4028 = vadd.f32 %v3969, %v4027
    %4029 = vmatmul.bf16.gmra.mxu0 %v3374
    %v4030 = vpop.f32.mrf.mxu0
    %v4031 = vadd.f32 %v3972, %v4030
    %v4032 = vpop.f32.mrf.mxu0
    %v4033 = vadd.f32 %v3974, %v4032
    %4034 = vmatmul.bf16.gmra.mxu0 %v3382
    %v4035 = vpop.f32.mrf.mxu0
    %v4036 = vadd.f32 %v3977, %v4035
    %v4037 = vpop.f32.mrf.mxu0
    %v4038 = vadd.f32 %v3979, %v4037
    %4039 = vmatmul.bf16.gmra.mxu0 %v3390
    %v4040 = vpop.f32.mrf.mxu0
    %v4041 = vadd.f32 %v3982, %v4040
    %v4042 = vpop.f32.mrf.mxu0
    %v4043 = vadd.f32 %v3984, %v4042
    %4044 = vmatmul.bf16.gmra.mxu0 %v3398
    %v4045 = vpop.f32.mrf.mxu0
    %v4046 = vadd.f32 %v3987, %v4045
    %v4047 = vpop.f32.mrf.mxu0
    %v4048 = vadd.f32 %v3989, %v4047
    %4049 = vmatmul.bf16.gmra.mxu0 %v3406
    %v4050 = vpop.f32.mrf.mxu0
    %v4051 = vadd.f32 %v3992, %v4050
    %v4052 = vpop.f32.mrf.mxu0
    %v4053 = vadd.f32 %v3994, %v4052
    %4054 = vmatmul.bf16.gmra.mxu0 %v3414
    %v4055 = vpop.f32.mrf.mxu0
    %v4056 = vadd.f32 %v3997, %v4055
    %v4057 = vpop.f32.mrf.mxu0
    %v4058 = vadd.f32 %v3999, %v4057
    %4059 = vmatmul.bf16.gmra.mxu0 %v3422
    %v4060 = vpop.f32.mrf.mxu0
    %v4061 = vadd.f32 %v4002, %v4060
    %v4062 = vpop.f32.mrf.mxu0
    %v4063 = vadd.f32 %v4004, %v4062
    %4064 = vmatmul.bf16.gmra.mxu0 %v3430
    %v4065 = vpop.f32.mrf.mxu0
    %v4066 = vadd.f32 %v4007, %v4065
    %v4067 = vpop.f32.mrf.mxu0
    %v4068 = vadd.f32 %v4009, %v4067
    %4069 = vmatmul.bf16.gmra.mxu0 %v3438
    %v4070 = vpop.f32.mrf.mxu0
    %v4071 = vadd.f32 %v4012, %v4070
    %v4072 = vpop.f32.mrf.mxu0
    %v4073 = vadd.f32 %v4014, %v4072
    %4074 = vdwg.mxu0
    %4075 = vmatpush.bf16.msra.mxu0 %v3852
    %4076 = vmatpush.bf16.msra.mxu0 %v3851
    %4077 = vmatpush.bf16.msra.mxu0 %v3850
    %4078 = vmatpush.bf16.msra.mxu0 %v3849
    %4079 = vmatpush.bf16.msra.mxu0 %v3848
    %4080 = vmatpush.bf16.msra.mxu0 %v3847
    %4081 = vmatpush.bf16.msra.mxu0 %v3846
    %4082 = vmatpush.bf16.msra.mxu0 %v3845
    %4083 = vmatmul.bf16.gmra.mxu0 %v3367
    %v4084 = vpop.f32.mrf.mxu0
    %v4085 = vadd.f32 %v4026, %v4084
    %v4086 = vpop.f32.mrf.mxu0
    %v4087 = vadd.f32 %v4028, %v4086
    %4088 = vmatmul.bf16.gmra.mxu0 %v3375
    %v4089 = vpop.f32.mrf.mxu0
    %v4090 = vadd.f32 %v4031, %v4089
    %v4091 = vpop.f32.mrf.mxu0
    %v4092 = vadd.f32 %v4033, %v4091
    %4093 = vmatmul.bf16.gmra.mxu0 %v3383
    %v4094 = vpop.f32.mrf.mxu0
    %v4095 = vadd.f32 %v4036, %v4094
    %v4096 = vpop.f32.mrf.mxu0
    %v4097 = vadd.f32 %v4038, %v4096
    %4098 = vmatmul.bf16.gmra.mxu0 %v3391
    %v4099 = vpop.f32.mrf.mxu0
    %v4100 = vadd.f32 %v4041, %v4099
    %v4101 = vpop.f32.mrf.mxu0
    %v4102 = vadd.f32 %v4043, %v4101
    %4103 = vmatmul.bf16.gmra.mxu0 %v3399
    %v4104 = vpop.f32.mrf.mxu0
    %v4105 = vadd.f32 %v4046, %v4104
    %v4106 = vpop.f32.mrf.mxu0
    %v4107 = vadd.f32 %v4048, %v4106
    %4108 = vmatmul.bf16.gmra.mxu0 %v3407
    %v4109 = vpop.f32.mrf.mxu0
    %v4110 = vadd.f32 %v4051, %v4109
    %v4111 = vpop.f32.mrf.mxu0
    %v4112 = vadd.f32 %v4053, %v4111
    %4113 = vmatmul.bf16.gmra.mxu0 %v3415
    %v4114 = vpop.f32.mrf.mxu0
    %v4115 = vadd.f32 %v4056, %v4114
    %v4116 = vpop.f32.mrf.mxu0
    %v4117 = vadd.f32 %v4058, %v4116
    %4118 = vmatmul.bf16.gmra.mxu0 %v3423
    %v4119 = vpop.f32.mrf.mxu0
    %v4120 = vadd.f32 %v4061, %v4119
    %v4121 = vpop.f32.mrf.mxu0
    %v4122 = vadd.f32 %v4063, %v4121
    %4123 = vmatmul.bf16.gmra.mxu0 %v3431
    %v4124 = vpop.f32.mrf.mxu0
    %v4125 = vadd.f32 %v4066, %v4124
    %v4126 = vpop.f32.mrf.mxu0
    %v4127 = vadd.f32 %v4068, %v4126
    %4128 = vmatmul.bf16.gmra.mxu0 %v3439
    %v4129 = vpop.f32.mrf.mxu0
    %v4130 = vadd.f32 %v4071, %v4129
    %v4131 = vpop.f32.mrf.mxu0
    %v4132 = vadd.f32 %v4073, %v4131
    %4133 = vdwg.mxu0
    %4134 = vmatpush.bf16.msra.mxu0 %v3860
    %4135 = vmatpush.bf16.msra.mxu0 %v3859
    %4136 = vmatpush.bf16.msra.mxu0 %v3858
    %4137 = vmatpush.bf16.msra.mxu0 %v3857
    %4138 = vmatpush.bf16.msra.mxu0 %v3856
    %4139 = vmatpush.bf16.msra.mxu0 %v3855
    %4140 = vmatpush.bf16.msra.mxu0 %v3854
    %4141 = vmatpush.bf16.msra.mxu0 %v3853
    %4142 = vmatmul.bf16.gmra.mxu0 %v3368
    %v4143 = vpop.f32.mrf.mxu0
    %v4144 = vadd.f32 %v4085, %v4143
    %v4145 = vpop.f32.mrf.mxu0
    %v4146 = vadd.f32 %v4087, %v4145
    %4147 = vmatmul.bf16.gmra.mxu0 %v3376
    %v4148 = vpop.f32.mrf.mxu0
    %v4149 = vadd.f32 %v4090, %v4148
    %v4150 = vpop.f32.mrf.mxu0
    %v4151 = vadd.f32 %v4092, %v4150
    %4152 = vmatmul.bf16.gmra.mxu0 %v3384
    %v4153 = vpop.f32.mrf.mxu0
    %v4154 = vadd.f32 %v4095, %v4153
    %v4155 = vpop.f32.mrf.mxu0
    %v4156 = vadd.f32 %v4097, %v4155
    %4157 = vmatmul.bf16.gmra.mxu0 %v3392
    %v4158 = vpop.f32.mrf.mxu0
    %v4159 = vadd.f32 %v4100, %v4158
    %v4160 = vpop.f32.mrf.mxu0
    %v4161 = vadd.f32 %v4102, %v4160
    %4162 = vmatmul.bf16.gmra.mxu0 %v3400
    %v4163 = vpop.f32.mrf.mxu0
    %v4164 = vadd.f32 %v4105, %v4163
    %v4165 = vpop.f32.mrf.mxu0
    %v4166 = vadd.f32 %v4107, %v4165
    %4167 = vmatmul.bf16.gmra.mxu0 %v3408
    %v4168 = vpop.f32.mrf.mxu0
    %v4169 = vadd.f32 %v4110, %v4168
    %v4170 = vpop.f32.mrf.mxu0
    %v4171 = vadd.f32 %v4112, %v4170
    %4172 = vmatmul.bf16.gmra.mxu0 %v3416
    %v4173 = vpop.f32.mrf.mxu0
    %v4174 = vadd.f32 %v4115, %v4173
    %v4175 = vpop.f32.mrf.mxu0
    %v4176 = vadd.f32 %v4117, %v4175
    %4177 = vmatmul.bf16.gmra.mxu0 %v3424
    %v4178 = vpop.f32.mrf.mxu0
    %v4179 = vadd.f32 %v4120, %v4178
    %v4180 = vpop.f32.mrf.mxu0
    %v4181 = vadd.f32 %v4122, %v4180
    %4182 = vmatmul.bf16.gmra.mxu0 %v3432
    %v4183 = vpop.f32.mrf.mxu0
    %v4184 = vadd.f32 %v4125, %v4183
    %v4185 = vpop.f32.mrf.mxu0
    %v4186 = vadd.f32 %v4127, %v4185
    %4187 = vmatmul.bf16.gmra.mxu0 %v3440
    %v4188 = vpop.f32.mrf.mxu0
    %v4189 = vadd.f32 %v4130, %v4188
    %v4190 = vpop.f32.mrf.mxu0
    %v4191 = vadd.f32 %v4132, %v4190
    %4192 = vdwg.mxu0
    %4193 = vmatpush.bf16.msra.mxu0 %v3868
    %4194 = vmatpush.bf16.msra.mxu0 %v3867
    %4195 = vmatpush.bf16.msra.mxu0 %v3866
    %4196 = vmatpush.bf16.msra.mxu0 %v3865
    %4197 = vmatpush.bf16.msra.mxu0 %v3864
    %4198 = vmatpush.bf16.msra.mxu0 %v3863
    %4199 = vmatpush.bf16.msra.mxu0 %v3862
    %4200 = vmatpush.bf16.msra.mxu0 %v3861
    %4201 = vmatmul.bf16.gmra.mxu0 %v3369
    %v4202 = vpop.f32.mrf.mxu0
    %v4203 = vadd.f32 %v4144, %v4202
    %v4204 = vpop.f32.mrf.mxu0
    %v4205 = vadd.f32 %v4146, %v4204
    %4206 = vmatmul.bf16.gmra.mxu0 %v3377
    %v4207 = vpop.f32.mrf.mxu0
    %v4208 = vadd.f32 %v4149, %v4207
    %v4209 = vpop.f32.mrf.mxu0
    %v4210 = vadd.f32 %v4151, %v4209
    %4211 = vmatmul.bf16.gmra.mxu0 %v3385
    %v4212 = vpop.f32.mrf.mxu0
    %v4213 = vadd.f32 %v4154, %v4212
    %v4214 = vpop.f32.mrf.mxu0
    %v4215 = vadd.f32 %v4156, %v4214
    %4216 = vmatmul.bf16.gmra.mxu0 %v3393
    %v4217 = vpop.f32.mrf.mxu0
    %v4218 = vadd.f32 %v4159, %v4217
    %v4219 = vpop.f32.mrf.mxu0
    %v4220 = vadd.f32 %v4161, %v4219
    %4221 = vmatmul.bf16.gmra.mxu0 %v3401
    %v4222 = vpop.f32.mrf.mxu0
    %v4223 = vadd.f32 %v4164, %v4222
    %v4224 = vpop.f32.mrf.mxu0
    %v4225 = vadd.f32 %v4166, %v4224
    %4226 = vmatmul.bf16.gmra.mxu0 %v3409
    %v4227 = vpop.f32.mrf.mxu0
    %v4228 = vadd.f32 %v4169, %v4227
    %v4229 = vpop.f32.mrf.mxu0
    %v4230 = vadd.f32 %v4171, %v4229
    %4231 = vmatmul.bf16.gmra.mxu0 %v3417
    %v4232 = vpop.f32.mrf.mxu0
    %v4233 = vadd.f32 %v4174, %v4232
    %v4234 = vpop.f32.mrf.mxu0
    %v4235 = vadd.f32 %v4176, %v4234
    %4236 = vmatmul.bf16.gmra.mxu0 %v3425
    %v4237 = vpop.f32.mrf.mxu0
    %v4238 = vadd.f32 %v4179, %v4237
    %v4239 = vpop.f32.mrf.mxu0
    %v4240 = vadd.f32 %v4181, %v4239
    %4241 = vmatmul.bf16.gmra.mxu0 %v3433
    %v4242 = vpop.f32.mrf.mxu0
    %v4243 = vadd.f32 %v4184, %v4242
    %v4244 = vpop.f32.mrf.mxu0
    %v4245 = vadd.f32 %v4186, %v4244
    %4246 = vmatmul.bf16.gmra.mxu0 %v3441
    %v4247 = vpop.f32.mrf.mxu0
    %v4248 = vadd.f32 %v4189, %v4247
    %v4249 = vpop.f32.mrf.mxu0
    %v4250 = vadd.f32 %v4191, %v4249
    %4251 = vdwg.mxu0
    %4252 = vmatpush.bf16.msra.mxu0 %v3876
    %4253 = vmatpush.bf16.msra.mxu0 %v3875
    %4254 = vmatpush.bf16.msra.mxu0 %v3874
    %4255 = vmatpush.bf16.msra.mxu0 %v3873
    %4256 = vmatpush.bf16.msra.mxu0 %v3872
    %4257 = vmatpush.bf16.msra.mxu0 %v3871
    %4258 = vmatpush.bf16.msra.mxu0 %v3870
    %4259 = vmatpush.bf16.msra.mxu0 %v3869
    %4260 = vmatmul.bf16.gmra.mxu0 %v3370
    %v4261 = vpop.f32.mrf.mxu0
    %v4262 = vadd.f32 %v4203, %v4261
    %v4263 = vpop.f32.mrf.mxu0
    %v4264 = vadd.f32 %v4205, %v4263
    %4265 = vmatmul.bf16.gmra.mxu0 %v3378
    %v4266 = vpop.f32.mrf.mxu0
    %v4267 = vadd.f32 %v4208, %v4266
    %v4268 = vpop.f32.mrf.mxu0
    %v4269 = vadd.f32 %v4210, %v4268
    %4270 = vmatmul.bf16.gmra.mxu0 %v3386
    %v4271 = vpop.f32.mrf.mxu0
    %v4272 = vadd.f32 %v4213, %v4271
    %v4273 = vpop.f32.mrf.mxu0
    %v4274 = vadd.f32 %v4215, %v4273
    %4275 = vmatmul.bf16.gmra.mxu0 %v3394
    %v4276 = vpop.f32.mrf.mxu0
    %v4277 = vadd.f32 %v4218, %v4276
    %v4278 = vpop.f32.mrf.mxu0
    %v4279 = vadd.f32 %v4220, %v4278
    %4280 = vmatmul.bf16.gmra.mxu0 %v3402
    %v4281 = vpop.f32.mrf.mxu0
    %v4282 = vadd.f32 %v4223, %v4281
    %v4283 = vpop.f32.mrf.mxu0
    %v4284 = vadd.f32 %v4225, %v4283
    %4285 = vmatmul.bf16.gmra.mxu0 %v3410
    %v4286 = vpop.f32.mrf.mxu0
    %v4287 = vadd.f32 %v4228, %v4286
    %v4288 = vpop.f32.mrf.mxu0
    %v4289 = vadd.f32 %v4230, %v4288
    %4290 = vmatmul.bf16.gmra.mxu0 %v3418
    %v4291 = vpop.f32.mrf.mxu0
    %v4292 = vadd.f32 %v4233, %v4291
    %v4293 = vpop.f32.mrf.mxu0
    %v4294 = vadd.f32 %v4235, %v4293
    %4295 = vmatmul.bf16.gmra.mxu0 %v3426
    %v4296 = vpop.f32.mrf.mxu0
    %v4297 = vadd.f32 %v4238, %v4296
    %v4298 = vpop.f32.mrf.mxu0
    %v4299 = vadd.f32 %v4240, %v4298
    %4300 = vmatmul.bf16.gmra.mxu0 %v3434
    %v4301 = vpop.f32.mrf.mxu0
    %v4302 = vadd.f32 %v4243, %v4301
    %v4303 = vpop.f32.mrf.mxu0
    %v4304 = vadd.f32 %v4245, %v4303
    %4305 = vmatmul.bf16.gmra.mxu0 %v3442
    %v4306 = vpop.f32.mrf.mxu0
    %v4307 = vadd.f32 %v4248, %v4306
    %v4308 = vpop.f32.mrf.mxu0
    %v4309 = vadd.f32 %v4250, %v4308
    %4310 = vdwg.mxu0
    %4311 = vmatpush.bf16.msra.mxu0 %v3884
    %4312 = vmatpush.bf16.msra.mxu0 %v3883
    %4313 = vmatpush.bf16.msra.mxu0 %v3882
    %4314 = vmatpush.bf16.msra.mxu0 %v3881
    %4315 = vmatpush.bf16.msra.mxu0 %v3880
    %4316 = vmatpush.bf16.msra.mxu0 %v3879
    %4317 = vmatpush.bf16.msra.mxu0 %v3878
    %4318 = vmatpush.bf16.msra.mxu0 %v3877
    %4319 = vmatmul.bf16.gmra.mxu0 %v3371
    %v4320 = vpop.f32.mrf.mxu0
    %v4321 = vadd.f32 %v4262, %v4320
    %v4322 = vpop.f32.mrf.mxu0
    %v4323 = vadd.f32 %v4264, %v4322
    %4324 = vmatmul.bf16.gmra.mxu0 %v3379
    %v4325 = vpop.f32.mrf.mxu0
    %v4326 = vadd.f32 %v4267, %v4325
    %v4327 = vpop.f32.mrf.mxu0
    %v4328 = vadd.f32 %v4269, %v4327
    %4329 = vmatmul.bf16.gmra.mxu0 %v3387
    %v4330 = vpop.f32.mrf.mxu0
    %v4331 = vadd.f32 %v4272, %v4330
    %v4332 = vpop.f32.mrf.mxu0
    %v4333 = vadd.f32 %v4274, %v4332
    %4334 = vmatmul.bf16.gmra.mxu0 %v3395
    %v4335 = vpop.f32.mrf.mxu0
    %v4336 = vadd.f32 %v4277, %v4335
    %v4337 = vpop.f32.mrf.mxu0
    %v4338 = vadd.f32 %v4279, %v4337
    %4339 = vmatmul.bf16.gmra.mxu0 %v3403
    %v4340 = vpop.f32.mrf.mxu0
    %v4341 = vadd.f32 %v4282, %v4340
    %v4342 = vpop.f32.mrf.mxu0
    %v4343 = vadd.f32 %v4284, %v4342
    %4344 = vmatmul.bf16.gmra.mxu0 %v3411
    %v4345 = vpop.f32.mrf.mxu0
    %v4346 = vadd.f32 %v4287, %v4345
    %v4347 = vpop.f32.mrf.mxu0
    %v4348 = vadd.f32 %v4289, %v4347
    %4349 = vmatmul.bf16.gmra.mxu0 %v3419
    %v4350 = vpop.f32.mrf.mxu0
    %v4351 = vadd.f32 %v4292, %v4350
    %v4352 = vpop.f32.mrf.mxu0
    %v4353 = vadd.f32 %v4294, %v4352
    %4354 = vmatmul.bf16.gmra.mxu0 %v3427
    %v4355 = vpop.f32.mrf.mxu0
    %v4356 = vadd.f32 %v4297, %v4355
    %v4357 = vpop.f32.mrf.mxu0
    %v4358 = vadd.f32 %v4299, %v4357
    %4359 = vmatmul.bf16.gmra.mxu0 %v3435
    %v4360 = vpop.f32.mrf.mxu0
    %v4361 = vadd.f32 %v4302, %v4360
    %v4362 = vpop.f32.mrf.mxu0
    %v4363 = vadd.f32 %v4304, %v4362
    %4364 = vmatmul.bf16.gmra.mxu0 %v3443
    %v4365 = vpop.f32.mrf.mxu0
    %v4366 = vadd.f32 %v4307, %v4365
    %v4367 = vpop.f32.mrf.mxu0
    %v4368 = vadd.f32 %v4309, %v4367
    %4369 = vdwg.mxu0
    %4370 = vmatpush.bf16.msra.mxu0 %v3892
    %4371 = vmatpush.bf16.msra.mxu0 %v3891
    %4372 = vmatpush.bf16.msra.mxu0 %v3890
    %4373 = vmatpush.bf16.msra.mxu0 %v3889
    %4374 = vmatpush.bf16.msra.mxu0 %v3888
    %4375 = vmatpush.bf16.msra.mxu0 %v3887
    %4376 = vmatpush.bf16.msra.mxu0 %v3886
    %4377 = vmatpush.bf16.msra.mxu0 %v3885
    %4378 = vmatmul.bf16.gmra.mxu0 %v3372
    %v4379 = vpop.f32.mrf.mxu0
    %v4380 = vadd.f32 %v4321, %v4379
    %v4381 = vpop.f32.mrf.mxu0
    %v4382 = vadd.f32 %v4323, %v4381
    %4383 = vmatmul.bf16.gmra.mxu0 %v3380
    %v4384 = vpop.f32.mrf.mxu0
    %v4385 = vadd.f32 %v4326, %v4384
    %v4386 = vpop.f32.mrf.mxu0
    %v4387 = vadd.f32 %v4328, %v4386
    %4388 = vmatmul.bf16.gmra.mxu0 %v3388
    %v4389 = vpop.f32.mrf.mxu0
    %v4390 = vadd.f32 %v4331, %v4389
    %v4391 = vpop.f32.mrf.mxu0
    %v4392 = vadd.f32 %v4333, %v4391
    %4393 = vmatmul.bf16.gmra.mxu0 %v3396
    %v4394 = vpop.f32.mrf.mxu0
    %v4395 = vadd.f32 %v4336, %v4394
    %v4396 = vpop.f32.mrf.mxu0
    %v4397 = vadd.f32 %v4338, %v4396
    %4398 = vmatmul.bf16.gmra.mxu0 %v3404
    %v4399 = vpop.f32.mrf.mxu0
    %v4400 = vadd.f32 %v4341, %v4399
    %v4401 = vpop.f32.mrf.mxu0
    %v4402 = vadd.f32 %v4343, %v4401
    %4403 = vmatmul.bf16.gmra.mxu0 %v3412
    %v4404 = vpop.f32.mrf.mxu0
    %v4405 = vadd.f32 %v4346, %v4404
    %v4406 = vpop.f32.mrf.mxu0
    %v4407 = vadd.f32 %v4348, %v4406
    %4408 = vmatmul.bf16.gmra.mxu0 %v3420
    %v4409 = vpop.f32.mrf.mxu0
    %v4410 = vadd.f32 %v4351, %v4409
    %v4411 = vpop.f32.mrf.mxu0
    %v4412 = vadd.f32 %v4353, %v4411
    %4413 = vmatmul.bf16.gmra.mxu0 %v3428
    %v4414 = vpop.f32.mrf.mxu0
    %v4415 = vadd.f32 %v4356, %v4414
    %v4416 = vpop.f32.mrf.mxu0
    %v4417 = vadd.f32 %v4358, %v4416
    %4418 = vmatmul.bf16.gmra.mxu0 %v3436
    %v4419 = vpop.f32.mrf.mxu0
    %v4420 = vadd.f32 %v4361, %v4419
    %v4421 = vpop.f32.mrf.mxu0
    %v4422 = vadd.f32 %v4363, %v4421
    %4423 = vmatmul.bf16.gmra.mxu0 %v3444
    %v4424 = vpop.f32.mrf.mxu0
    %v4425 = vadd.f32 %v4366, %v4424
    %v4426 = vpop.f32.mrf.mxu0
    %v4427 = vadd.f32 %v4368, %v4426
    %4428 = vdwg.mxu0
    %v4429 = vld [vmem:[%s13] sm:$0xff]
    %v4430 = vld [vmem:[%s13 + $0x8] sm:$0xff]
    %v4431 = vld [vmem:[%s13 + $0x10] sm:$0xff]
    %v4432 = vld [vmem:[%s13 + $0x18] sm:$0xff]
    %v4433 = vld [vmem:[%s13 + $0x20] sm:$0xff]
    %v4434 = vld [vmem:[%s13 + $0x28] sm:$0xff]
    %v4435 = vpack.c.bf16 %v4382, %v4380
    %v4436 = vpack.c.bf16 %v4387, %v4385
    %v4437 = vpack.c.bf16 %v4392, %v4390
    %v4438 = vpack.c.bf16 %v4397, %v4395
    %v4439 = vpack.c.bf16 %v4402, %v4400
    %v4440 = vpack.c.bf16 %v4407, %v4405
    %v4441 = vpack.c.bf16 %v4412, %v4410
    %v4442 = vpack.c.bf16 %v4417, %v4415
    %v4443 = vpack.c.bf16 %v4422, %v4420
    %v4444 = vpack.c.bf16 %v4427, %v4425
    %v4451 = vunpack.c.l.b16 %v4429
    %v4452 = vunpack.c.h.b16 %v4429
    %v4453 = vunpack.c.l.b16 %v4430
    %v4454 = vunpack.c.h.b16 %v4430
    %v4455 = vunpack.c.l.b16 %v4431
    %v4456 = vunpack.c.h.b16 %v4431
    %v4457 = vunpack.c.l.b16 %v4432
    %v4458 = vunpack.c.h.b16 %v4432
    %v4459 = vunpack.c.l.b16 %v4433
    %v4460 = vunpack.c.h.b16 %v4433
    %v4461 = vunpack.c.l.b16 %v4434
    %v4462 = vunpack.c.h.b16 %v4434
    %v4463 = vpack.c.b16 %v4453, %v4451
    %v4464 = vpack.c.b16 %v4454, %v4452
    %v4465 = vpack.c.b16 %v4457, %v4455
    %v4466 = vpack.c.b16 %v4458, %v4456
    %v4467 = vpack.c.b16 %v4461, %v4459
    %v4468 = vpack.c.b16 %v4462, %v4460
    %v4473 = vsel %vm498, %v4464, 0
    %v4476 = vsel %vm498, %v4466, 0
    %v4479 = vsel %vm498, %v4468, 0
    %4481 = vmatpush.bf16.msra.mxu0 %v4442
    %4482 = vmatpush.bf16.msra.mxu0 %v4441
    %4483 = vmatpush.bf16.msra.mxu0 %v4440
    %4484 = vmatpush.bf16.msra.mxu0 %v4439
    %4485 = vmatpush.bf16.msra.mxu0 %v4438
    %4486 = vmatpush.bf16.msra.mxu0 %v4437
    %4487 = vmatpush.bf16.msra.mxu0 %v4436
    %4488 = vmatpush.bf16.msra.mxu0 %v4435
    %4489 = vmatmul.bf16.gmra.mxu0 %v4463
    %v4490 = vpop.f32.mrf.mxu0
    %v4491 = vadd.f32 0.0, %v4490
    %v4492 = vpop.f32.mrf.mxu0
    %v4493 = vadd.f32 0.0, %v4492
    %4494 = vmatmul.bf16.gmra.mxu0 %v4465
    %v4495 = vpop.f32.mrf.mxu0
    %v4496 = vadd.f32 0.0, %v4495
    %v4497 = vpop.f32.mrf.mxu0
    %v4498 = vadd.f32 0.0, %v4497
    %4499 = vmatmul.bf16.gmra.mxu0 %v4467
    %v4500 = vpop.f32.mrf.mxu0
    %v4501 = vadd.f32 0.0, %v4500
    %v4502 = vpop.f32.mrf.mxu0
    %v4503 = vadd.f32 0.0, %v4502
    %4504 = vdwg.mxu0
    %4505 = vmatpush.bf16.msra.mxu0 0
    %4506 = vmatpush.bf16.msra.mxu0 0
    %4507 = vmatpush.bf16.msra.mxu0 0
    %4508 = vmatpush.bf16.msra.mxu0 0
    %4509 = vmatpush.bf16.msra.mxu0 0
    %4510 = vmatpush.bf16.msra.mxu0 0
    %4511 = vmatpush.bf16.msra.mxu0 %v4444
    %4512 = vmatpush.bf16.msra.mxu0 %v4443
    %4513 = vmatmul.bf16.gmra.mxu0 %v4473
    %v4514 = vpop.f32.mrf.mxu0
    %v4515 = vadd.f32 %v4491, %v4514
    %v4516 = vpop.f32.mrf.mxu0
    %v4517 = vadd.f32 %v4493, %v4516
    %4518 = vmatmul.bf16.gmra.mxu0 %v4476
    %v4519 = vpop.f32.mrf.mxu0
    %v4520 = vadd.f32 %v4496, %v4519
    %v4521 = vpop.f32.mrf.mxu0
    %v4522 = vadd.f32 %v4498, %v4521
    %4523 = vmatmul.bf16.gmra.mxu0 %v4479
    %v4524 = vpop.f32.mrf.mxu0
    %v4525 = vadd.f32 %v4501, %v4524
    %v4526 = vpop.f32.mrf.mxu0
    %v4527 = vadd.f32 %v4503, %v4526
    %4528 = vdwg.mxu0
    %v4529 = vld [vmem:[%s19] sm:$0xf]
    %v4530 = vld [vmem:[%s19 + $0x4] sm:$0xf]
    %v4531 = vld [vmem:[%s19 + $0x8] sm:$0xf]
    %v4532 = vld [vmem:[%s19 + $0xc] sm:$0xf]
    %v4537 = vunpack.c.l.b16 %v4529
    %v4538 = vunpack.c.l.b16 %v4530
    %v4539 = vunpack.c.l.b16 %v4531
    %v4540 = vunpack.c.l.b16 %v4532
    %v4541 = vpack.c.b16 %v4538, %v4537
    %v4542 = vpack.c.b16 %v4540, %v4539
    %v4546 = vsel %vm498, %v1826, 0
    %v4549 = vsel %vm498, %v1827, 0
    %v4552 = vsel %vm498, %v1828, 0
    %4554 = vmatpush.bf16.msra.mxu0 0
    %4555 = vmatpush.bf16.msra.mxu0 0
    %4556 = vmatpush.bf16.msra.mxu0 0
    %4557 = vmatpush.bf16.msra.mxu0 0
    %4558 = vmatpush.bf16.msra.mxu0 0
    %4559 = vmatpush.bf16.msra.mxu0 0
    %4560 = vmatpush.bf16.msra.mxu0 %v4542
    %4561 = vmatpush.bf16.msra.mxu0 %v4541
    %4562 = vmatmul.bf16.gmra.mxu0 %v4546
    %v4563 = vpop.f32.mrf.mxu0
    %v4564 = vadd.f32 %v4515, %v4563
    %v4565 = vpop.f32.mrf.mxu0
    %v4566 = vadd.f32 %v4517, %v4565
    %4567 = vmatmul.bf16.gmra.mxu0 %v4549
    %v4568 = vpop.f32.mrf.mxu0
    %v4569 = vadd.f32 %v4520, %v4568
    %v4570 = vpop.f32.mrf.mxu0
    %v4571 = vadd.f32 %v4522, %v4570
    %4572 = vmatmul.bf16.gmra.mxu0 %v4552
    %v4573 = vpop.f32.mrf.mxu0
    %v4574 = vadd.f32 %v4525, %v4573
    %v4575 = vpop.f32.mrf.mxu0
    %v4576 = vadd.f32 %v4527, %v4575
    %4577 = vdwg.mxu0
    %v4578 = vld [vmem:[%s20] sm:$0x1]
    %v4580 = vperm.slane %v4578, 0
    %v4582 = vadd.f32 %v4564, %v4580
    %v4583 = vadd.f32 %v4566, %v4580
    %v4584 = vadd.f32 %v4569, %v4580
    %v4585 = vadd.f32 %v4571, %v4580
    %v4586 = vadd.f32 %v4574, %v4580
    %v4587 = vadd.f32 %v4576, %v4580
    %vm4588 = vcmp.gt.f32.partialorder %v4582, 0.0
    %vm4589 = vcmp.gt.f32.partialorder %v4583, 0.0
    %vm4590 = vcmp.gt.f32.partialorder %v4584, 0.0
    %vm4591 = vcmp.gt.f32.partialorder %v4585, 0.0
    %vm4592 = vcmp.gt.f32.partialorder %v4586, 0.0
    %vm4593 = vcmp.gt.f32.partialorder %v4587, 0.0
    %v4594 = vmin.f32 %v4582, 0.0
    %v4595 = vmin.f32 %v4583, 0.0
    %v4596 = vmin.f32 %v4584, 0.0
    %v4597 = vmin.f32 %v4585, 0.0
    %v4598 = vmin.f32 %v4586, 0.0
    %v4599 = vmin.f32 %v4587, 0.0
    %v4600 = vmul.f32 %v4594, 1.442695
    %v4601 = vpow.pop %v4600
    %v4602 = vmul.f32 %v4595, 1.442695
    %v4603 = vpow.pop %v4602
    %v4604 = vmul.f32 %v4596, 1.442695
    %v4605 = vpow.pop %v4604
    %v4606 = vmul.f32 %v4597, 1.442695
    %v4607 = vpow.pop %v4606
    %v4608 = vmul.f32 %v4598, 1.442695
    %v4609 = vpow.pop %v4608
    %v4610 = vmul.f32 %v4599, 1.442695
    %v4611 = vpow.pop %v4610
    %v4612 = vsub.f32 %v4601, 1.0
    %v4613 = vsub.f32 %v4603, 1.0
    %v4614 = vsub.f32 %v4605, 1.0
    %v4615 = vsub.f32 %v4607, 1.0
    %v4616 = vsub.f32 %v4609, 1.0
    %v4617 = vsub.f32 %v4611, 1.0
    %v4618 = vsel %vm4588, %v4582, %v4612
    %v4619 = vsel %vm4589, %v4583, %v4613
    %v4620 = vsel %vm4590, %v4584, %v4614
    %v4621 = vsel %vm4591, %v4585, %v4615
    %v4622 = vsel %vm4592, %v4586, %v4616
    %v4623 = vsel %vm4593, %v4587, %v4617
    %v4624 = vpack.c.bf16 %v4619, %v4618
    %v4625 = vpack.c.bf16 %v4621, %v4620
    %v4626 = vpack.c.bf16 %v4623, %v4622
    %v4627 = vld [vmem:[%s21] sm:$0xf]
    %v4628 = vld [vmem:[%s21 + $0x4] sm:$0xf]
    %v4629 = vld [vmem:[%s21 + $0x8] sm:$0xf]
    %v4630 = vld [vmem:[%s21 + $0xc] sm:$0xf]
    %v4635 = vunpack.c.l.b16 %v4627
    %v4636 = vunpack.c.l.b16 %v4628
    %v4637 = vunpack.c.l.b16 %v4629
    %v4638 = vunpack.c.l.b16 %v4630
    %v4639 = vpack.c.b16 %v4636, %v4635
    %v4640 = vpack.c.b16 %v4638, %v4637
    %v4642 = vsel %vm1899, %v4639, 0
    %v4645 = vsel %vm1899, %v4640, 0
    %4647 = vmatpush.bf16.msra.mxu0 0
    %4648 = vmatpush.bf16.msra.mxu0 0
    %4649 = vmatpush.bf16.msra.mxu0 0
    %4650 = vmatpush.bf16.msra.mxu0 0
    %4651 = vmatpush.bf16.msra.mxu0 0
    %4652 = vmatpush.bf16.msra.mxu0 %v4626
    %4653 = vmatpush.bf16.msra.mxu0 %v4625
    %4654 = vmatpush.bf16.msra.mxu0 %v4624
    %4655 = vmatmul.bf16.gmra.mxu0 %v4642
    %v4656 = vpop.f32.mrf.mxu0
    %v4657 = vadd.f32 0.0, %v4656
    %v4658 = vpop.f32.mrf.mxu0
    %v4659 = vadd.f32 0.0, %v4658
    %4660 = vmatmul.bf16.gmra.mxu0 %v4645
    %v4661 = vpop.f32.mrf.mxu0
    %v4662 = vadd.f32 0.0, %v4661
    %v4663 = vpop.f32.mrf.mxu0
    %v4664 = vadd.f32 0.0, %v4663
    %4665 = vdwg.mxu0
    %v4666 = vld [vmem:[%s22] sm:$0xf]
    %v4667 = vld [vmem:[%s22 + $0x4] sm:$0xf]
    %v4668 = vld [vmem:[%s22 + $0x8] sm:$0xf]
    %v4669 = vld [vmem:[%s22 + $0xc] sm:$0xf]
    %v4674 = vunpack.c.l.b16 %v4666
    %v4675 = vunpack.c.l.b16 %v4667
    %v4676 = vunpack.c.l.b16 %v4668
    %v4677 = vunpack.c.l.b16 %v4669
    %v4678 = vpack.c.b16 %v4675, %v4674
    %v4679 = vpack.c.b16 %v4677, %v4676
    %v4681 = vsel %vm1899, %v4678, 0
    %v4684 = vsel %vm1899, %v4679, 0
    %4686 = vmatpush.bf16.msra.mxu0 0
    %4687 = vmatpush.bf16.msra.mxu0 0
    %4688 = vmatpush.bf16.msra.mxu0 0
    %4689 = vmatpush.bf16.msra.mxu0 0
    %4690 = vmatpush.bf16.msra.mxu0 0
    %4691 = vmatpush.bf16.msra.mxu0 %v4626
    %4692 = vmatpush.bf16.msra.mxu0 %v4625
    %4693 = vmatpush.bf16.msra.mxu0 %v4624
    %4694 = vmatmul.bf16.gmra.mxu0 %v4681
    %v4695 = vpop.f32.mrf.mxu0
    %v4696 = vadd.f32 0.0, %v4695
    %v4697 = vpop.f32.mrf.mxu0
    %v4698 = vadd.f32 0.0, %v4697
    %4699 = vmatmul.bf16.gmra.mxu0 %v4684
    %v4700 = vpop.f32.mrf.mxu0
    %v4701 = vadd.f32 0.0, %v4700
    %v4702 = vpop.f32.mrf.mxu0
    %v4703 = vadd.f32 0.0, %v4702
    %4704 = vdwg.mxu0
    %v4705 = vmax.f32 %v4657, %v4696
    %v4706 = vmax.f32 %v4659, %v4698
    %v4707 = vmax.f32 %v4662, %v4701
    %v4708 = vmax.f32 %v4664, %v4703
    %v4709 = vld [vmem:[%s23] sm:$0x1]
    %v4710 = vpack.c.bf16 %v4706, %v4705
    %v4711 = vpack.c.bf16 %v4708, %v4707
    %v4713 = vsel %vm498, %v4709, 0
    %4715 = vmatpush.bf16.msra.mxu0 0
    %4716 = vmatpush.bf16.msra.mxu0 0
    %4717 = vmatpush.bf16.msra.mxu0 0
    %4718 = vmatpush.bf16.msra.mxu0 0
    %4719 = vmatpush.bf16.msra.mxu0 0
    %4720 = vmatpush.bf16.msra.mxu0 0
    %4721 = vmatpush.bf16.msra.mxu0 %v4711
    %4722 = vmatpush.bf16.msra.mxu0 %v4710
    %4723 = vmatmul.bf16.gmra.mxu0 %v4713
    %v4724 = vpop.f32.mrf.mxu0
    %v4725 = vadd.f32 0.0, %v4724
    %v4726 = vpop.f32.mrf.mxu0
    %4727 = vdwg.mxu0
    %v4728 = vpack.c.bf16 %v4725, %v4725
    %v4729 = vld [vmem:[%s24] sm:$0xf]
    %v4730 = vld [vmem:[%s24 + $0x4] sm:$0xf]
    %v4731 = vld [vmem:[%s24 + $0x8] sm:$0xf]
    %v4732 = vld [vmem:[%s24 + $0xc] sm:$0xf]
    %v4733 = vld [vmem:[%s24 + $0x10] sm:$0xf]
    %v4734 = vld [vmem:[%s24 + $0x14] sm:$0xf]
    %v4735 = vld [vmem:[%s24 + $0x18] sm:$0xf]
    %v4736 = vld [vmem:[%s24 + $0x1c] sm:$0xf]
    %v4737 = vld [vmem:[%s25] sm:$0x1]
    %v4739 = vperm.slane %v4737, 0
    %v4749 = vunpack.c.l.b16 %v4729
    %v4750 = vunpack.c.l.b16 %v4730
    %v4751 = vunpack.c.l.b16 %v4731
    %v4752 = vunpack.c.l.b16 %v4732
    %v4753 = vunpack.c.l.b16 %v4733
    %v4754 = vunpack.c.l.b16 %v4734
    %v4755 = vunpack.c.l.b16 %v4735
    %v4756 = vunpack.c.l.b16 %v4736
    %v4757 = vpack.c.b16 %v4750, %v4749
    %v4758 = vpack.c.b16 %v4752, %v4751
    %v4759 = vpack.c.b16 %v4754, %v4753
    %v4760 = vpack.c.b16 %v4756, %v4755
    %v4766 = vsel %vm808, %v4728, 0
    %4768 = vmatpush.bf16.msra.mxu0 0
    %4769 = vmatpush.bf16.msra.mxu0 0
    %4770 = vmatpush.bf16.msra.mxu0 0
    %4771 = vmatpush.bf16.msra.mxu0 0
    %4772 = vmatpush.bf16.msra.mxu0 %v4760
    %4773 = vmatpush.bf16.msra.mxu0 %v4759
    %4774 = vmatpush.bf16.msra.mxu0 %v4758
    %4775 = vmatpush.bf16.msra.mxu0 %v4757
    %4776 = vmatmul.bf16.gmra.mxu0 %v4766
    %v4777 = vpop.f32.mrf.mxu0
    %v4778 = vadd.f32 %v4739, %v4777
    %v4779 = vpop.f32.mrf.mxu0
    %4780 = vdwg.mxu0
    %vm4781 = vcmp.gt.f32.partialorder %v4778, 0.0
    %v4782 = vmin.f32 %v4778, 0.0
    %v4783 = vmul.f32 %v4782, 1.442695
    %v4784 = vpow.pop %v4783
    %v4785 = vsub.f32 %v4784, 1.0
    %v4786 = vsel %vm4781, %v4778, %v4785
    %v4787 = vpack.c.bf16 %v4786, %v4786
    %v4788 = vld [vmem:[%s26] sm:$0xf]
    %v4789 = vld [vmem:[%s26 + $0x4] sm:$0xf]
    %v4790 = vld [vmem:[%s26 + $0x8] sm:$0xf]
    %v4791 = vld [vmem:[%s26 + $0xc] sm:$0xf]
    %v4792 = vld [vmem:[%s26 + $0x10] sm:$0xf]
    %v4793 = vld [vmem:[%s26 + $0x14] sm:$0xf]
    %v4794 = vld [vmem:[%s26 + $0x18] sm:$0xf]
    %v4795 = vld [vmem:[%s26 + $0x1c] sm:$0xf]
    %v4796 = vld [vmem:[%s26 + $0x20] sm:$0xf]
    %v4797 = vld [vmem:[%s26 + $0x24] sm:$0xf]
    %v4798 = vld [vmem:[%s26 + $0x28] sm:$0xf]
    %v4799 = vld [vmem:[%s26 + $0x2c] sm:$0xf]
    %v4800 = vld [vmem:[%s26 + $0x30] sm:$0xf]
    %v4801 = vld [vmem:[%s26 + $0x34] sm:$0xf]
    %v4802 = vld [vmem:[%s26 + $0x38] sm:$0xf]
    %v4803 = vld [vmem:[%s26 + $0x3c] sm:$0xf]
    %v4804 = vld [vmem:[%s27] sm:$0x1]
    %v4806 = vperm.slane %v4804, 0
    %v4824 = vunpack.c.l.b16 %v4788
    %v4825 = vunpack.c.l.b16 %v4789
    %v4826 = vunpack.c.l.b16 %v4790
    %v4827 = vunpack.c.l.b16 %v4791
    %v4828 = vunpack.c.l.b16 %v4792
    %v4829 = vunpack.c.l.b16 %v4793
    %v4830 = vunpack.c.l.b16 %v4794
    %v4831 = vunpack.c.l.b16 %v4795
    %v4832 = vunpack.c.l.b16 %v4796
    %v4833 = vunpack.c.l.b16 %v4797
    %v4834 = vunpack.c.l.b16 %v4798
    %v4835 = vunpack.c.l.b16 %v4799
    %v4836 = vunpack.c.l.b16 %v4800
    %v4837 = vunpack.c.l.b16 %v4801
    %v4838 = vunpack.c.l.b16 %v4802
    %v4839 = vunpack.c.l.b16 %v4803
    %v4840 = vpack.c.b16 %v4825, %v4824
    %v4841 = vpack.c.b16 %v4827, %v4826
    %v4842 = vpack.c.b16 %v4829, %v4828
    %v4843 = vpack.c.b16 %v4831, %v4830
    %v4844 = vpack.c.b16 %v4833, %v4832
    %v4845 = vpack.c.b16 %v4835, %v4834
    %v4846 = vpack.c.b16 %v4837, %v4836
    %v4847 = vpack.c.b16 %v4839, %v4838
    %4856 = vmatpush.bf16.msra.mxu0 %v4847
    %4857 = vmatpush.bf16.msra.mxu0 %v4846
    %4858 = vmatpush.bf16.msra.mxu0 %v4845
    %4859 = vmatpush.bf16.msra.mxu0 %v4844
    %4860 = vmatpush.bf16.msra.mxu0 %v4843
    %4861 = vmatpush.bf16.msra.mxu0 %v4842
    %4862 = vmatpush.bf16.msra.mxu0 %v4841
    %4863 = vmatpush.bf16.msra.mxu0 %v4840
    %4864 = vmatmul.bf16.gmra.mxu0 %v4787
    %v4865 = vpop.f32.mrf.mxu0
    %v4866 = vadd.f32 %v4806, %v4865
    %v4867 = vpop.f32.mrf.mxu0
    %4868 = vdwg.mxu0
    %vm4869 = vcmask 74752
    %v4870 = vsel %vm4869, %v4866, -inf
    %4871 = vmax.xlane.f32.xlu0 %v4870
    %v4872 = vpop.xlane.xlu0 %4871
    %v4873 = vsub.f32 %v4866, %v4872
    %v4874 = vmul.f32 %v4873, 1.442695
    %v4875 = vpow.pop %v4874
    %v4876 = vsel %vm4869, %v4875, 0.0
    %4877 = vadd.xlane.f32.xlu0 %v4876
    %v4878 = vpop.xlane.xlu0 %4877
    %v4879 = vlog2.pop %v4878
    %v4880 = vmul.f32 %v4879, 0.6931472
    %v4881 = vsub.f32 %v4873, %v4880
    %4882 = vst.msk [vmem:[#allocation2] sm:$0x3] %vm4869, %v4881
    // Predicated region
    $region114: #{tpu_custom_call.1} parent=1 // pred_check
      _
    $region115: #{tpu_custom_call.1} parent=1 // pred_check_branch
      %4884 = sbr.rel (0) target = $region117
    $region116: #{tpu_custom_call.1} parent=1 // pred_region
      %4886 = vsyncadd [#allocation3], 0
      %s4888 = sshll.u32 [#allocation2], 4
      %s4889 = int_to_ptr.vmem [resolvable:$true] %s4888
      %s4890 = sshll.u32 %s28, 4
      %s4891 = int_to_ptr.hbm [resolvable:$true] %s4890
      %4893 = dma.vmem_to_hbm [thread:$0]  %s4889, 32, %s4891, [#allocation3]
    $region117: #{tpu_custom_call.1} parent=1 // pred_fallthru
      _
    // Predicated region
    $region118: #{tpu_custom_call.1} parent=1 // pred_check
      _
    $region119: #{tpu_custom_call.1} parent=1 // pred_check_branch
      %4895 = sbr.rel (0) target = $region121
    $region120: #{tpu_custom_call.1} parent=1 // pred_region
      %4897 = dma.done [#allocation3], 32
    $region121: #{tpu_custom_call.1} parent=1 // pred_fallthru
      _
    %4898 = vsyncpa [#allocation3], 1

</llo_original>
